<compile_context>
chip_gen: v6e
topology: v6e:2x2x1
jax: 0.10.0
libtpu: 0.0.40
codegen_flags: <defaults>
</compile_context>

<pallas_src>
import jax
import jax.numpy as jnp
from jax.experimental import pallas as pl


# ----------------------------------------------------------------------------
# Fused kernel: quanv0 -> ReLU -> quanv1 -> ReLU -> flatten -> fc0 -> ReLU
#               -> fc1 -> ReLU -> fc2
# ----------------------------------------------------------------------------
def _eqnec_fused_kernel(x_ref, w0_ref, b0_ref, w1_ref, b1_ref,
                        wf0_ref, bf0_ref, wf1_ref, bf1_ref, wf2_ref, bf2_ref,
                        o_ref):
    batch, h_in, _ = x_ref.shape
    ho0 = h_in - 1          # quanv0 output height (2x2 kernel, stride 1, valid)
    ho1 = h_in - 2          # quanv1 output height
    f32 = jnp.float32

    for b in range(batch):                              # tiny batch: static unroll
        xb = x_ref[b]                                   # (H, W*Cin)

        # --- quanv0 + ReLU: one matmul per kernel row (kw folded into weight) ---
        acc0 = (jnp.dot(xb[0:ho0, :], w0_ref[0], preferred_element_type=f32) +
                jnp.dot(xb[1:1 + ho0, :], w0_ref[1], preferred_element_type=f32))
        a0 = jnp.maximum(acc0 + b0_ref[...], 0.0)       # (Ho0, Wo0*F0)

        # --- quanv1 + ReLU (same trick; input already in (H', W'*C') layout) ---
        acc1 = (jnp.dot(a0[0:ho1, :], w1_ref[0], preferred_element_type=f32) +
                jnp.dot(a0[1:1 + ho1, :], w1_ref[1], preferred_element_type=f32))
        a1 = jnp.maximum(acc1 + b1_ref[...], 0.0)       # (Ho1, Wo1*C1)

        # --- channel-major flatten folded into wf0; fc0 + ReLU ---
        f0 = bf0_ref[...]                               # (1, D0)
        for h in range(ho1):
            f0 = f0 + jnp.dot(a1[h:h + 1, :], wf0_ref[h],
                              preferred_element_type=f32)
        f0 = jnp.maximum(f0, 0.0)

        # --- fc1 + ReLU ---
        f1 = jnp.dot(f0, wf1_ref[...], preferred_element_type=f32) + bf1_ref[...]
        f1 = jnp.maximum(f1, 0.0)                       # (1, D1)

        # --- fc2 (single output unit) as a VPU lane reduction ---
        f2 = jnp.sum(f1 * wf2_ref[...], axis=-1, keepdims=True) + bf2_ref[...]

        o_ref[b:b + 1, :] = f2.astype(o_ref.dtype)      # (1, 1)


def convolutional_eqnec_forward(x_nchw, prep):
    """x_nchw: (B, C, H, W) PyTorch-style input; prep: folded parameters."""
    B, C, H, W = x_nchw.shape
    # NCHW -> (B, H, W*C)  (row-major, channel-minor) -- done once by XLA.
    x2 = jnp.transpose(x_nchw, (0, 2, 3, 1)).reshape(B, H, W * C)
    return pl.pallas_call(
        _eqnec_fused_kernel,
        out_shape=jax.ShapeDtypeStruct((B, 1), jnp.float32),
    )(x2, prep["w0"], prep["b0"], prep["w1"], prep["b1"],
      prep["wf0"], prep["bf0"], prep["wf1"], prep["bf1"],
      prep["wf2"], prep["bf2"])


# ----------------------------------------------------------------------------
# One-time parameter folding (all layout work happens here, never at runtime)
# ----------------------------------------------------------------------------
def _fold_conv_width(w_conv, w_in):
    """Fold the kw (width) taps of a 2x2 conv into dense per-kh weights.

    w_conv: (F_out, C_in, 2, 2) in PyTorch OIHW layout.
    Returns (2, w_in*C_in, (w_in-1)*F_out) with
      out[kh, wi*C_in + c, wo*F_out + f] = w_conv[f, c, kh, wi - wo]
    for wi - wo in {0, 1} (zero otherwise), so that
      conv_out[ho, wo*F + f] = sum_kh  x_row(ho + kh) @ out[kh].
    """
    f_out, c_in, k_h, k_w = w_conv.shape
    wo = w_in - 1
    mats = []
    for kh in range(k_h):
        m = jnp.zeros((w_in, c_in, wo, f_out), jnp.float32)
        for kw in range(k_w):
            upd = jnp.broadcast_to(w_conv[:, :, kh, kw].T[None], (wo, c_in, f_out))
            m = m.at[jnp.arange(wo) + kw, :, jnp.arange(wo), :].add(upd)
        mats.append(m.reshape(w_in * c_in, wo * f_out))
    return jnp.stack(mats, axis=0)


def prepare_params(params, *, image_size):
    h = image_size
    wo0 = h - 1
    ho1 = wo1 = h - 2
    c1 = params["w_q1"].shape[0]                    # 4 * n_filters1
    d0, dense_in = params["w_fc0"].shape
    assert dense_in == c1 * ho1 * wo1

    # fc0: PyTorch flattens in (channel, h, w) order; activation row h has
    # columns ordered (w, channel) -> permute w_fc0 once into per-h blocks.
    wf0 = params["w_fc0"].reshape(d0, c1, ho1, wo1)
    wf0 = jnp.transpose(wf0, (2, 3, 1, 0)).reshape(ho1, wo1 * c1, d0)

    return {
        "w0": _fold_conv_width(params["w_q0"], h),        # (2, H*Cin,  Wo0*F0)
        "b0": jnp.tile(params["b_q0"], wo0)[None, :],      # (1, Wo0*F0)
        "w1": _fold_conv_width(params["w_q1"], wo0),       # (2, Wo0*F0, Wo1*C1)
        "b1": jnp.tile(params["b_q1"], wo1)[None, :],      # (1, Wo1*C1)
        "wf0": wf0,                                        # (Ho1, Wo1*C1, D0)
        "bf0": params["b_fc0"][None, :],                   # (1, D0)
        "wf1": params["w_fc1"].T,                          # (D0, D1)
        "bf1": params["b_fc1"][None, :],                   # (1, D1)
        "wf2": params["w_fc2"],                            # (1, D1)
        "bf2": params["b_fc2"][None, :],                   # (1, 1)
    }


def make_params(key, *, c_in, image_size, n_filters0, n_filters1, d0, d1):
    """Deterministic synthetic parameters in PyTorch-style layouts."""
    n_meas = 4                                  # measurements per quanv1 filter
    c1 = n_meas * n_filters1
    dense_in = c1 * (image_size - 2) ** 2
    ks = jax.random.split(key, 10)
    s = 0.2

    def nrm(k, shape):
        return jax.random.normal(k, shape, jnp.float32) * s

    return {
        # quanv0: 2x2 conv, c_in -> n_filters0 (OIHW)
        "w_q0": nrm(ks[0], (n_filters0, c_in, 2, 2)),
        "b_q0": nrm(ks[1], (n_filters0,)),
        # quanv1: 2x2 conv, n_filters0 -> 4*n_filters1; output channel index
        # encodes (filter, measurement) as filter*4 + measurement.
        "w_q1": nrm(ks[2], (c1, n_filters0, 2, 2)),
        "b_q1": nrm(ks[3], (c1,)),
        # fc0 / fc1 / fc2 in PyTorch (out, in) layout
        "w_fc0": nrm(ks[4], (d0, dense_in)),
        "b_fc0": nrm(ks[5], (d0,)),
        "w_fc1": nrm(ks[6], (d1, d0)),
        "b_fc1": nrm(ks[7], (d1,)),
        "w_fc2": nrm(ks[8], (1, d1)),
        "b_fc2": nrm(ks[9], (1,)),
    }


# ----------------------------------------------------------------------------
# Plain-JAX reference of the PyTorch module (for correctness cross-check)
# ----------------------------------------------------------------------------
def reference_forward(x_nchw, params):
    hp = jax.lax.Precision.HIGHEST
    dn = ("NCHW", "OIHW", "NCHW")
    a0 = jax.lax.conv_general_dilated(x_nchw, params["w_q0"], window_strides=(1, 1),
                                      padding="VALID", dimension_numbers=dn,
                                      precision=hp)
    a0 = jax.nn.relu(a0 + params["b_q0"][None, :, None, None])
    a1 = jax.lax.conv_general_dilated(a0, params["w_q1"], window_strides=(1, 1),
                                      padding="VALID", dimension_numbers=dn,
                                      precision=hp)
    a1 = jax.nn.relu(a1 + params["b_q1"][None, :, None, None])
    # permute(1,0,2,3,4)+flatten(1) over (n_f1, B, 4, h, w) == channel-major
    # NCHW flatten with channels ordered (filter, measurement).
    flat = a1.reshape(a1.shape[0], -1)
    f0 = jax.nn.relu(jnp.dot(flat, params["w_fc0"].T, precision=hp) + params["b_fc0"])
    f1 = jax.nn.relu(jnp.dot(f0, params["w_fc1"].T, precision=hp) + params["b_fc1"])
    return jnp.dot(f1, params["w_fc2"].T, precision=hp) + params["b_fc2"]


if __name__ == "__main__":
    key = jax.random.PRNGKey(0)
    k_params, k_x = jax.random.split(key)

    BATCH, C_IN, IMAGE_SIZE = 2, 4, 16
    N_FILTERS0, N_FILTERS1 = 8, 3
    DENSE_UNITS = (32, 16)

    params = make_params(k_params, c_in=C_IN, image_size=IMAGE_SIZE,
                         n_filters0=N_FILTERS0, n_filters1=N_FILTERS1,
                         d0=DENSE_UNITS[0], d1=DENSE_UNITS[1])
    prep = prepare_params(params, image_size=IMAGE_SIZE)

    x = jax.random.normal(k_x, (BATCH, C_IN, IMAGE_SIZE, IMAGE_SIZE), jnp.float32)

    fwd = jax.jit(convolutional_eqnec_forward)
    out = jax.block_until_ready(fwd(x, prep))

    assert out.shape == (BATCH, 1) and out.dtype == jnp.float32, (out.shape, out.dtype)

    # Cross-check the fused Pallas kernel against the plain-JAX reference.
    ref = jax.block_until_ready(reference_forward(x, params))
    assert jnp.allclose(out, ref, atol=2e-3, rtol=2e-3), (out, ref)

    print("KERNEL_OK")
</pallas_src>

<mosaic_0001>
module attributes {stable_mosaic.version = 11 : i64} {
  func.func @_eqnec_fused_kernel(%arg0: memref<2x16x64xf32, #tpu.memory_space<vmem>>, %arg1: memref<2x64x120xf32, #tpu.memory_space<vmem>>, %arg2: memref<1x120xf32, #tpu.memory_space<vmem>>, %arg3: memref<2x120x168xf32, #tpu.memory_space<vmem>>, %arg4: memref<1x168xf32, #tpu.memory_space<vmem>>, %arg5: memref<14x168x32xf32, #tpu.memory_space<vmem>>, %arg6: memref<1x32xf32, #tpu.memory_space<vmem>>, %arg7: memref<32x16xf32, #tpu.memory_space<vmem>>, %arg8: memref<1x16xf32, #tpu.memory_space<vmem>>, %arg9: memref<1x16xf32, #tpu.memory_space<vmem>>, %arg10: memref<1x1xf32, #tpu.memory_space<vmem>>, %arg11: memref<2x1xf32, #tpu.memory_space<vmem>>) attributes {dimension_semantics = [], scalar_prefetch = 0 : i64, scratch_operands = 0 : i64, tpu.core_type = #tpu.core_type<tc>} {
    %c0 = arith.constant 0 : index
    %c0_0 = arith.constant 0 : index
    %c0_1 = arith.constant 0 : index
    %0 = vector.load %arg0[%c0, %c0_0, %c0_1] : memref<2x16x64xf32, #tpu.memory_space<vmem>>, vector<1x16x64xf32>
    %1 = vector.shape_cast %0 : vector<1x16x64xf32> to vector<16x64xf32>
    %2 = vector.extract_strided_slice %1 {offsets = [0, 0], sizes = [15, 64], strides = [1, 1]} : vector<16x64xf32> to vector<15x64xf32>
    %c0_2 = arith.constant 0 : index
    %c0_3 = arith.constant 0 : index
    %c0_4 = arith.constant 0 : index
    %3 = vector.load %arg1[%c0_2, %c0_3, %c0_4] : memref<2x64x120xf32, #tpu.memory_space<vmem>>, vector<1x64x120xf32>
    %4 = vector.shape_cast %3 : vector<1x64x120xf32> to vector<64x120xf32>
    %cst = arith.constant dense<0.000000e+00> : vector<15x120xf32>
    %5 = tpu.matmul %2, %4, %cst {dimension_numbers = #tpu.dot_dimension_numbers<[1], [0], [0], [1], [0, 0, 1, 1], [], []>} : vector<15x64xf32>, vector<64x120xf32>, vector<15x120xf32> -> vector<15x120xf32>
    %6 = vector.extract_strided_slice %1 {offsets = [1, 0], sizes = [15, 64], strides = [1, 1]} : vector<16x64xf32> to vector<15x64xf32>
    %c1 = arith.constant 1 : index
    %c0_5 = arith.constant 0 : index
    %c0_6 = arith.constant 0 : index
    %7 = vector.load %arg1[%c1, %c0_5, %c0_6] : memref<2x64x120xf32, #tpu.memory_space<vmem>>, vector<1x64x120xf32>
    %8 = vector.shape_cast %7 : vector<1x64x120xf32> to vector<64x120xf32>
    %cst_7 = arith.constant dense<0.000000e+00> : vector<15x120xf32>
    %9 = tpu.matmul %6, %8, %cst_7 {dimension_numbers = #tpu.dot_dimension_numbers<[1], [0], [0], [1], [0, 0, 1, 1], [], []>} : vector<15x64xf32>, vector<64x120xf32>, vector<15x120xf32> -> vector<15x120xf32>
    %10 = arith.addf %5, %9 : vector<15x120xf32>
    %c0_8 = arith.constant 0 : index
    %c0_9 = arith.constant 0 : index
    %11 = vector.load %arg2[%c0_8, %c0_9] : memref<1x120xf32, #tpu.memory_space<vmem>>, vector<1x120xf32>
    %12 = vector.broadcast %11 : vector<1x120xf32> to vector<15x120xf32>
    %13 = arith.addf %10, %12 : vector<15x120xf32>
    %cst_10 = arith.constant 0.000000e+00 : f32
    %14 = vector.broadcast %cst_10 : f32 to vector<15x120xf32>
    %15 = arith.maximumf %13, %14 : vector<15x120xf32>
    %16 = vector.extract_strided_slice %15 {offsets = [0, 0], sizes = [14, 120], strides = [1, 1]} : vector<15x120xf32> to vector<14x120xf32>
    %c0_11 = arith.constant 0 : index
    %c0_12 = arith.constant 0 : index
    %c0_13 = arith.constant 0 : index
    %17 = vector.load %arg3[%c0_11, %c0_12, %c0_13] : memref<2x120x168xf32, #tpu.memory_space<vmem>>, vector<1x120x168xf32>
    %18 = vector.shape_cast %17 : vector<1x120x168xf32> to vector<120x168xf32>
    %cst_14 = arith.constant dense<0.000000e+00> : vector<14x168xf32>
    %19 = tpu.matmul %16, %18, %cst_14 {dimension_numbers = #tpu.dot_dimension_numbers<[1], [0], [0], [1], [0, 0, 1, 1], [], []>} : vector<14x120xf32>, vector<120x168xf32>, vector<14x168xf32> -> vector<14x168xf32>
    %20 = vector.extract_strided_slice %15 {offsets = [1, 0], sizes = [14, 120], strides = [1, 1]} : vector<15x120xf32> to vector<14x120xf32>
    %c1_15 = arith.constant 1 : index
    %c0_16 = arith.constant 0 : index
    %c0_17 = arith.constant 0 : index
    %21 = vector.load %arg3[%c1_15, %c0_16, %c0_17] : memref<2x120x168xf32, #tpu.memory_space<vmem>>, vector<1x120x168xf32>
    %22 = vector.shape_cast %21 : vector<1x120x168xf32> to vector<120x168xf32>
    %cst_18 = arith.constant dense<0.000000e+00> : vector<14x168xf32>
    %23 = tpu.matmul %20, %22, %cst_18 {dimension_numbers = #tpu.dot_dimension_numbers<[1], [0], [0], [1], [0, 0, 1, 1], [], []>} : vector<14x120xf32>, vector<120x168xf32>, vector<14x168xf32> -> vector<14x168xf32>
    %24 = arith.addf %19, %23 : vector<14x168xf32>
    %c0_19 = arith.constant 0 : index
    %c0_20 = arith.constant 0 : index
    %25 = vector.load %arg4[%c0_19, %c0_20] : memref<1x168xf32, #tpu.memory_space<vmem>>, vector<1x168xf32>
    %26 = vector.broadcast %25 : vector<1x168xf32> to vector<14x168xf32>
    %27 = arith.addf %24, %26 : vector<14x168xf32>
    %cst_21 = arith.constant 0.000000e+00 : f32
    %28 = vector.broadcast %cst_21 : f32 to vector<14x168xf32>
    %29 = arith.maximumf %27, %28 : vector<14x168xf32>
    %c0_22 = arith.constant 0 : index
    %c0_23 = arith.constant 0 : index
    %30 = vector.load %arg6[%c0_22, %c0_23] : memref<1x32xf32, #tpu.memory_space<vmem>>, vector<1x32xf32>
    %31 = vector.extract_strided_slice %29 {offsets = [0, 0], sizes = [1, 168], strides = [1, 1]} : vector<14x168xf32> to vector<1x168xf32>
    %c0_24 = arith.constant 0 : index
    %c0_25 = arith.constant 0 : index
    %c0_26 = arith.constant 0 : index
    %32 = vector.load %arg5[%c0_24, %c0_25, %c0_26] : memref<14x168x32xf32, #tpu.memory_space<vmem>>, vector<1x168x32xf32>
    %33 = vector.shape_cast %32 : vector<1x168x32xf32> to vector<168x32xf32>
    %cst_27 = arith.constant dense<0.000000e+00> : vector<1x32xf32>
    %34 = tpu.matmul %31, %33, %cst_27 {dimension_numbers = #tpu.dot_dimension_numbers<[1], [0], [0], [1], [0, 0, 1, 1], [], []>} : vector<1x168xf32>, vector<168x32xf32>, vector<1x32xf32> -> vector<1x32xf32>
    %35 = arith.addf %30, %34 : vector<1x32xf32>
    %36 = vector.extract_strided_slice %29 {offsets = [1, 0], sizes = [1, 168], strides = [1, 1]} : vector<14x168xf32> to vector<1x168xf32>
    %c1_28 = arith.constant 1 : index
    %c0_29 = arith.constant 0 : index
    %c0_30 = arith.constant 0 : index
    %37 = vector.load %arg5[%c1_28, %c0_29, %c0_30] : memref<14x168x32xf32, #tpu.memory_space<vmem>>, vector<1x168x32xf32>
    %38 = vector.shape_cast %37 : vector<1x168x32xf32> to vector<168x32xf32>
    %cst_31 = arith.constant dense<0.000000e+00> : vector<1x32xf32>
    %39 = tpu.matmul %36, %38, %cst_31 {dimension_numbers = #tpu.dot_dimension_numbers<[1], [0], [0], [1], [0, 0, 1, 1], [], []>} : vector<1x168xf32>, vector<168x32xf32>, vector<1x32xf32> -> vector<1x32xf32>
    %40 = arith.addf %35, %39 : vector<1x32xf32>
    %41 = vector.extract_strided_slice %29 {offsets = [2, 0], sizes = [1, 168], strides = [1, 1]} : vector<14x168xf32> to vector<1x168xf32>
    %c2 = arith.constant 2 : index
    %c0_32 = arith.constant 0 : index
    %c0_33 = arith.constant 0 : index
    %42 = vector.load %arg5[%c2, %c0_32, %c0_33] : memref<14x168x32xf32, #tpu.memory_space<vmem>>, vector<1x168x32xf32>
    %43 = vector.shape_cast %42 : vector<1x168x32xf32> to vector<168x32xf32>
    %cst_34 = arith.constant dense<0.000000e+00> : vector<1x32xf32>
    %44 = tpu.matmul %41, %43, %cst_34 {dimension_numbers = #tpu.dot_dimension_numbers<[1], [0], [0], [1], [0, 0, 1, 1], [], []>} : vector<1x168xf32>, vector<168x32xf32>, vector<1x32xf32> -> vector<1x32xf32>
    %45 = arith.addf %40, %44 : vector<1x32xf32>
    %46 = vector.extract_strided_slice %29 {offsets = [3, 0], sizes = [1, 168], strides = [1, 1]} : vector<14x168xf32> to vector<1x168xf32>
    %c3 = arith.constant 3 : index
    %c0_35 = arith.constant 0 : index
    %c0_36 = arith.constant 0 : index
    %47 = vector.load %arg5[%c3, %c0_35, %c0_36] : memref<14x168x32xf32, #tpu.memory_space<vmem>>, vector<1x168x32xf32>
    %48 = vector.shape_cast %47 : vector<1x168x32xf32> to vector<168x32xf32>
    %cst_37 = arith.constant dense<0.000000e+00> : vector<1x32xf32>
    %49 = tpu.matmul %46, %48, %cst_37 {dimension_numbers = #tpu.dot_dimension_numbers<[1], [0], [0], [1], [0, 0, 1, 1], [], []>} : vector<1x168xf32>, vector<168x32xf32>, vector<1x32xf32> -> vector<1x32xf32>
    %50 = arith.addf %45, %49 : vector<1x32xf32>
    %51 = vector.extract_strided_slice %29 {offsets = [4, 0], sizes = [1, 168], strides = [1, 1]} : vector<14x168xf32> to vector<1x168xf32>
    %c4 = arith.constant 4 : index
    %c0_38 = arith.constant 0 : index
    %c0_39 = arith.constant 0 : index
    %52 = vector.load %arg5[%c4, %c0_38, %c0_39] : memref<14x168x32xf32, #tpu.memory_space<vmem>>, vector<1x168x32xf32>
    %53 = vector.shape_cast %52 : vector<1x168x32xf32> to vector<168x32xf32>
    %cst_40 = arith.constant dense<0.000000e+00> : vector<1x32xf32>
    %54 = tpu.matmul %51, %53, %cst_40 {dimension_numbers = #tpu.dot_dimension_numbers<[1], [0], [0], [1], [0, 0, 1, 1], [], []>} : vector<1x168xf32>, vector<168x32xf32>, vector<1x32xf32> -> vector<1x32xf32>
    %55 = arith.addf %50, %54 : vector<1x32xf32>
    %56 = vector.extract_strided_slice %29 {offsets = [5, 0], sizes = [1, 168], strides = [1, 1]} : vector<14x168xf32> to vector<1x168xf32>
    %c5 = arith.constant 5 : index
    %c0_41 = arith.constant 0 : index
    %c0_42 = arith.constant 0 : index
    %57 = vector.load %arg5[%c5, %c0_41, %c0_42] : memref<14x168x32xf32, #tpu.memory_space<vmem>>, vector<1x168x32xf32>
    %58 = vector.shape_cast %57 : vector<1x168x32xf32> to vector<168x32xf32>
    %cst_43 = arith.constant dense<0.000000e+00> : vector<1x32xf32>
    %59 = tpu.matmul %56, %58, %cst_43 {dimension_numbers = #tpu.dot_dimension_numbers<[1], [0], [0], [1], [0, 0, 1, 1], [], []>} : vector<1x168xf32>, vector<168x32xf32>, vector<1x32xf32> -> vector<1x32xf32>
    %60 = arith.addf %55, %59 : vector<1x32xf32>
    %61 = vector.extract_strided_slice %29 {offsets = [6, 0], sizes = [1, 168], strides = [1, 1]} : vector<14x168xf32> to vector<1x168xf32>
    %c6 = arith.constant 6 : index
    %c0_44 = arith.constant 0 : index
    %c0_45 = arith.constant 0 : index
    %62 = vector.load %arg5[%c6, %c0_44, %c0_45] : memref<14x168x32xf32, #tpu.memory_space<vmem>>, vector<1x168x32xf32>
    %63 = vector.shape_cast %62 : vector<1x168x32xf32> to vector<168x32xf32>
    %cst_46 = arith.constant dense<0.000000e+00> : vector<1x32xf32>
    %64 = tpu.matmul %61, %63, %cst_46 {dimension_numbers = #tpu.dot_dimension_numbers<[1], [0], [0], [1], [0, 0, 1, 1], [], []>} : vector<1x168xf32>, vector<168x32xf32>, vector<1x32xf32> -> vector<1x32xf32>
    %65 = arith.addf %60, %64 : vector<1x32xf32>
    %66 = vector.extract_strided_slice %29 {offsets = [7, 0], sizes = [1, 168], strides = [1, 1]} : vector<14x168xf32> to vector<1x168xf32>
    %c7 = arith.constant 7 : index
    %c0_47 = arith.constant 0 : index
    %c0_48 = arith.constant 0 : index
    %67 = vector.load %arg5[%c7, %c0_47, %c0_48] : memref<14x168x32xf32, #tpu.memory_space<vmem>>, vector<1x168x32xf32>
    %68 = vector.shape_cast %67 : vector<1x168x32xf32> to vector<168x32xf32>
    %cst_49 = arith.constant dense<0.000000e+00> : vector<1x32xf32>
    %69 = tpu.matmul %66, %68, %cst_49 {dimension_numbers = #tpu.dot_dimension_numbers<[1], [0], [0], [1], [0, 0, 1, 1], [], []>} : vector<1x168xf32>, vector<168x32xf32>, vector<1x32xf32> -> vector<1x32xf32>
    %70 = arith.addf %65, %69 : vector<1x32xf32>
    %71 = vector.extract_strided_slice %29 {offsets = [8, 0], sizes = [1, 168], strides = [1, 1]} : vector<14x168xf32> to vector<1x168xf32>
    %c8 = arith.constant 8 : index
    %c0_50 = arith.constant 0 : index
    %c0_51 = arith.constant 0 : index
    %72 = vector.load %arg5[%c8, %c0_50, %c0_51] : memref<14x168x32xf32, #tpu.memory_space<vmem>>, vector<1x168x32xf32>
    %73 = vector.shape_cast %72 : vector<1x168x32xf32> to vector<168x32xf32>
    %cst_52 = arith.constant dense<0.000000e+00> : vector<1x32xf32>
    %74 = tpu.matmul %71, %73, %cst_52 {dimension_numbers = #tpu.dot_dimension_numbers<[1], [0], [0], [1], [0, 0, 1, 1], [], []>} : vector<1x168xf32>, vector<168x32xf32>, vector<1x32xf32> -> vector<1x32xf32>
    %75 = arith.addf %70, %74 : vector<1x32xf32>
    %76 = vector.extract_strided_slice %29 {offsets = [9, 0], sizes = [1, 168], strides = [1, 1]} : vector<14x168xf32> to vector<1x168xf32>
    %c9 = arith.constant 9 : index
    %c0_53 = arith.constant 0 : index
    %c0_54 = arith.constant 0 : index
    %77 = vector.load %arg5[%c9, %c0_53, %c0_54] : memref<14x168x32xf32, #tpu.memory_space<vmem>>, vector<1x168x32xf32>
    %78 = vector.shape_cast %77 : vector<1x168x32xf32> to vector<168x32xf32>
    %cst_55 = arith.constant dense<0.000000e+00> : vector<1x32xf32>
    %79 = tpu.matmul %76, %78, %cst_55 {dimension_numbers = #tpu.dot_dimension_numbers<[1], [0], [0], [1], [0, 0, 1, 1], [], []>} : vector<1x168xf32>, vector<168x32xf32>, vector<1x32xf32> -> vector<1x32xf32>
    %80 = arith.addf %75, %79 : vector<1x32xf32>
    %81 = vector.extract_strided_slice %29 {offsets = [10, 0], sizes = [1, 168], strides = [1, 1]} : vector<14x168xf32> to vector<1x168xf32>
    %c10 = arith.constant 10 : index
    %c0_56 = arith.constant 0 : index
    %c0_57 = arith.constant 0 : index
    %82 = vector.load %arg5[%c10, %c0_56, %c0_57] : memref<14x168x32xf32, #tpu.memory_space<vmem>>, vector<1x168x32xf32>
    %83 = vector.shape_cast %82 : vector<1x168x32xf32> to vector<168x32xf32>
    %cst_58 = arith.constant dense<0.000000e+00> : vector<1x32xf32>
    %84 = tpu.matmul %81, %83, %cst_58 {dimension_numbers = #tpu.dot_dimension_numbers<[1], [0], [0], [1], [0, 0, 1, 1], [], []>} : vector<1x168xf32>, vector<168x32xf32>, vector<1x32xf32> -> vector<1x32xf32>
    %85 = arith.addf %80, %84 : vector<1x32xf32>
    %86 = vector.extract_strided_slice %29 {offsets = [11, 0], sizes = [1, 168], strides = [1, 1]} : vector<14x168xf32> to vector<1x168xf32>
    %c11 = arith.constant 11 : index
    %c0_59 = arith.constant 0 : index
    %c0_60 = arith.constant 0 : index
    %87 = vector.load %arg5[%c11, %c0_59, %c0_60] : memref<14x168x32xf32, #tpu.memory_space<vmem>>, vector<1x168x32xf32>
    %88 = vector.shape_cast %87 : vector<1x168x32xf32> to vector<168x32xf32>
    %cst_61 = arith.constant dense<0.000000e+00> : vector<1x32xf32>
    %89 = tpu.matmul %86, %88, %cst_61 {dimension_numbers = #tpu.dot_dimension_numbers<[1], [0], [0], [1], [0, 0, 1, 1], [], []>} : vector<1x168xf32>, vector<168x32xf32>, vector<1x32xf32> -> vector<1x32xf32>
    %90 = arith.addf %85, %89 : vector<1x32xf32>
    %91 = vector.extract_strided_slice %29 {offsets = [12, 0], sizes = [1, 168], strides = [1, 1]} : vector<14x168xf32> to vector<1x168xf32>
    %c12 = arith.constant 12 : index
    %c0_62 = arith.constant 0 : index
    %c0_63 = arith.constant 0 : index
    %92 = vector.load %arg5[%c12, %c0_62, %c0_63] : memref<14x168x32xf32, #tpu.memory_space<vmem>>, vector<1x168x32xf32>
    %93 = vector.shape_cast %92 : vector<1x168x32xf32> to vector<168x32xf32>
    %cst_64 = arith.constant dense<0.000000e+00> : vector<1x32xf32>
    %94 = tpu.matmul %91, %93, %cst_64 {dimension_numbers = #tpu.dot_dimension_numbers<[1], [0], [0], [1], [0, 0, 1, 1], [], []>} : vector<1x168xf32>, vector<168x32xf32>, vector<1x32xf32> -> vector<1x32xf32>
    %95 = arith.addf %90, %94 : vector<1x32xf32>
    %96 = vector.extract_strided_slice %29 {offsets = [13, 0], sizes = [1, 168], strides = [1, 1]} : vector<14x168xf32> to vector<1x168xf32>
    %c13 = arith.constant 13 : index
    %c0_65 = arith.constant 0 : index
    %c0_66 = arith.constant 0 : index
    %97 = vector.load %arg5[%c13, %c0_65, %c0_66] : memref<14x168x32xf32, #tpu.memory_space<vmem>>, vector<1x168x32xf32>
    %98 = vector.shape_cast %97 : vector<1x168x32xf32> to vector<168x32xf32>
    %cst_67 = arith.constant dense<0.000000e+00> : vector<1x32xf32>
    %99 = tpu.matmul %96, %98, %cst_67 {dimension_numbers = #tpu.dot_dimension_numbers<[1], [0], [0], [1], [0, 0, 1, 1], [], []>} : vector<1x168xf32>, vector<168x32xf32>, vector<1x32xf32> -> vector<1x32xf32>
    %100 = arith.addf %95, %99 : vector<1x32xf32>
    %cst_68 = arith.constant 0.000000e+00 : f32
    %101 = vector.broadcast %cst_68 : f32 to vector<1x32xf32>
    %102 = arith.maximumf %100, %101 : vector<1x32xf32>
    %c0_69 = arith.constant 0 : index
    %c0_70 = arith.constant 0 : index
    %103 = vector.load %arg7[%c0_69, %c0_70] : memref<32x16xf32, #tpu.memory_space<vmem>>, vector<32x16xf32>
    %cst_71 = arith.constant dense<0.000000e+00> : vector<1x16xf32>
    %104 = tpu.matmul %102, %103, %cst_71 {dimension_numbers = #tpu.dot_dimension_numbers<[1], [0], [0], [1], [0, 0, 1, 1], [], []>} : vector<1x32xf32>, vector<32x16xf32>, vector<1x16xf32> -> vector<1x16xf32>
    %c0_72 = arith.constant 0 : index
    %c0_73 = arith.constant 0 : index
    %105 = vector.load %arg8[%c0_72, %c0_73] : memref<1x16xf32, #tpu.memory_space<vmem>>, vector<1x16xf32>
    %106 = arith.addf %104, %105 : vector<1x16xf32>
    %cst_74 = arith.constant 0.000000e+00 : f32
    %107 = vector.broadcast %cst_74 : f32 to vector<1x16xf32>
    %108 = arith.maximumf %106, %107 : vector<1x16xf32>
    %c0_75 = arith.constant 0 : index
    %c0_76 = arith.constant 0 : index
    %109 = vector.load %arg9[%c0_75, %c0_76] : memref<1x16xf32, #tpu.memory_space<vmem>>, vector<1x16xf32>
    %110 = arith.mulf %108, %109 : vector<1x16xf32>
    %cst_77 = arith.constant dense<0.000000e+00> : vector<1xf32>
    %111 = vector.multi_reduction <add>, %110, %cst_77 [1] : vector<1x16xf32> to vector<1xf32>
    %112 = vector.shape_cast %111 : vector<1xf32> to vector<1x1xf32>
    %c0_78 = arith.constant 0 : index
    %c0_79 = arith.constant 0 : index
    %113 = vector.load %arg10[%c0_78, %c0_79] : memref<1x1xf32, #tpu.memory_space<vmem>>, vector<1x1xf32>
    %114 = arith.addf %112, %113 : vector<1x1xf32>
    %c0_80 = arith.constant 0 : index
    %c0_81 = arith.constant 0 : index
    %115 = vector.load %arg11[%c0_80, %c0_81] : memref<2x1xf32, #tpu.memory_space<vmem>>, vector<1x1xf32>
    tpu.vector_store %arg11[%c0_80, %c0_81], %114 {strides = array<i32>} : memref<2x1xf32, #tpu.memory_space<vmem>>, vector<1x1xf32>,
    %c1_82 = arith.constant 1 : index
    %c0_83 = arith.constant 0 : index
    %c0_84 = arith.constant 0 : index
    %116 = vector.load %arg0[%c1_82, %c0_83, %c0_84] : memref<2x16x64xf32, #tpu.memory_space<vmem>>, vector<1x16x64xf32>
    %117 = vector.shape_cast %116 : vector<1x16x64xf32> to vector<16x64xf32>
    %118 = vector.extract_strided_slice %117 {offsets = [0, 0], sizes = [15, 64], strides = [1, 1]} : vector<16x64xf32> to vector<15x64xf32>
    %c0_85 = arith.constant 0 : index
    %c0_86 = arith.constant 0 : index
    %c0_87 = arith.constant 0 : index
    %119 = vector.load %arg1[%c0_85, %c0_86, %c0_87] : memref<2x64x120xf32, #tpu.memory_space<vmem>>, vector<1x64x120xf32>
    %120 = vector.shape_cast %119 : vector<1x64x120xf32> to vector<64x120xf32>
    %cst_88 = arith.constant dense<0.000000e+00> : vector<15x120xf32>
    %121 = tpu.matmul %118, %120, %cst_88 {dimension_numbers = #tpu.dot_dimension_numbers<[1], [0], [0], [1], [0, 0, 1, 1], [], []>} : vector<15x64xf32>, vector<64x120xf32>, vector<15x120xf32> -> vector<15x120xf32>
    %122 = vector.extract_strided_slice %117 {offsets = [1, 0], sizes = [15, 64], strides = [1, 1]} : vector<16x64xf32> to vector<15x64xf32>
    %c1_89 = arith.constant 1 : index
    %c0_90 = arith.constant 0 : index
    %c0_91 = arith.constant 0 : index
    %123 = vector.load %arg1[%c1_89, %c0_90, %c0_91] : memref<2x64x120xf32, #tpu.memory_space<vmem>>, vector<1x64x120xf32>
    %124 = vector.shape_cast %123 : vector<1x64x120xf32> to vector<64x120xf32>
    %cst_92 = arith.constant dense<0.000000e+00> : vector<15x120xf32>
    %125 = tpu.matmul %122, %124, %cst_92 {dimension_numbers = #tpu.dot_dimension_numbers<[1], [0], [0], [1], [0, 0, 1, 1], [], []>} : vector<15x64xf32>, vector<64x120xf32>, vector<15x120xf32> -> vector<15x120xf32>
    %126 = arith.addf %121, %125 : vector<15x120xf32>
    %c0_93 = arith.constant 0 : index
    %c0_94 = arith.constant 0 : index
    %127 = vector.load %arg2[%c0_93, %c0_94] : memref<1x120xf32, #tpu.memory_space<vmem>>, vector<1x120xf32>
    %128 = vector.broadcast %127 : vector<1x120xf32> to vector<15x120xf32>
    %129 = arith.addf %126, %128 : vector<15x120xf32>
    %cst_95 = arith.constant 0.000000e+00 : f32
    %130 = vector.broadcast %cst_95 : f32 to vector<15x120xf32>
    %131 = arith.maximumf %129, %130 : vector<15x120xf32>
    %132 = vector.extract_strided_slice %131 {offsets = [0, 0], sizes = [14, 120], strides = [1, 1]} : vector<15x120xf32> to vector<14x120xf32>
    %c0_96 = arith.constant 0 : index
    %c0_97 = arith.constant 0 : index
    %c0_98 = arith.constant 0 : index
    %133 = vector.load %arg3[%c0_96, %c0_97, %c0_98] : memref<2x120x168xf32, #tpu.memory_space<vmem>>, vector<1x120x168xf32>
    %134 = vector.shape_cast %133 : vector<1x120x168xf32> to vector<120x168xf32>
    %cst_99 = arith.constant dense<0.000000e+00> : vector<14x168xf32>
    %135 = tpu.matmul %132, %134, %cst_99 {dimension_numbers = #tpu.dot_dimension_numbers<[1], [0], [0], [1], [0, 0, 1, 1], [], []>} : vector<14x120xf32>, vector<120x168xf32>, vector<14x168xf32> -> vector<14x168xf32>
    %136 = vector.extract_strided_slice %131 {offsets = [1, 0], sizes = [14, 120], strides = [1, 1]} : vector<15x120xf32> to vector<14x120xf32>
    %c1_100 = arith.constant 1 : index
    %c0_101 = arith.constant 0 : index
    %c0_102 = arith.constant 0 : index
    %137 = vector.load %arg3[%c1_100, %c0_101, %c0_102] : memref<2x120x168xf32, #tpu.memory_space<vmem>>, vector<1x120x168xf32>
    %138 = vector.shape_cast %137 : vector<1x120x168xf32> to vector<120x168xf32>
    %cst_103 = arith.constant dense<0.000000e+00> : vector<14x168xf32>
    %139 = tpu.matmul %136, %138, %cst_103 {dimension_numbers = #tpu.dot_dimension_numbers<[1], [0], [0], [1], [0, 0, 1, 1], [], []>} : vector<14x120xf32>, vector<120x168xf32>, vector<14x168xf32> -> vector<14x168xf32>
    %140 = arith.addf %135, %139 : vector<14x168xf32>
    %c0_104 = arith.constant 0 : index
    %c0_105 = arith.constant 0 : index
    %141 = vector.load %arg4[%c0_104, %c0_105] : memref<1x168xf32, #tpu.memory_space<vmem>>, vector<1x168xf32>
    %142 = vector.broadcast %141 : vector<1x168xf32> to vector<14x168xf32>
    %143 = arith.addf %140, %142 : vector<14x168xf32>
    %cst_106 = arith.constant 0.000000e+00 : f32
    %144 = vector.broadcast %cst_106 : f32 to vector<14x168xf32>
    %145 = arith.maximumf %143, %144 : vector<14x168xf32>
    %c0_107 = arith.constant 0 : index
    %c0_108 = arith.constant 0 : index
    %146 = vector.load %arg6[%c0_107, %c0_108] : memref<1x32xf32, #tpu.memory_space<vmem>>, vector<1x32xf32>
    %147 = vector.extract_strided_slice %145 {offsets = [0, 0], sizes = [1, 168], strides = [1, 1]} : vector<14x168xf32> to vector<1x168xf32>
    %c0_109 = arith.constant 0 : index
    %c0_110 = arith.constant 0 : index
    %c0_111 = arith.constant 0 : index
    %148 = vector.load %arg5[%c0_109, %c0_110, %c0_111] : memref<14x168x32xf32, #tpu.memory_space<vmem>>, vector<1x168x32xf32>
    %149 = vector.shape_cast %148 : vector<1x168x32xf32> to vector<168x32xf32>
    %cst_112 = arith.constant dense<0.000000e+00> : vector<1x32xf32>
    %150 = tpu.matmul %147, %149, %cst_112 {dimension_numbers = #tpu.dot_dimension_numbers<[1], [0], [0], [1], [0, 0, 1, 1], [], []>} : vector<1x168xf32>, vector<168x32xf32>, vector<1x32xf32> -> vector<1x32xf32>
    %151 = arith.addf %146, %150 : vector<1x32xf32>
    %152 = vector.extract_strided_slice %145 {offsets = [1, 0], sizes = [1, 168], strides = [1, 1]} : vector<14x168xf32> to vector<1x168xf32>
    %c1_113 = arith.constant 1 : index
    %c0_114 = arith.constant 0 : index
    %c0_115 = arith.constant 0 : index
    %153 = vector.load %arg5[%c1_113, %c0_114, %c0_115] : memref<14x168x32xf32, #tpu.memory_space<vmem>>, vector<1x168x32xf32>
    %154 = vector.shape_cast %153 : vector<1x168x32xf32> to vector<168x32xf32>
    %cst_116 = arith.constant dense<0.000000e+00> : vector<1x32xf32>
    %155 = tpu.matmul %152, %154, %cst_116 {dimension_numbers = #tpu.dot_dimension_numbers<[1], [0], [0], [1], [0, 0, 1, 1], [], []>} : vector<1x168xf32>, vector<168x32xf32>, vector<1x32xf32> -> vector<1x32xf32>
    %156 = arith.addf %151, %155 : vector<1x32xf32>
    %157 = vector.extract_strided_slice %145 {offsets = [2, 0], sizes = [1, 168], strides = [1, 1]} : vector<14x168xf32> to vector<1x168xf32>
    %c2_117 = arith.constant 2 : index
    %c0_118 = arith.constant 0 : index
    %c0_119 = arith.constant 0 : index
    %158 = vector.load %arg5[%c2_117, %c0_118, %c0_119] : memref<14x168x32xf32, #tpu.memory_space<vmem>>, vector<1x168x32xf32>
    %159 = vector.shape_cast %158 : vector<1x168x32xf32> to vector<168x32xf32>
    %cst_120 = arith.constant dense<0.000000e+00> : vector<1x32xf32>
    %160 = tpu.matmul %157, %159, %cst_120 {dimension_numbers = #tpu.dot_dimension_numbers<[1], [0], [0], [1], [0, 0, 1, 1], [], []>} : vector<1x168xf32>, vector<168x32xf32>, vector<1x32xf32> -> vector<1x32xf32>
    %161 = arith.addf %156, %160 : vector<1x32xf32>
    %162 = vector.extract_strided_slice %145 {offsets = [3, 0], sizes = [1, 168], strides = [1, 1]} : vector<14x168xf32> to vector<1x168xf32>
    %c3_121 = arith.constant 3 : index
    %c0_122 = arith.constant 0 : index
    %c0_123 = arith.constant 0 : index
    %163 = vector.load %arg5[%c3_121, %c0_122, %c0_123] : memref<14x168x32xf32, #tpu.memory_space<vmem>>, vector<1x168x32xf32>
    %164 = vector.shape_cast %163 : vector<1x168x32xf32> to vector<168x32xf32>
    %cst_124 = arith.constant dense<0.000000e+00> : vector<1x32xf32>
    %165 = tpu.matmul %162, %164, %cst_124 {dimension_numbers = #tpu.dot_dimension_numbers<[1], [0], [0], [1], [0, 0, 1, 1], [], []>} : vector<1x168xf32>, vector<168x32xf32>, vector<1x32xf32> -> vector<1x32xf32>
    %166 = arith.addf %161, %165 : vector<1x32xf32>
    %167 = vector.extract_strided_slice %145 {offsets = [4, 0], sizes = [1, 168], strides = [1, 1]} : vector<14x168xf32> to vector<1x168xf32>
    %c4_125 = arith.constant 4 : index
    %c0_126 = arith.constant 0 : index
    %c0_127 = arith.constant 0 : index
    %168 = vector.load %arg5[%c4_125, %c0_126, %c0_127] : memref<14x168x32xf32, #tpu.memory_space<vmem>>, vector<1x168x32xf32>
    %169 = vector.shape_cast %168 : vector<1x168x32xf32> to vector<168x32xf32>
    %cst_128 = arith.constant dense<0.000000e+00> : vector<1x32xf32>
    %170 = tpu.matmul %167, %169, %cst_128 {dimension_numbers = #tpu.dot_dimension_numbers<[1], [0], [0], [1], [0, 0, 1, 1], [], []>} : vector<1x168xf32>, vector<168x32xf32>, vector<1x32xf32> -> vector<1x32xf32>
    %171 = arith.addf %166, %170 : vector<1x32xf32>
    %172 = vector.extract_strided_slice %145 {offsets = [5, 0], sizes = [1, 168], strides = [1, 1]} : vector<14x168xf32> to vector<1x168xf32>
    %c5_129 = arith.constant 5 : index
    %c0_130 = arith.constant 0 : index
    %c0_131 = arith.constant 0 : index
    %173 = vector.load %arg5[%c5_129, %c0_130, %c0_131] : memref<14x168x32xf32, #tpu.memory_space<vmem>>, vector<1x168x32xf32>
    %174 = vector.shape_cast %173 : vector<1x168x32xf32> to vector<168x32xf32>
    %cst_132 = arith.constant dense<0.000000e+00> : vector<1x32xf32>
    %175 = tpu.matmul %172, %174, %cst_132 {dimension_numbers = #tpu.dot_dimension_numbers<[1], [0], [0], [1], [0, 0, 1, 1], [], []>} : vector<1x168xf32>, vector<168x32xf32>, vector<1x32xf32> -> vector<1x32xf32>
    %176 = arith.addf %171, %175 : vector<1x32xf32>
    %177 = vector.extract_strided_slice %145 {offsets = [6, 0], sizes = [1, 168], strides = [1, 1]} : vector<14x168xf32> to vector<1x168xf32>
    %c6_133 = arith.constant 6 : index
    %c0_134 = arith.constant 0 : index
    %c0_135 = arith.constant 0 : index
    %178 = vector.load %arg5[%c6_133, %c0_134, %c0_135] : memref<14x168x32xf32, #tpu.memory_space<vmem>>, vector<1x168x32xf32>
    %179 = vector.shape_cast %178 : vector<1x168x32xf32> to vector<168x32xf32>
    %cst_136 = arith.constant dense<0.000000e+00> : vector<1x32xf32>
    %180 = tpu.matmul %177, %179, %cst_136 {dimension_numbers = #tpu.dot_dimension_numbers<[1], [0], [0], [1], [0, 0, 1, 1], [], []>} : vector<1x168xf32>, vector<168x32xf32>, vector<1x32xf32> -> vector<1x32xf32>
    %181 = arith.addf %176, %180 : vector<1x32xf32>
    %182 = vector.extract_strided_slice %145 {offsets = [7, 0], sizes = [1, 168], strides = [1, 1]} : vector<14x168xf32> to vector<1x168xf32>
    %c7_137 = arith.constant 7 : index
    %c0_138 = arith.constant 0 : index
    %c0_139 = arith.constant 0 : index
    %183 = vector.load %arg5[%c7_137, %c0_138, %c0_139] : memref<14x168x32xf32, #tpu.memory_space<vmem>>, vector<1x168x32xf32>
    %184 = vector.shape_cast %183 : vector<1x168x32xf32> to vector<168x32xf32>
    %cst_140 = arith.constant dense<0.000000e+00> : vector<1x32xf32>
    %185 = tpu.matmul %182, %184, %cst_140 {dimension_numbers = #tpu.dot_dimension_numbers<[1], [0], [0], [1], [0, 0, 1, 1], [], []>} : vector<1x168xf32>, vector<168x32xf32>, vector<1x32xf32> -> vector<1x32xf32>
    %186 = arith.addf %181, %185 : vector<1x32xf32>
    %187 = vector.extract_strided_slice %145 {offsets = [8, 0], sizes = [1, 168], strides = [1, 1]} : vector<14x168xf32> to vector<1x168xf32>
    %c8_141 = arith.constant 8 : index
    %c0_142 = arith.constant 0 : index
    %c0_143 = arith.constant 0 : index
    %188 = vector.load %arg5[%c8_141, %c0_142, %c0_143] : memref<14x168x32xf32, #tpu.memory_space<vmem>>, vector<1x168x32xf32>
    %189 = vector.shape_cast %188 : vector<1x168x32xf32> to vector<168x32xf32>
    %cst_144 = arith.constant dense<0.000000e+00> : vector<1x32xf32>
    %190 = tpu.matmul %187, %189, %cst_144 {dimension_numbers = #tpu.dot_dimension_numbers<[1], [0], [0], [1], [0, 0, 1, 1], [], []>} : vector<1x168xf32>, vector<168x32xf32>, vector<1x32xf32> -> vector<1x32xf32>
    %191 = arith.addf %186, %190 : vector<1x32xf32>
    %192 = vector.extract_strided_slice %145 {offsets = [9, 0], sizes = [1, 168], strides = [1, 1]} : vector<14x168xf32> to vector<1x168xf32>
    %c9_145 = arith.constant 9 : index
    %c0_146 = arith.constant 0 : index
    %c0_147 = arith.constant 0 : index
    %193 = vector.load %arg5[%c9_145, %c0_146, %c0_147] : memref<14x168x32xf32, #tpu.memory_space<vmem>>, vector<1x168x32xf32>
    %194 = vector.shape_cast %193 : vector<1x168x32xf32> to vector<168x32xf32>
    %cst_148 = arith.constant dense<0.000000e+00> : vector<1x32xf32>
    %195 = tpu.matmul %192, %194, %cst_148 {dimension_numbers = #tpu.dot_dimension_numbers<[1], [0], [0], [1], [0, 0, 1, 1], [], []>} : vector<1x168xf32>, vector<168x32xf32>, vector<1x32xf32> -> vector<1x32xf32>
    %196 = arith.addf %191, %195 : vector<1x32xf32>
    %197 = vector.extract_strided_slice %145 {offsets = [10, 0], sizes = [1, 168], strides = [1, 1]} : vector<14x168xf32> to vector<1x168xf32>
    %c10_149 = arith.constant 10 : index
    %c0_150 = arith.constant 0 : index
    %c0_151 = arith.constant 0 : index
    %198 = vector.load %arg5[%c10_149, %c0_150, %c0_151] : memref<14x168x32xf32, #tpu.memory_space<vmem>>, vector<1x168x32xf32>
    %199 = vector.shape_cast %198 : vector<1x168x32xf32> to vector<168x32xf32>
    %cst_152 = arith.constant dense<0.000000e+00> : vector<1x32xf32>
    %200 = tpu.matmul %197, %199, %cst_152 {dimension_numbers = #tpu.dot_dimension_numbers<[1], [0], [0], [1], [0, 0, 1, 1], [], []>} : vector<1x168xf32>, vector<168x32xf32>, vector<1x32xf32> -> vector<1x32xf32>
    %201 = arith.addf %196, %200 : vector<1x32xf32>
    %202 = vector.extract_strided_slice %145 {offsets = [11, 0], sizes = [1, 168], strides = [1, 1]} : vector<14x168xf32> to vector<1x168xf32>
    %c11_153 = arith.constant 11 : index
    %c0_154 = arith.constant 0 : index
    %c0_155 = arith.constant 0 : index
    %203 = vector.load %arg5[%c11_153, %c0_154, %c0_155] : memref<14x168x32xf32, #tpu.memory_space<vmem>>, vector<1x168x32xf32>
    %204 = vector.shape_cast %203 : vector<1x168x32xf32> to vector<168x32xf32>
    %cst_156 = arith.constant dense<0.000000e+00> : vector<1x32xf32>
    %205 = tpu.matmul %202, %204, %cst_156 {dimension_numbers = #tpu.dot_dimension_numbers<[1], [0], [0], [1], [0, 0, 1, 1], [], []>} : vector<1x168xf32>, vector<168x32xf32>, vector<1x32xf32> -> vector<1x32xf32>
    %206 = arith.addf %201, %205 : vector<1x32xf32>
    %207 = vector.extract_strided_slice %145 {offsets = [12, 0], sizes = [1, 168], strides = [1, 1]} : vector<14x168xf32> to vector<1x168xf32>
    %c12_157 = arith.constant 12 : index
    %c0_158 = arith.constant 0 : index
    %c0_159 = arith.constant 0 : index
    %208 = vector.load %arg5[%c12_157, %c0_158, %c0_159] : memref<14x168x32xf32, #tpu.memory_space<vmem>>, vector<1x168x32xf32>
    %209 = vector.shape_cast %208 : vector<1x168x32xf32> to vector<168x32xf32>
    %cst_160 = arith.constant dense<0.000000e+00> : vector<1x32xf32>
    %210 = tpu.matmul %207, %209, %cst_160 {dimension_numbers = #tpu.dot_dimension_numbers<[1], [0], [0], [1], [0, 0, 1, 1], [], []>} : vector<1x168xf32>, vector<168x32xf32>, vector<1x32xf32> -> vector<1x32xf32>
    %211 = arith.addf %206, %210 : vector<1x32xf32>
    %212 = vector.extract_strided_slice %145 {offsets = [13, 0], sizes = [1, 168], strides = [1, 1]} : vector<14x168xf32> to vector<1x168xf32>
    %c13_161 = arith.constant 13 : index
    %c0_162 = arith.constant 0 : index
    %c0_163 = arith.constant 0 : index
    %213 = vector.load %arg5[%c13_161, %c0_162, %c0_163] : memref<14x168x32xf32, #tpu.memory_space<vmem>>, vector<1x168x32xf32>
    %214 = vector.shape_cast %213 : vector<1x168x32xf32> to vector<168x32xf32>
    %cst_164 = arith.constant dense<0.000000e+00> : vector<1x32xf32>
    %215 = tpu.matmul %212, %214, %cst_164 {dimension_numbers = #tpu.dot_dimension_numbers<[1], [0], [0], [1], [0, 0, 1, 1], [], []>} : vector<1x168xf32>, vector<168x32xf32>, vector<1x32xf32> -> vector<1x32xf32>
    %216 = arith.addf %211, %215 : vector<1x32xf32>
    %cst_165 = arith.constant 0.000000e+00 : f32
    %217 = vector.broadcast %cst_165 : f32 to vector<1x32xf32>
    %218 = arith.maximumf %216, %217 : vector<1x32xf32>
    %c0_166 = arith.constant 0 : index
    %c0_167 = arith.constant 0 : index
    %219 = vector.load %arg7[%c0_166, %c0_167] : memref<32x16xf32, #tpu.memory_space<vmem>>, vector<32x16xf32>
    %cst_168 = arith.constant dense<0.000000e+00> : vector<1x16xf32>
    %220 = tpu.matmul %218, %219, %cst_168 {dimension_numbers = #tpu.dot_dimension_numbers<[1], [0], [0], [1], [0, 0, 1, 1], [], []>} : vector<1x32xf32>, vector<32x16xf32>, vector<1x16xf32> -> vector<1x16xf32>
    %c0_169 = arith.constant 0 : index
    %c0_170 = arith.constant 0 : index
    %221 = vector.load %arg8[%c0_169, %c0_170] : memref<1x16xf32, #tpu.memory_space<vmem>>, vector<1x16xf32>
    %222 = arith.addf %220, %221 : vector<1x16xf32>
    %cst_171 = arith.constant 0.000000e+00 : f32
    %223 = vector.broadcast %cst_171 : f32 to vector<1x16xf32>
    %224 = arith.maximumf %222, %223 : vector<1x16xf32>
    %c0_172 = arith.constant 0 : index
    %c0_173 = arith.constant 0 : index
    %225 = vector.load %arg9[%c0_172, %c0_173] : memref<1x16xf32, #tpu.memory_space<vmem>>, vector<1x16xf32>
    %226 = arith.mulf %224, %225 : vector<1x16xf32>
    %cst_174 = arith.constant dense<0.000000e+00> : vector<1xf32>
    %227 = vector.multi_reduction <add>, %226, %cst_174 [1] : vector<1x16xf32> to vector<1xf32>
    %228 = vector.shape_cast %227 : vector<1xf32> to vector<1x1xf32>
    %c0_175 = arith.constant 0 : index
    %c0_176 = arith.constant 0 : index
    %229 = vector.load %arg10[%c0_175, %c0_176] : memref<1x1xf32, #tpu.memory_space<vmem>>, vector<1x1xf32>
    %230 = arith.addf %228, %229 : vector<1x1xf32>
    %c1_177 = arith.constant 1 : index
    %c0_178 = arith.constant 0 : index
    %231 = vector.load %arg11[%c1_177, %c0_178] : memref<2x1xf32, #tpu.memory_space<vmem>>, vector<1x1xf32>
    tpu.vector_store %arg11[%c1_177, %c0_178], %230 {strides = array<i32>} : memref<2x1xf32, #tpu.memory_space<vmem>>, vector<1x1xf32>,
    return
  }
}

</mosaic_0001>

<llo_original>
// kernel: convolutional_eqnec_forward.1
$region0: #{convolutional_eqnec_forward.1}
  #allocation0 [shape = 'u32[]', space=smem, size = 0x4, offset = 0x4, fixed_abs, tag = 'smem constant byte address 0x4 - core index']
  #allocation1 [shape = 'u32[144,128]{1,0:T(1,128)}', space=vmem, size = 0x12000, scoped, tag = 'internal scratch']
  #allocation2 [shape = 'f32[1,1]{1,0:T(1,128)S(1)}', space=vmem, size = 0x200, scoped, tag = 'scoped memory for convolutional_eqnec_forward.1']
  %s0 = inlined_call_operand.vmem [shape: f32[2,16,64], index: 0, kind: input, shape index: {}]
  %s1 = inlined_call_operand.vmem [shape: f32[2,64,120], index: 1, kind: input, shape index: {}]
  %s2 = inlined_call_operand.vmem [shape: f32[1,120], index: 2, kind: input, shape index: {}]
  %s3 = inlined_call_operand.vmem [shape: f32[2,120,168], index: 3, kind: input, shape index: {}]
  %s4 = inlined_call_operand.vmem [shape: f32[1,168], index: 4, kind: input, shape index: {}]
  %s5 = inlined_call_operand.vmem [shape: f32[14,168,32], index: 5, kind: input, shape index: {}]
  %s6 = inlined_call_operand.vmem [shape: f32[1,32], index: 6, kind: input, shape index: {}]
  %s7 = inlined_call_operand.vmem [shape: f32[32,16], index: 7, kind: input, shape index: {}]
  %s8 = inlined_call_operand.vmem [shape: f32[1,16], index: 8, kind: input, shape index: {}]
  %s9 = inlined_call_operand.vmem [shape: f32[1,16], index: 9, kind: input, shape index: {}]
  %s10 = inlined_call_operand.<no memory space> [shape: f32[1,1], index: 10, kind: input, shape index: {}]
  %s11 = inlined_call_operand.vmem [shape: f32[2,1], index: 11, kind: output, shape index: {}]
  %s12 = sld [smem:[#allocation0]]
  $region54: #{convolutional_eqnec_forward.1} parent=0
    _
  %s14 = ssub.s32 1, %s12
  %s15 = scalar_select 0, %s14, %s12
  %v16 = vstv %s10
  %17 = vst [vmem:[#allocation2] sm:$0x1] %v16
  // Predicated region
  $region2: #{convolutional_eqnec_forward.1} parent=0 // pred_check
    _
  $region3: #{convolutional_eqnec_forward.1} parent=0 // pred_check_branch
    %19 = sbr.rel (0) target = $region5
  $region4: #{convolutional_eqnec_forward.1} parent=0 // pred_region
    _
  $region5: #{convolutional_eqnec_forward.1} parent=0 // pred_fallthru
    _
  // Predicated region
  $region6: #{convolutional_eqnec_forward.1} parent=0 // pred_check
    _
  $region7: #{convolutional_eqnec_forward.1} parent=0 // pred_check_branch
    %21 = sbr.rel (0) target = $region9
  $region8: #{convolutional_eqnec_forward.1} parent=0 // pred_region
    _
  $region9: #{convolutional_eqnec_forward.1} parent=0 // pred_fallthru
    _
  // Predicated region
  $region10: #{convolutional_eqnec_forward.1} parent=0 // pred_check
    _
  $region11: #{convolutional_eqnec_forward.1} parent=0 // pred_check_branch
    %23 = sbr.rel (0) target = $region13
  $region12: #{convolutional_eqnec_forward.1} parent=0 // pred_region
    _
  $region13: #{convolutional_eqnec_forward.1} parent=0 // pred_fallthru
    _
  // Predicated region
  $region14: #{convolutional_eqnec_forward.1} parent=0 // pred_check
    _
  $region15: #{convolutional_eqnec_forward.1} parent=0 // pred_check_branch
    %25 = sbr.rel (0) target = $region17
  $region16: #{convolutional_eqnec_forward.1} parent=0 // pred_region
    _
  $region17: #{convolutional_eqnec_forward.1} parent=0 // pred_fallthru
    _
  // Predicated region
  $region18: #{convolutional_eqnec_forward.1} parent=0 // pred_check
    _
  $region19: #{convolutional_eqnec_forward.1} parent=0 // pred_check_branch
    %27 = sbr.rel (0) target = $region21
  $region20: #{convolutional_eqnec_forward.1} parent=0 // pred_region
    _
  $region21: #{convolutional_eqnec_forward.1} parent=0 // pred_fallthru
    _
  // Predicated region
  $region22: #{convolutional_eqnec_forward.1} parent=0 // pred_check
    _
  $region23: #{convolutional_eqnec_forward.1} parent=0 // pred_check_branch
    %29 = sbr.rel (0) target = $region25
  $region24: #{convolutional_eqnec_forward.1} parent=0 // pred_region
    _
  $region25: #{convolutional_eqnec_forward.1} parent=0 // pred_fallthru
    _
  // Predicated region
  $region26: #{convolutional_eqnec_forward.1} parent=0 // pred_check
    _
  $region27: #{convolutional_eqnec_forward.1} parent=0 // pred_check_branch
    %31 = sbr.rel (0) target = $region29
  $region28: #{convolutional_eqnec_forward.1} parent=0 // pred_region
    _
  $region29: #{convolutional_eqnec_forward.1} parent=0 // pred_fallthru
    _
  // Predicated region
  $region30: #{convolutional_eqnec_forward.1} parent=0 // pred_check
    _
  $region31: #{convolutional_eqnec_forward.1} parent=0 // pred_check_branch
    %33 = sbr.rel (0) target = $region33
  $region32: #{convolutional_eqnec_forward.1} parent=0 // pred_region
    _
  $region33: #{convolutional_eqnec_forward.1} parent=0 // pred_fallthru
    _
  // Predicated region
  $region34: #{convolutional_eqnec_forward.1} parent=0 // pred_check
    _
  $region35: #{convolutional_eqnec_forward.1} parent=0 // pred_check_branch
    %35 = sbr.rel (0) target = $region37
  $region36: #{convolutional_eqnec_forward.1} parent=0 // pred_region
    _
  $region37: #{convolutional_eqnec_forward.1} parent=0 // pred_fallthru
    _
  // Predicated region
  $region38: #{convolutional_eqnec_forward.1} parent=0 // pred_check
    _
  $region39: #{convolutional_eqnec_forward.1} parent=0 // pred_check_branch
    %37 = sbr.rel (0) target = $region41
  $region40: #{convolutional_eqnec_forward.1} parent=0 // pred_region
    _
  $region41: #{convolutional_eqnec_forward.1} parent=0 // pred_fallthru
    _
  // Predicated region
  $region42: #{convolutional_eqnec_forward.1} parent=0 // pred_check
    _
  $region43: #{convolutional_eqnec_forward.1} parent=0 // pred_check_branch
    %39 = sbr.rel (0) target = $region45
  $region44: #{convolutional_eqnec_forward.1} parent=0 // pred_region
    _
  $region45: #{convolutional_eqnec_forward.1} parent=0 // pred_fallthru
    _
  %v40 = vld [vmem:[%s0] sm:$0xff]
  %v41 = vld [vmem:[%s0 + $0x8] sm:$0xff]
  %v42 = vld [vmem:[%s1] sm:$0xff]
  %v43 = vld [vmem:[%s1 + $0x8] sm:$0xff]
  %v44 = vld [vmem:[%s1 + $0x10] sm:$0xff]
  %v45 = vld [vmem:[%s1 + $0x18] sm:$0xff]
  %v46 = vld [vmem:[%s1 + $0x20] sm:$0xff]
  %v47 = vld [vmem:[%s1 + $0x28] sm:$0xff]
  %v48 = vld [vmem:[%s1 + $0x30] sm:$0xff]
  %v49 = vld [vmem:[%s1 + $0x38] sm:$0xff]
  %s50 = scalar_lea.vmem %s1, 64
  %v51 = vld [vmem:[%s50] sm:$0xff]
  %v52 = vld [vmem:[%s50 + $0x8] sm:$0xff]
  %v53 = vld [vmem:[%s50 + $0x10] sm:$0xff]
  %v54 = vld [vmem:[%s50 + $0x18] sm:$0xff]
  %v55 = vld [vmem:[%s50 + $0x20] sm:$0xff]
  %v56 = vld [vmem:[%s50 + $0x28] sm:$0xff]
  %v57 = vld [vmem:[%s50 + $0x30] sm:$0xff]
  %v58 = vld [vmem:[%s50 + $0x38] sm:$0xff]
  %vm61 = vcmask 1046528
  %v62 = vrot.slane %v40, 1
  %v63 = vrot.slane %v41, 1
  %v64 = vsel %vm61, %v62, %v63
  %vm65 = vcmask 523264
  %v66 = vsel %vm65, %v64, 0
  %v68 = vsel %vm65, %v63, 0
  %70 = vmatprep.subr.mxu0 0.0
  %71 = vmatpush1.msra.mxu0 0.0
  %72 = vmatprep.subr.mxu0 0.0
  %73 = vmatpush1.msra.mxu0 0.0
  %74 = vmatprep.subr.mxu0 0.0
  %75 = vmatpush1.msra.mxu0 0.0
  %76 = vmatprep.subr.mxu0 0.0
  %77 = vmatpush1.msra.mxu0 0.0
  %78 = vmatprep.subr.mxu0 0.0
  %79 = vmatpush1.msra.mxu0 0.0
  %80 = vmatprep.subr.mxu0 0.0
  %81 = vmatpush1.msra.mxu0 0.0
  %82 = vmatprep.subr.mxu0 0.0
  %83 = vmatpush1.msra.mxu0 0.0
  %84 = vmatprep.subr.mxu0 0.0
  %85 = vmatpush1.msra.mxu0 0.0
  %86 = vmatprep.subr.mxu0 0.0
  %87 = vmatpush1.msra.mxu0 %v58
  %88 = vmatprep.subr.mxu0 0.0
  %89 = vmatpush1.msra.mxu0 %v57
  %90 = vmatprep.subr.mxu0 0.0
  %91 = vmatpush1.msra.mxu0 %v56
  %92 = vmatprep.subr.mxu0 0.0
  %93 = vmatpush1.msra.mxu0 %v55
  %94 = vmatprep.subr.mxu0 0.0
  %95 = vmatpush1.msra.mxu0 %v54
  %96 = vmatprep.subr.mxu0 0.0
  %97 = vmatpush1.msra.mxu0 %v53
  %98 = vmatprep.subr.mxu0 0.0
  %99 = vmatpush1.msra.mxu0 %v52
  %100 = vmatprep.subr.mxu0 0.0
  %101 = vmatpush1.msra.mxu0 %v51
  %102 = vmatprep.subr.mxu0 0.0
  %103 = vmatpush2.msra.mxu0 0.0
  %104 = vmatprep.subr.mxu0 0.0
  %105 = vmatpush2.msra.mxu0 0.0
  %106 = vmatprep.subr.mxu0 0.0
  %107 = vmatpush2.msra.mxu0 0.0
  %108 = vmatprep.subr.mxu0 0.0
  %109 = vmatpush2.msra.mxu0 0.0
  %110 = vmatprep.subr.mxu0 0.0
  %111 = vmatpush2.msra.mxu0 0.0
  %112 = vmatprep.subr.mxu0 0.0
  %113 = vmatpush2.msra.mxu0 0.0
  %114 = vmatprep.subr.mxu0 0.0
  %115 = vmatpush2.msra.mxu0 0.0
  %116 = vmatprep.subr.mxu0 0.0
  %117 = vmatpush2.msra.mxu0 0.0
  %118 = vmatprep.subr.mxu0 0.0
  %119 = vmatpush2.msra.mxu0 0.0
  %120 = vmatprep.subr.mxu0 0.0
  %121 = vmatpush2.msra.mxu0 0.0
  %122 = vmatprep.subr.mxu0 0.0
  %123 = vmatpush2.msra.mxu0 0.0
  %124 = vmatprep.subr.mxu0 0.0
  %125 = vmatpush2.msra.mxu0 0.0
  %126 = vmatprep.subr.mxu0 0.0
  %127 = vmatpush2.msra.mxu0 0.0
  %128 = vmatprep.subr.mxu0 0.0
  %129 = vmatpush2.msra.mxu0 0.0
  %130 = vmatprep.subr.mxu0 0.0
  %131 = vmatpush2.msra.mxu0 0.0
  %132 = vmatprep.subr.mxu0 0.0
  %133 = vmatpush2.msra.mxu0 0.0
  %134 = vmatprep.mubr.f32.mxu0 0.0
  %135 = vmatmul.mubr.f32.gmra.mxu0 %v66
  %v136 = vpop.f32.mrf.mxu0
  %v137 = vadd.f32 0.0, %v136
  %v138 = vpop.f32.mrf.mxu0
  %139 = vmatprep.mubr.f32.mxu0 0.0
  %140 = vmatmul.mubr.f32.gmra.mxu0 %v68
  %v141 = vpop.f32.mrf.mxu0
  %v142 = vadd.f32 0.0, %v141
  %v143 = vpop.f32.mrf.mxu0
  %144 = vdwg.mxu0
  %v145 = vsel %vm65, %v40, 0
  %v147 = vsel %vm65, %v41, 0
  %149 = vmatprep.subr.mxu0 0.0
  %150 = vmatpush1.msra.mxu0 0.0
  %151 = vmatprep.subr.mxu0 0.0
  %152 = vmatpush1.msra.mxu0 0.0
  %153 = vmatprep.subr.mxu0 0.0
  %154 = vmatpush1.msra.mxu0 0.0
  %155 = vmatprep.subr.mxu0 0.0
  %156 = vmatpush1.msra.mxu0 0.0
  %157 = vmatprep.subr.mxu0 0.0
  %158 = vmatpush1.msra.mxu0 0.0
  %159 = vmatprep.subr.mxu0 0.0
  %160 = vmatpush1.msra.mxu0 0.0
  %161 = vmatprep.subr.mxu0 0.0
  %162 = vmatpush1.msra.mxu0 0.0
  %163 = vmatprep.subr.mxu0 0.0
  %164 = vmatpush1.msra.mxu0 0.0
  %165 = vmatprep.subr.mxu0 0.0
  %166 = vmatpush1.msra.mxu0 %v49
  %167 = vmatprep.subr.mxu0 0.0
  %168 = vmatpush1.msra.mxu0 %v48
  %169 = vmatprep.subr.mxu0 0.0
  %170 = vmatpush1.msra.mxu0 %v47
  %171 = vmatprep.subr.mxu0 0.0
  %172 = vmatpush1.msra.mxu0 %v46
  %173 = vmatprep.subr.mxu0 0.0
  %174 = vmatpush1.msra.mxu0 %v45
  %175 = vmatprep.subr.mxu0 0.0
  %176 = vmatpush1.msra.mxu0 %v44
  %177 = vmatprep.subr.mxu0 0.0
  %178 = vmatpush1.msra.mxu0 %v43
  %179 = vmatprep.subr.mxu0 0.0
  %180 = vmatpush1.msra.mxu0 %v42
  %181 = vmatprep.subr.mxu0 0.0
  %182 = vmatpush2.msra.mxu0 0.0
  %183 = vmatprep.subr.mxu0 0.0
  %184 = vmatpush2.msra.mxu0 0.0
  %185 = vmatprep.subr.mxu0 0.0
  %186 = vmatpush2.msra.mxu0 0.0
  %187 = vmatprep.subr.mxu0 0.0
  %188 = vmatpush2.msra.mxu0 0.0
  %189 = vmatprep.subr.mxu0 0.0
  %190 = vmatpush2.msra.mxu0 0.0
  %191 = vmatprep.subr.mxu0 0.0
  %192 = vmatpush2.msra.mxu0 0.0
  %193 = vmatprep.subr.mxu0 0.0
  %194 = vmatpush2.msra.mxu0 0.0
  %195 = vmatprep.subr.mxu0 0.0
  %196 = vmatpush2.msra.mxu0 0.0
  %197 = vmatprep.subr.mxu0 0.0
  %198 = vmatpush2.msra.mxu0 0.0
  %199 = vmatprep.subr.mxu0 0.0
  %200 = vmatpush2.msra.mxu0 0.0
  %201 = vmatprep.subr.mxu0 0.0
  %202 = vmatpush2.msra.mxu0 0.0
  %203 = vmatprep.subr.mxu0 0.0
  %204 = vmatpush2.msra.mxu0 0.0
  %205 = vmatprep.subr.mxu0 0.0
  %206 = vmatpush2.msra.mxu0 0.0
  %207 = vmatprep.subr.mxu0 0.0
  %208 = vmatpush2.msra.mxu0 0.0
  %209 = vmatprep.subr.mxu0 0.0
  %210 = vmatpush2.msra.mxu0 0.0
  %211 = vmatprep.subr.mxu0 0.0
  %212 = vmatpush2.msra.mxu0 0.0
  %213 = vmatprep.mubr.f32.mxu0 0.0
  %214 = vmatmul.mubr.f32.gmra.mxu0 %v145
  %v215 = vpop.f32.mrf.mxu0
  %v216 = vadd.f32 %v137, %v215
  %v217 = vpop.f32.mrf.mxu0
  %218 = vmatprep.mubr.f32.mxu0 0.0
  %219 = vmatmul.mubr.f32.gmra.mxu0 %v147
  %v220 = vpop.f32.mrf.mxu0
  %v221 = vadd.f32 %v142, %v220
  %v222 = vpop.f32.mrf.mxu0
  %223 = vdwg.mxu0
  %v224 = vld [vmem:[%s2] sm:$0x1]
  %v226 = vlaneseq
  %v227 = vshrl.u32 %v226, 7
  %v228 = vsub.s32 0, %v227
  %v229 = vrot.slane %v224, %v228
  %v231 = vadd.f32 %v216, %v229
  %v232 = vadd.f32 %v221, %v229
  %v233 = vmax.f32 %v231, 0.0
  %v234 = vmax.f32 %v232, 0.0
  %v235 = vld [vmem:[%s3] sm:$0xff]
  %v236 = vld [vmem:[%s3 + $0x8] sm:$0xff]
  %v237 = vld [vmem:[%s3 + $0x10] sm:$0xff]
  %v238 = vld [vmem:[%s3 + $0x18] sm:$0xff]
  %v239 = vld [vmem:[%s3 + $0x20] sm:$0xff]
  %v240 = vld [vmem:[%s3 + $0x28] sm:$0xff]
  %v241 = vld [vmem:[%s3 + $0x30] sm:$0xff]
  %v242 = vld [vmem:[%s3 + $0x38] sm:$0xff]
  %v243 = vld [vmem:[%s3 + $0x40] sm:$0xff]
  %v244 = vld [vmem:[%s3 + $0x48] sm:$0xff]
  %v245 = vld [vmem:[%s3 + $0x50] sm:$0xff]
  %v246 = vld [vmem:[%s3 + $0x58] sm:$0xff]
  %v247 = vld [vmem:[%s3 + $0x60] sm:$0xff]
  %v248 = vld [vmem:[%s3 + $0x68] sm:$0xff]
  %v249 = vld [vmem:[%s3 + $0x70] sm:$0xff]
  %v250 = vld [vmem:[%s3 + $0x78] sm:$0xff]
  %v251 = vld [vmem:[%s3 + $0x80] sm:$0xff]
  %v252 = vld [vmem:[%s3 + $0x88] sm:$0xff]
  %v253 = vld [vmem:[%s3 + $0x90] sm:$0xff]
  %v254 = vld [vmem:[%s3 + $0x98] sm:$0xff]
  %v255 = vld [vmem:[%s3 + $0xa0] sm:$0xff]
  %v256 = vld [vmem:[%s3 + $0xa8] sm:$0xff]
  %v257 = vld [vmem:[%s3 + $0xb0] sm:$0xff]
  %v258 = vld [vmem:[%s3 + $0xb8] sm:$0xff]
  %v259 = vld [vmem:[%s3 + $0xc0] sm:$0xff]
  %v260 = vld [vmem:[%s3 + $0xc8] sm:$0xff]
  %v261 = vld [vmem:[%s3 + $0xd0] sm:$0xff]
  %v262 = vld [vmem:[%s3 + $0xd8] sm:$0xff]
  %v263 = vld [vmem:[%s3 + $0xe0] sm:$0xff]
  %v264 = vld [vmem:[%s3 + $0xe8] sm:$0xff]
  %s265 = scalar_lea.vmem %s3, 240
  %v266 = vld [vmem:[%s265] sm:$0xff]
  %v267 = vld [vmem:[%s265 + $0x8] sm:$0xff]
  %v268 = vld [vmem:[%s265 + $0x10] sm:$0xff]
  %v269 = vld [vmem:[%s265 + $0x18] sm:$0xff]
  %v270 = vld [vmem:[%s265 + $0x20] sm:$0xff]
  %v271 = vld [vmem:[%s265 + $0x28] sm:$0xff]
  %v272 = vld [vmem:[%s265 + $0x30] sm:$0xff]
  %v273 = vld [vmem:[%s265 + $0x38] sm:$0xff]
  %v274 = vld [vmem:[%s265 + $0x40] sm:$0xff]
  %v275 = vld [vmem:[%s265 + $0x48] sm:$0xff]
  %v276 = vld [vmem:[%s265 + $0x50] sm:$0xff]
  %v277 = vld [vmem:[%s265 + $0x58] sm:$0xff]
  %v278 = vld [vmem:[%s265 + $0x60] sm:$0xff]
  %v279 = vld [vmem:[%s265 + $0x68] sm:$0xff]
  %v280 = vld [vmem:[%s265 + $0x70] sm:$0xff]
  %v281 = vld [vmem:[%s265 + $0x78] sm:$0xff]
  %v282 = vld [vmem:[%s265 + $0x80] sm:$0xff]
  %v283 = vld [vmem:[%s265 + $0x88] sm:$0xff]
  %v284 = vld [vmem:[%s265 + $0x90] sm:$0xff]
  %v285 = vld [vmem:[%s265 + $0x98] sm:$0xff]
  %v286 = vld [vmem:[%s265 + $0xa0] sm:$0xff]
  %v287 = vld [vmem:[%s265 + $0xa8] sm:$0xff]
  %v288 = vld [vmem:[%s265 + $0xb0] sm:$0xff]
  %v289 = vld [vmem:[%s265 + $0xb8] sm:$0xff]
  %v290 = vld [vmem:[%s265 + $0xc0] sm:$0xff]
  %v291 = vld [vmem:[%s265 + $0xc8] sm:$0xff]
  %v292 = vld [vmem:[%s265 + $0xd0] sm:$0xff]
  %v293 = vld [vmem:[%s265 + $0xd8] sm:$0xff]
  %v294 = vld [vmem:[%s265 + $0xe0] sm:$0xff]
  %v295 = vld [vmem:[%s265 + $0xe8] sm:$0xff]
  %v298 = vrot.slane %v233, 1
  %v299 = vrot.slane %v234, 1
  %v300 = vsel %vm61, %v298, %v299
  %vm301 = vcmask 982016
  %v302 = vsel %vm301, %v300, 0
  %v304 = vsel %vm301, %v299, 0
  %306 = vmatprep.subr.mxu0 0.0
  %307 = vmatpush1.msra.mxu0 0.0
  %308 = vmatprep.subr.mxu0 %v295
  %309 = vmatpush1.msra.mxu0 %v294
  %310 = vmatprep.subr.mxu0 %v293
  %311 = vmatpush1.msra.mxu0 %v292
  %312 = vmatprep.subr.mxu0 %v291
  %313 = vmatpush1.msra.mxu0 %v290
  %314 = vmatprep.subr.mxu0 %v289
  %315 = vmatpush1.msra.mxu0 %v288
  %316 = vmatprep.subr.mxu0 %v287
  %317 = vmatpush1.msra.mxu0 %v286
  %318 = vmatprep.subr.mxu0 %v285
  %319 = vmatpush1.msra.mxu0 %v284
  %320 = vmatprep.subr.mxu0 %v283
  %321 = vmatpush1.msra.mxu0 %v282
  %322 = vmatprep.subr.mxu0 %v281
  %323 = vmatpush1.msra.mxu0 %v280
  %324 = vmatprep.subr.mxu0 %v279
  %325 = vmatpush1.msra.mxu0 %v278
  %326 = vmatprep.subr.mxu0 %v277
  %327 = vmatpush1.msra.mxu0 %v276
  %328 = vmatprep.subr.mxu0 %v275
  %329 = vmatpush1.msra.mxu0 %v274
  %330 = vmatprep.subr.mxu0 %v273
  %331 = vmatpush1.msra.mxu0 %v272
  %332 = vmatprep.subr.mxu0 %v271
  %333 = vmatpush1.msra.mxu0 %v270
  %334 = vmatprep.subr.mxu0 %v269
  %335 = vmatpush1.msra.mxu0 %v268
  %336 = vmatprep.subr.mxu0 %v267
  %337 = vmatpush1.msra.mxu0 %v266
  %338 = vmatprep.subr.mxu0 0.0
  %339 = vmatpush2.msra.mxu0 0.0
  %340 = vmatprep.subr.mxu0 0.0
  %341 = vmatpush2.msra.mxu0 0.0
  %342 = vmatprep.subr.mxu0 0.0
  %343 = vmatpush2.msra.mxu0 0.0
  %344 = vmatprep.subr.mxu0 0.0
  %345 = vmatpush2.msra.mxu0 0.0
  %346 = vmatprep.subr.mxu0 0.0
  %347 = vmatpush2.msra.mxu0 0.0
  %348 = vmatprep.subr.mxu0 0.0
  %349 = vmatpush2.msra.mxu0 0.0
  %350 = vmatprep.subr.mxu0 0.0
  %351 = vmatpush2.msra.mxu0 0.0
  %352 = vmatprep.subr.mxu0 0.0
  %353 = vmatpush2.msra.mxu0 0.0
  %354 = vmatprep.subr.mxu0 0.0
  %355 = vmatpush2.msra.mxu0 0.0
  %356 = vmatprep.subr.mxu0 0.0
  %357 = vmatpush2.msra.mxu0 0.0
  %358 = vmatprep.subr.mxu0 0.0
  %359 = vmatpush2.msra.mxu0 0.0
  %360 = vmatprep.subr.mxu0 0.0
  %361 = vmatpush2.msra.mxu0 0.0
  %362 = vmatprep.subr.mxu0 0.0
  %363 = vmatpush2.msra.mxu0 0.0
  %364 = vmatprep.subr.mxu0 0.0
  %365 = vmatpush2.msra.mxu0 0.0
  %366 = vmatprep.subr.mxu0 0.0
  %367 = vmatpush2.msra.mxu0 0.0
  %368 = vmatprep.subr.mxu0 0.0
  %369 = vmatpush2.msra.mxu0 0.0
  %370 = vmatprep.mubr.f32.mxu0 0.0
  %371 = vmatmul.mubr.f32.gmra.mxu0 %v302
  %v372 = vpop.f32.mrf.mxu0
  %v373 = vadd.f32 0.0, %v372
  %v374 = vpop.f32.mrf.mxu0
  %v375 = vadd.f32 0.0, %v374
  %376 = vmatprep.mubr.f32.mxu0 0.0
  %377 = vmatmul.mubr.f32.gmra.mxu0 %v304
  %v378 = vpop.f32.mrf.mxu0
  %v379 = vadd.f32 0.0, %v378
  %v380 = vpop.f32.mrf.mxu0
  %v381 = vadd.f32 0.0, %v380
  %382 = vdwg.mxu0
  %v383 = vsel %vm301, %v233, 0
  %v385 = vsel %vm301, %v234, 0
  %387 = vmatprep.subr.mxu0 0.0
  %388 = vmatpush1.msra.mxu0 0.0
  %389 = vmatprep.subr.mxu0 %v264
  %390 = vmatpush1.msra.mxu0 %v263
  %391 = vmatprep.subr.mxu0 %v262
  %392 = vmatpush1.msra.mxu0 %v261
  %393 = vmatprep.subr.mxu0 %v260
  %394 = vmatpush1.msra.mxu0 %v259
  %395 = vmatprep.subr.mxu0 %v258
  %396 = vmatpush1.msra.mxu0 %v257
  %397 = vmatprep.subr.mxu0 %v256
  %398 = vmatpush1.msra.mxu0 %v255
  %399 = vmatprep.subr.mxu0 %v254
  %400 = vmatpush1.msra.mxu0 %v253
  %401 = vmatprep.subr.mxu0 %v252
  %402 = vmatpush1.msra.mxu0 %v251
  %403 = vmatprep.subr.mxu0 %v250
  %404 = vmatpush1.msra.mxu0 %v249
  %405 = vmatprep.subr.mxu0 %v248
  %406 = vmatpush1.msra.mxu0 %v247
  %407 = vmatprep.subr.mxu0 %v246
  %408 = vmatpush1.msra.mxu0 %v245
  %409 = vmatprep.subr.mxu0 %v244
  %410 = vmatpush1.msra.mxu0 %v243
  %411 = vmatprep.subr.mxu0 %v242
  %412 = vmatpush1.msra.mxu0 %v241
  %413 = vmatprep.subr.mxu0 %v240
  %414 = vmatpush1.msra.mxu0 %v239
  %415 = vmatprep.subr.mxu0 %v238
  %416 = vmatpush1.msra.mxu0 %v237
  %417 = vmatprep.subr.mxu0 %v236
  %418 = vmatpush1.msra.mxu0 %v235
  %419 = vmatprep.subr.mxu0 0.0
  %420 = vmatpush2.msra.mxu0 0.0
  %421 = vmatprep.subr.mxu0 0.0
  %422 = vmatpush2.msra.mxu0 0.0
  %423 = vmatprep.subr.mxu0 0.0
  %424 = vmatpush2.msra.mxu0 0.0
  %425 = vmatprep.subr.mxu0 0.0
  %426 = vmatpush2.msra.mxu0 0.0
  %427 = vmatprep.subr.mxu0 0.0
  %428 = vmatpush2.msra.mxu0 0.0
  %429 = vmatprep.subr.mxu0 0.0
  %430 = vmatpush2.msra.mxu0 0.0
  %431 = vmatprep.subr.mxu0 0.0
  %432 = vmatpush2.msra.mxu0 0.0
  %433 = vmatprep.subr.mxu0 0.0
  %434 = vmatpush2.msra.mxu0 0.0
  %435 = vmatprep.subr.mxu0 0.0
  %436 = vmatpush2.msra.mxu0 0.0
  %437 = vmatprep.subr.mxu0 0.0
  %438 = vmatpush2.msra.mxu0 0.0
  %439 = vmatprep.subr.mxu0 0.0
  %440 = vmatpush2.msra.mxu0 0.0
  %441 = vmatprep.subr.mxu0 0.0
  %442 = vmatpush2.msra.mxu0 0.0
  %443 = vmatprep.subr.mxu0 0.0
  %444 = vmatpush2.msra.mxu0 0.0
  %445 = vmatprep.subr.mxu0 0.0
  %446 = vmatpush2.msra.mxu0 0.0
  %447 = vmatprep.subr.mxu0 0.0
  %448 = vmatpush2.msra.mxu0 0.0
  %449 = vmatprep.subr.mxu0 0.0
  %450 = vmatpush2.msra.mxu0 0.0
  %451 = vmatprep.mubr.f32.mxu0 0.0
  %452 = vmatmul.mubr.f32.gmra.mxu0 %v383
  %v453 = vpop.f32.mrf.mxu0
  %v454 = vadd.f32 %v373, %v453
  %v455 = vpop.f32.mrf.mxu0
  %v456 = vadd.f32 %v375, %v455
  %457 = vmatprep.mubr.f32.mxu0 0.0
  %458 = vmatmul.mubr.f32.gmra.mxu0 %v385
  %v459 = vpop.f32.mrf.mxu0
  %v460 = vadd.f32 %v379, %v459
  %v461 = vpop.f32.mrf.mxu0
  %v462 = vadd.f32 %v381, %v461
  %463 = vdwg.mxu0
  %v464 = vld [vmem:[%s4] sm:$0x3]
  %v466 = vlaneseq
  %v467 = vshrl.u32 %v466, 7
  %v468 = vsub.s32 0, %v467
  %v469 = vrot.slane %v464, %v468
  %v470 = vlaneseq
  %v471 = vshrl.u32 %v470, 7
  %v472 = vsub.s32 1, %v471
  %v473 = vrot.slane %v464, %v472
  %v476 = vadd.f32 %v454, %v469
  %v477 = vadd.f32 %v456, %v473
  %v478 = vadd.f32 %v460, %v469
  %v479 = vadd.f32 %v462, %v473
  %v480 = vmax.f32 %v476, 0.0
  %v481 = vmax.f32 %v477, 0.0
  %v482 = vmax.f32 %v478, 0.0
  %v483 = vmax.f32 %v479, 0.0
  %v484 = vld [vmem:[%s6] sm:$0x1]
  %v485 = vld [vmem:[%s5] sm:$0xff]
  %v486 = vld [vmem:[%s5 + $0x8] sm:$0xff]
  %v487 = vld [vmem:[%s5 + $0x10] sm:$0xff]
  %v488 = vld [vmem:[%s5 + $0x18] sm:$0xff]
  %v489 = vld [vmem:[%s5 + $0x20] sm:$0xff]
  %v490 = vld [vmem:[%s5 + $0x28] sm:$0xff]
  %v491 = vld [vmem:[%s5 + $0x30] sm:$0xff]
  %v492 = vld [vmem:[%s5 + $0x38] sm:$0xff]
  %v493 = vld [vmem:[%s5 + $0x40] sm:$0xff]
  %v494 = vld [vmem:[%s5 + $0x48] sm:$0xff]
  %v495 = vld [vmem:[%s5 + $0x50] sm:$0xff]
  %v496 = vld [vmem:[%s5 + $0x58] sm:$0xff]
  %v497 = vld [vmem:[%s5 + $0x60] sm:$0xff]
  %v498 = vld [vmem:[%s5 + $0x68] sm:$0xff]
  %v499 = vld [vmem:[%s5 + $0x70] sm:$0xff]
  %v500 = vld [vmem:[%s5 + $0x78] sm:$0xff]
  %v501 = vld [vmem:[%s5 + $0x80] sm:$0xff]
  %v502 = vld [vmem:[%s5 + $0x88] sm:$0xff]
  %v503 = vld [vmem:[%s5 + $0x90] sm:$0xff]
  %v504 = vld [vmem:[%s5 + $0x98] sm:$0xff]
  %v505 = vld [vmem:[%s5 + $0xa0] sm:$0xff]
  %vm506 = vcmask 326656
  %v508 = vsel %vm506, %v481, 0
  %510 = vmatprep.subr.mxu0 0.0
  %511 = vmatpush1.msra.mxu0 %v500
  %512 = vmatprep.subr.mxu0 0.0
  %513 = vmatpush1.msra.mxu0 %v499
  %514 = vmatprep.subr.mxu0 0.0
  %515 = vmatpush1.msra.mxu0 %v498
  %516 = vmatprep.subr.mxu0 0.0
  %517 = vmatpush1.msra.mxu0 %v497
  %518 = vmatprep.subr.mxu0 0.0
  %519 = vmatpush1.msra.mxu0 %v496
  %520 = vmatprep.subr.mxu0 0.0
  %521 = vmatpush1.msra.mxu0 %v495
  %522 = vmatprep.subr.mxu0 0.0
  %523 = vmatpush1.msra.mxu0 %v494
  %524 = vmatprep.subr.mxu0 0.0
  %525 = vmatpush1.msra.mxu0 %v493
  %526 = vmatprep.subr.mxu0 0.0
  %527 = vmatpush1.msra.mxu0 %v492
  %528 = vmatprep.subr.mxu0 0.0
  %529 = vmatpush1.msra.mxu0 %v491
  %530 = vmatprep.subr.mxu0 0.0
  %531 = vmatpush1.msra.mxu0 %v490
  %532 = vmatprep.subr.mxu0 0.0
  %533 = vmatpush1.msra.mxu0 %v489
  %534 = vmatprep.subr.mxu0 0.0
  %535 = vmatpush1.msra.mxu0 %v488
  %536 = vmatprep.subr.mxu0 0.0
  %537 = vmatpush1.msra.mxu0 %v487
  %538 = vmatprep.subr.mxu0 0.0
  %539 = vmatpush1.msra.mxu0 %v486
  %540 = vmatprep.subr.mxu0 0.0
  %541 = vmatpush1.msra.mxu0 %v485
  %542 = vmatprep.subr.mxu0 0.0
  %543 = vmatpush2.msra.mxu0 0.0
  %544 = vmatprep.subr.mxu0 0.0
  %545 = vmatpush2.msra.mxu0 0.0
  %546 = vmatprep.subr.mxu0 0.0
  %547 = vmatpush2.msra.mxu0 0.0
  %548 = vmatprep.subr.mxu0 0.0
  %549 = vmatpush2.msra.mxu0 0.0
  %550 = vmatprep.subr.mxu0 0.0
  %551 = vmatpush2.msra.mxu0 0.0
  %552 = vmatprep.subr.mxu0 0.0
  %553 = vmatpush2.msra.mxu0 0.0
  %554 = vmatprep.subr.mxu0 0.0
  %555 = vmatpush2.msra.mxu0 0.0
  %556 = vmatprep.subr.mxu0 0.0
  %557 = vmatpush2.msra.mxu0 0.0
  %558 = vmatprep.subr.mxu0 0.0
  %559 = vmatpush2.msra.mxu0 0.0
  %560 = vmatprep.subr.mxu0 0.0
  %561 = vmatpush2.msra.mxu0 0.0
  %562 = vmatprep.subr.mxu0 0.0
  %563 = vmatpush2.msra.mxu0 0.0
  %564 = vmatprep.subr.mxu0 0.0
  %565 = vmatpush2.msra.mxu0 %v505
  %566 = vmatprep.subr.mxu0 0.0
  %567 = vmatpush2.msra.mxu0 %v504
  %568 = vmatprep.subr.mxu0 0.0
  %569 = vmatpush2.msra.mxu0 %v503
  %570 = vmatprep.subr.mxu0 0.0
  %571 = vmatpush2.msra.mxu0 %v502
  %572 = vmatprep.subr.mxu0 0.0
  %573 = vmatpush2.msra.mxu0 %v501
  %574 = vmatprep.mubr.f32.mxu0 %v508
  %575 = vmatmul.mubr.f32.gmra.mxu0 %v480
  %v576 = vpop.f32.mrf.mxu0
  %v577 = vadd.f32 0.0, %v576
  %v578 = vpop.f32.mrf.mxu0
  %579 = vdwg.mxu0
  %v580 = vadd.f32 %v484, %v577
  %s581 = scalar_lea.vmem %s5, 168
  %v582 = vld [vmem:[%s581] sm:$0xff]
  %v583 = vld [vmem:[%s581 + $0x8] sm:$0xff]
  %v584 = vld [vmem:[%s581 + $0x10] sm:$0xff]
  %v585 = vld [vmem:[%s581 + $0x18] sm:$0xff]
  %v586 = vld [vmem:[%s581 + $0x20] sm:$0xff]
  %v587 = vld [vmem:[%s581 + $0x28] sm:$0xff]
  %v588 = vld [vmem:[%s581 + $0x30] sm:$0xff]
  %v589 = vld [vmem:[%s581 + $0x38] sm:$0xff]
  %v590 = vld [vmem:[%s581 + $0x40] sm:$0xff]
  %v591 = vld [vmem:[%s581 + $0x48] sm:$0xff]
  %v592 = vld [vmem:[%s581 + $0x50] sm:$0xff]
  %v593 = vld [vmem:[%s581 + $0x58] sm:$0xff]
  %v594 = vld [vmem:[%s581 + $0x60] sm:$0xff]
  %v595 = vld [vmem:[%s581 + $0x68] sm:$0xff]
  %v596 = vld [vmem:[%s581 + $0x70] sm:$0xff]
  %v597 = vld [vmem:[%s581 + $0x78] sm:$0xff]
  %v598 = vld [vmem:[%s581 + $0x80] sm:$0xff]
  %v599 = vld [vmem:[%s581 + $0x88] sm:$0xff]
  %v600 = vld [vmem:[%s581 + $0x90] sm:$0xff]
  %v601 = vld [vmem:[%s581 + $0x98] sm:$0xff]
  %v602 = vld [vmem:[%s581 + $0xa0] sm:$0xff]
  %v604 = vrot.slane %v480, 1
  %v605 = vrot.slane %v481, 1
  %v607 = vsel %vm506, %v605, 0
  %609 = vmatprep.subr.mxu0 0.0
  %610 = vmatpush1.msra.mxu0 %v597
  %611 = vmatprep.subr.mxu0 0.0
  %612 = vmatpush1.msra.mxu0 %v596
  %613 = vmatprep.subr.mxu0 0.0
  %614 = vmatpush1.msra.mxu0 %v595
  %615 = vmatprep.subr.mxu0 0.0
  %616 = vmatpush1.msra.mxu0 %v594
  %617 = vmatprep.subr.mxu0 0.0
  %618 = vmatpush1.msra.mxu0 %v593
  %619 = vmatprep.subr.mxu0 0.0
  %620 = vmatpush1.msra.mxu0 %v592
  %621 = vmatprep.subr.mxu0 0.0
  %622 = vmatpush1.msra.mxu0 %v591
  %623 = vmatprep.subr.mxu0 0.0
  %624 = vmatpush1.msra.mxu0 %v590
  %625 = vmatprep.subr.mxu0 0.0
  %626 = vmatpush1.msra.mxu0 %v589
  %627 = vmatprep.subr.mxu0 0.0
  %628 = vmatpush1.msra.mxu0 %v588
  %629 = vmatprep.subr.mxu0 0.0
  %630 = vmatpush1.msra.mxu0 %v587
  %631 = vmatprep.subr.mxu0 0.0
  %632 = vmatpush1.msra.mxu0 %v586
  %633 = vmatprep.subr.mxu0 0.0
  %634 = vmatpush1.msra.mxu0 %v585
  %635 = vmatprep.subr.mxu0 0.0
  %636 = vmatpush1.msra.mxu0 %v584
  %637 = vmatprep.subr.mxu0 0.0
  %638 = vmatpush1.msra.mxu0 %v583
  %639 = vmatprep.subr.mxu0 0.0
  %640 = vmatpush1.msra.mxu0 %v582
  %641 = vmatprep.subr.mxu0 0.0
  %642 = vmatpush2.msra.mxu0 0.0
  %643 = vmatprep.subr.mxu0 0.0
  %644 = vmatpush2.msra.mxu0 0.0
  %645 = vmatprep.subr.mxu0 0.0
  %646 = vmatpush2.msra.mxu0 0.0
  %647 = vmatprep.subr.mxu0 0.0
  %648 = vmatpush2.msra.mxu0 0.0
  %649 = vmatprep.subr.mxu0 0.0
  %650 = vmatpush2.msra.mxu0 0.0
  %651 = vmatprep.subr.mxu0 0.0
  %652 = vmatpush2.msra.mxu0 0.0
  %653 = vmatprep.subr.mxu0 0.0
  %654 = vmatpush2.msra.mxu0 0.0
  %655 = vmatprep.subr.mxu0 0.0
  %656 = vmatpush2.msra.mxu0 0.0
  %657 = vmatprep.subr.mxu0 0.0
  %658 = vmatpush2.msra.mxu0 0.0
  %659 = vmatprep.subr.mxu0 0.0
  %660 = vmatpush2.msra.mxu0 0.0
  %661 = vmatprep.subr.mxu0 0.0
  %662 = vmatpush2.msra.mxu0 0.0
  %663 = vmatprep.subr.mxu0 0.0
  %664 = vmatpush2.msra.mxu0 %v602
  %665 = vmatprep.subr.mxu0 0.0
  %666 = vmatpush2.msra.mxu0 %v601
  %667 = vmatprep.subr.mxu0 0.0
  %668 = vmatpush2.msra.mxu0 %v600
  %669 = vmatprep.subr.mxu0 0.0
  %670 = vmatpush2.msra.mxu0 %v599
  %671 = vmatprep.subr.mxu0 0.0
  %672 = vmatpush2.msra.mxu0 %v598
  %673 = vmatprep.mubr.f32.mxu0 %v607
  %674 = vmatmul.mubr.f32.gmra.mxu0 %v604
  %v675 = vpop.f32.mrf.mxu0
  %v676 = vadd.f32 0.0, %v675
  %v677 = vpop.f32.mrf.mxu0
  %678 = vdwg.mxu0
  %v679 = vadd.f32 %v580, %v676
  %s680 = scalar_lea.vmem %s5, 336
  %v681 = vld [vmem:[%s680] sm:$0xff]
  %v682 = vld [vmem:[%s680 + $0x8] sm:$0xff]
  %v683 = vld [vmem:[%s680 + $0x10] sm:$0xff]
  %v684 = vld [vmem:[%s680 + $0x18] sm:$0xff]
  %v685 = vld [vmem:[%s680 + $0x20] sm:$0xff]
  %v686 = vld [vmem:[%s680 + $0x28] sm:$0xff]
  %v687 = vld [vmem:[%s680 + $0x30] sm:$0xff]
  %v688 = vld [vmem:[%s680 + $0x38] sm:$0xff]
  %v689 = vld [vmem:[%s680 + $0x40] sm:$0xff]
  %v690 = vld [vmem:[%s680 + $0x48] sm:$0xff]
  %v691 = vld [vmem:[%s680 + $0x50] sm:$0xff]
  %v692 = vld [vmem:[%s680 + $0x58] sm:$0xff]
  %v693 = vld [vmem:[%s680 + $0x60] sm:$0xff]
  %v694 = vld [vmem:[%s680 + $0x68] sm:$0xff]
  %v695 = vld [vmem:[%s680 + $0x70] sm:$0xff]
  %v696 = vld [vmem:[%s680 + $0x78] sm:$0xff]
  %v697 = vld [vmem:[%s680 + $0x80] sm:$0xff]
  %v698 = vld [vmem:[%s680 + $0x88] sm:$0xff]
  %v699 = vld [vmem:[%s680 + $0x90] sm:$0xff]
  %v700 = vld [vmem:[%s680 + $0x98] sm:$0xff]
  %v701 = vld [vmem:[%s680 + $0xa0] sm:$0xff]
  %v702 = vrot.slane %v480, 2
  %v703 = vrot.slane %v481, 2
  %v705 = vsel %vm506, %v703, 0
  %707 = vmatprep.subr.mxu0 0.0
  %708 = vmatpush1.msra.mxu0 %v696
  %709 = vmatprep.subr.mxu0 0.0
  %710 = vmatpush1.msra.mxu0 %v695
  %711 = vmatprep.subr.mxu0 0.0
  %712 = vmatpush1.msra.mxu0 %v694
  %713 = vmatprep.subr.mxu0 0.0
  %714 = vmatpush1.msra.mxu0 %v693
  %715 = vmatprep.subr.mxu0 0.0
  %716 = vmatpush1.msra.mxu0 %v692
  %717 = vmatprep.subr.mxu0 0.0
  %718 = vmatpush1.msra.mxu0 %v691
  %719 = vmatprep.subr.mxu0 0.0
  %720 = vmatpush1.msra.mxu0 %v690
  %721 = vmatprep.subr.mxu0 0.0
  %722 = vmatpush1.msra.mxu0 %v689
  %723 = vmatprep.subr.mxu0 0.0
  %724 = vmatpush1.msra.mxu0 %v688
  %725 = vmatprep.subr.mxu0 0.0
  %726 = vmatpush1.msra.mxu0 %v687
  %727 = vmatprep.subr.mxu0 0.0
  %728 = vmatpush1.msra.mxu0 %v686
  %729 = vmatprep.subr.mxu0 0.0
  %730 = vmatpush1.msra.mxu0 %v685
  %731 = vmatprep.subr.mxu0 0.0
  %732 = vmatpush1.msra.mxu0 %v684
  %733 = vmatprep.subr.mxu0 0.0
  %734 = vmatpush1.msra.mxu0 %v683
  %735 = vmatprep.subr.mxu0 0.0
  %736 = vmatpush1.msra.mxu0 %v682
  %737 = vmatprep.subr.mxu0 0.0
  %738 = vmatpush1.msra.mxu0 %v681
  %739 = vmatprep.subr.mxu0 0.0
  %740 = vmatpush2.msra.mxu0 0.0
  %741 = vmatprep.subr.mxu0 0.0
  %742 = vmatpush2.msra.mxu0 0.0
  %743 = vmatprep.subr.mxu0 0.0
  %744 = vmatpush2.msra.mxu0 0.0
  %745 = vmatprep.subr.mxu0 0.0
  %746 = vmatpush2.msra.mxu0 0.0
  %747 = vmatprep.subr.mxu0 0.0
  %748 = vmatpush2.msra.mxu0 0.0
  %749 = vmatprep.subr.mxu0 0.0
  %750 = vmatpush2.msra.mxu0 0.0
  %751 = vmatprep.subr.mxu0 0.0
  %752 = vmatpush2.msra.mxu0 0.0
  %753 = vmatprep.subr.mxu0 0.0
  %754 = vmatpush2.msra.mxu0 0.0
  %755 = vmatprep.subr.mxu0 0.0
  %756 = vmatpush2.msra.mxu0 0.0
  %757 = vmatprep.subr.mxu0 0.0
  %758 = vmatpush2.msra.mxu0 0.0
  %759 = vmatprep.subr.mxu0 0.0
  %760 = vmatpush2.msra.mxu0 0.0
  %761 = vmatprep.subr.mxu0 0.0
  %762 = vmatpush2.msra.mxu0 %v701
  %763 = vmatprep.subr.mxu0 0.0
  %764 = vmatpush2.msra.mxu0 %v700
  %765 = vmatprep.subr.mxu0 0.0
  %766 = vmatpush2.msra.mxu0 %v699
  %767 = vmatprep.subr.mxu0 0.0
  %768 = vmatpush2.msra.mxu0 %v698
  %769 = vmatprep.subr.mxu0 0.0
  %770 = vmatpush2.msra.mxu0 %v697
  %771 = vmatprep.mubr.f32.mxu0 %v705
  %772 = vmatmul.mubr.f32.gmra.mxu0 %v702
  %v773 = vpop.f32.mrf.mxu0
  %v774 = vadd.f32 0.0, %v773
  %v775 = vpop.f32.mrf.mxu0
  %776 = vdwg.mxu0
  %v777 = vadd.f32 %v679, %v774
  %s778 = scalar_lea.vmem %s5, 504
  %v779 = vld [vmem:[%s778] sm:$0xff]
  %v780 = vld [vmem:[%s778 + $0x8] sm:$0xff]
  %v781 = vld [vmem:[%s778 + $0x10] sm:$0xff]
  %v782 = vld [vmem:[%s778 + $0x18] sm:$0xff]
  %v783 = vld [vmem:[%s778 + $0x20] sm:$0xff]
  %v784 = vld [vmem:[%s778 + $0x28] sm:$0xff]
  %v785 = vld [vmem:[%s778 + $0x30] sm:$0xff]
  %v786 = vld [vmem:[%s778 + $0x38] sm:$0xff]
  %v787 = vld [vmem:[%s778 + $0x40] sm:$0xff]
  %v788 = vld [vmem:[%s778 + $0x48] sm:$0xff]
  %v789 = vld [vmem:[%s778 + $0x50] sm:$0xff]
  %v790 = vld [vmem:[%s778 + $0x58] sm:$0xff]
  %v791 = vld [vmem:[%s778 + $0x60] sm:$0xff]
  %v792 = vld [vmem:[%s778 + $0x68] sm:$0xff]
  %v793 = vld [vmem:[%s778 + $0x70] sm:$0xff]
  %v794 = vld [vmem:[%s778 + $0x78] sm:$0xff]
  %v795 = vld [vmem:[%s778 + $0x80] sm:$0xff]
  %v796 = vld [vmem:[%s778 + $0x88] sm:$0xff]
  %v797 = vld [vmem:[%s778 + $0x90] sm:$0xff]
  %v798 = vld [vmem:[%s778 + $0x98] sm:$0xff]
  %v799 = vld [vmem:[%s778 + $0xa0] sm:$0xff]
  %v800 = vrot.slane %v480, 3
  %v801 = vrot.slane %v481, 3
  %v803 = vsel %vm506, %v801, 0
  %805 = vmatprep.subr.mxu0 0.0
  %806 = vmatpush1.msra.mxu0 %v794
  %807 = vmatprep.subr.mxu0 0.0
  %808 = vmatpush1.msra.mxu0 %v793
  %809 = vmatprep.subr.mxu0 0.0
  %810 = vmatpush1.msra.mxu0 %v792
  %811 = vmatprep.subr.mxu0 0.0
  %812 = vmatpush1.msra.mxu0 %v791
  %813 = vmatprep.subr.mxu0 0.0
  %814 = vmatpush1.msra.mxu0 %v790
  %815 = vmatprep.subr.mxu0 0.0
  %816 = vmatpush1.msra.mxu0 %v789
  %817 = vmatprep.subr.mxu0 0.0
  %818 = vmatpush1.msra.mxu0 %v788
  %819 = vmatprep.subr.mxu0 0.0
  %820 = vmatpush1.msra.mxu0 %v787
  %821 = vmatprep.subr.mxu0 0.0
  %822 = vmatpush1.msra.mxu0 %v786
  %823 = vmatprep.subr.mxu0 0.0
  %824 = vmatpush1.msra.mxu0 %v785
  %825 = vmatprep.subr.mxu0 0.0
  %826 = vmatpush1.msra.mxu0 %v784
  %827 = vmatprep.subr.mxu0 0.0
  %828 = vmatpush1.msra.mxu0 %v783
  %829 = vmatprep.subr.mxu0 0.0
  %830 = vmatpush1.msra.mxu0 %v782
  %831 = vmatprep.subr.mxu0 0.0
  %832 = vmatpush1.msra.mxu0 %v781
  %833 = vmatprep.subr.mxu0 0.0
  %834 = vmatpush1.msra.mxu0 %v780
  %835 = vmatprep.subr.mxu0 0.0
  %836 = vmatpush1.msra.mxu0 %v779
  %837 = vmatprep.subr.mxu0 0.0
  %838 = vmatpush2.msra.mxu0 0.0
  %839 = vmatprep.subr.mxu0 0.0
  %840 = vmatpush2.msra.mxu0 0.0
  %841 = vmatprep.subr.mxu0 0.0
  %842 = vmatpush2.msra.mxu0 0.0
  %843 = vmatprep.subr.mxu0 0.0
  %844 = vmatpush2.msra.mxu0 0.0
  %845 = vmatprep.subr.mxu0 0.0
  %846 = vmatpush2.msra.mxu0 0.0
  %847 = vmatprep.subr.mxu0 0.0
  %848 = vmatpush2.msra.mxu0 0.0
  %849 = vmatprep.subr.mxu0 0.0
  %850 = vmatpush2.msra.mxu0 0.0
  %851 = vmatprep.subr.mxu0 0.0
  %852 = vmatpush2.msra.mxu0 0.0
  %853 = vmatprep.subr.mxu0 0.0
  %854 = vmatpush2.msra.mxu0 0.0
  %855 = vmatprep.subr.mxu0 0.0
  %856 = vmatpush2.msra.mxu0 0.0
  %857 = vmatprep.subr.mxu0 0.0
  %858 = vmatpush2.msra.mxu0 0.0
  %859 = vmatprep.subr.mxu0 0.0
  %860 = vmatpush2.msra.mxu0 %v799
  %861 = vmatprep.subr.mxu0 0.0
  %862 = vmatpush2.msra.mxu0 %v798
  %863 = vmatprep.subr.mxu0 0.0
  %864 = vmatpush2.msra.mxu0 %v797
  %865 = vmatprep.subr.mxu0 0.0
  %866 = vmatpush2.msra.mxu0 %v796
  %867 = vmatprep.subr.mxu0 0.0
  %868 = vmatpush2.msra.mxu0 %v795
  %869 = vmatprep.mubr.f32.mxu0 %v803
  %870 = vmatmul.mubr.f32.gmra.mxu0 %v800
  %v871 = vpop.f32.mrf.mxu0
  %v872 = vadd.f32 0.0, %v871
  %v873 = vpop.f32.mrf.mxu0
  %874 = vdwg.mxu0
  %v875 = vadd.f32 %v777, %v872
  %s876 = scalar_lea.vmem %s5, 672
  %v877 = vld [vmem:[%s876] sm:$0xff]
  %v878 = vld [vmem:[%s876 + $0x8] sm:$0xff]
  %v879 = vld [vmem:[%s876 + $0x10] sm:$0xff]
  %v880 = vld [vmem:[%s876 + $0x18] sm:$0xff]
  %v881 = vld [vmem:[%s876 + $0x20] sm:$0xff]
  %v882 = vld [vmem:[%s876 + $0x28] sm:$0xff]
  %v883 = vld [vmem:[%s876 + $0x30] sm:$0xff]
  %v884 = vld [vmem:[%s876 + $0x38] sm:$0xff]
  %v885 = vld [vmem:[%s876 + $0x40] sm:$0xff]
  %v886 = vld [vmem:[%s876 + $0x48] sm:$0xff]
  %v887 = vld [vmem:[%s876 + $0x50] sm:$0xff]
  %v888 = vld [vmem:[%s876 + $0x58] sm:$0xff]
  %v889 = vld [vmem:[%s876 + $0x60] sm:$0xff]
  %v890 = vld [vmem:[%s876 + $0x68] sm:$0xff]
  %v891 = vld [vmem:[%s876 + $0x70] sm:$0xff]
  %v892 = vld [vmem:[%s876 + $0x78] sm:$0xff]
  %v893 = vld [vmem:[%s876 + $0x80] sm:$0xff]
  %v894 = vld [vmem:[%s876 + $0x88] sm:$0xff]
  %v895 = vld [vmem:[%s876 + $0x90] sm:$0xff]
  %v896 = vld [vmem:[%s876 + $0x98] sm:$0xff]
  %v897 = vld [vmem:[%s876 + $0xa0] sm:$0xff]
  %v898 = vrot.slane %v480, 4
  %v899 = vrot.slane %v481, 4
  %v901 = vsel %vm506, %v899, 0
  %903 = vmatprep.subr.mxu0 0.0
  %904 = vmatpush1.msra.mxu0 %v892
  %905 = vmatprep.subr.mxu0 0.0
  %906 = vmatpush1.msra.mxu0 %v891
  %907 = vmatprep.subr.mxu0 0.0
  %908 = vmatpush1.msra.mxu0 %v890
  %909 = vmatprep.subr.mxu0 0.0
  %910 = vmatpush1.msra.mxu0 %v889
  %911 = vmatprep.subr.mxu0 0.0
  %912 = vmatpush1.msra.mxu0 %v888
  %913 = vmatprep.subr.mxu0 0.0
  %914 = vmatpush1.msra.mxu0 %v887
  %915 = vmatprep.subr.mxu0 0.0
  %916 = vmatpush1.msra.mxu0 %v886
  %917 = vmatprep.subr.mxu0 0.0
  %918 = vmatpush1.msra.mxu0 %v885
  %919 = vmatprep.subr.mxu0 0.0
  %920 = vmatpush1.msra.mxu0 %v884
  %921 = vmatprep.subr.mxu0 0.0
  %922 = vmatpush1.msra.mxu0 %v883
  %923 = vmatprep.subr.mxu0 0.0
  %924 = vmatpush1.msra.mxu0 %v882
  %925 = vmatprep.subr.mxu0 0.0
  %926 = vmatpush1.msra.mxu0 %v881
  %927 = vmatprep.subr.mxu0 0.0
  %928 = vmatpush1.msra.mxu0 %v880
  %929 = vmatprep.subr.mxu0 0.0
  %930 = vmatpush1.msra.mxu0 %v879
  %931 = vmatprep.subr.mxu0 0.0
  %932 = vmatpush1.msra.mxu0 %v878
  %933 = vmatprep.subr.mxu0 0.0
  %934 = vmatpush1.msra.mxu0 %v877
  %935 = vmatprep.subr.mxu0 0.0
  %936 = vmatpush2.msra.mxu0 0.0
  %937 = vmatprep.subr.mxu0 0.0
  %938 = vmatpush2.msra.mxu0 0.0
  %939 = vmatprep.subr.mxu0 0.0
  %940 = vmatpush2.msra.mxu0 0.0
  %941 = vmatprep.subr.mxu0 0.0
  %942 = vmatpush2.msra.mxu0 0.0
  %943 = vmatprep.subr.mxu0 0.0
  %944 = vmatpush2.msra.mxu0 0.0
  %945 = vmatprep.subr.mxu0 0.0
  %946 = vmatpush2.msra.mxu0 0.0
  %947 = vmatprep.subr.mxu0 0.0
  %948 = vmatpush2.msra.mxu0 0.0
  %949 = vmatprep.subr.mxu0 0.0
  %950 = vmatpush2.msra.mxu0 0.0
  %951 = vmatprep.subr.mxu0 0.0
  %952 = vmatpush2.msra.mxu0 0.0
  %953 = vmatprep.subr.mxu0 0.0
  %954 = vmatpush2.msra.mxu0 0.0
  %955 = vmatprep.subr.mxu0 0.0
  %956 = vmatpush2.msra.mxu0 0.0
  %957 = vmatprep.subr.mxu0 0.0
  %958 = vmatpush2.msra.mxu0 %v897
  %959 = vmatprep.subr.mxu0 0.0
  %960 = vmatpush2.msra.mxu0 %v896
  %961 = vmatprep.subr.mxu0 0.0
  %962 = vmatpush2.msra.mxu0 %v895
  %963 = vmatprep.subr.mxu0 0.0
  %964 = vmatpush2.msra.mxu0 %v894
  %965 = vmatprep.subr.mxu0 0.0
  %966 = vmatpush2.msra.mxu0 %v893
  %967 = vmatprep.mubr.f32.mxu0 %v901
  %968 = vmatmul.mubr.f32.gmra.mxu0 %v898
  %v969 = vpop.f32.mrf.mxu0
  %v970 = vadd.f32 0.0, %v969
  %v971 = vpop.f32.mrf.mxu0
  %972 = vdwg.mxu0
  %v973 = vadd.f32 %v875, %v970
  %s974 = scalar_lea.vmem %s5, 840
  %v975 = vld [vmem:[%s974] sm:$0xff]
  %v976 = vld [vmem:[%s974 + $0x8] sm:$0xff]
  %v977 = vld [vmem:[%s974 + $0x10] sm:$0xff]
  %v978 = vld [vmem:[%s974 + $0x18] sm:$0xff]
  %v979 = vld [vmem:[%s974 + $0x20] sm:$0xff]
  %v980 = vld [vmem:[%s974 + $0x28] sm:$0xff]
  %v981 = vld [vmem:[%s974 + $0x30] sm:$0xff]
  %v982 = vld [vmem:[%s974 + $0x38] sm:$0xff]
  %v983 = vld [vmem:[%s974 + $0x40] sm:$0xff]
  %v984 = vld [vmem:[%s974 + $0x48] sm:$0xff]
  %v985 = vld [vmem:[%s974 + $0x50] sm:$0xff]
  %v986 = vld [vmem:[%s974 + $0x58] sm:$0xff]
  %v987 = vld [vmem:[%s974 + $0x60] sm:$0xff]
  %v988 = vld [vmem:[%s974 + $0x68] sm:$0xff]
  %v989 = vld [vmem:[%s974 + $0x70] sm:$0xff]
  %v990 = vld [vmem:[%s974 + $0x78] sm:$0xff]
  %v991 = vld [vmem:[%s974 + $0x80] sm:$0xff]
  %v992 = vld [vmem:[%s974 + $0x88] sm:$0xff]
  %v993 = vld [vmem:[%s974 + $0x90] sm:$0xff]
  %v994 = vld [vmem:[%s974 + $0x98] sm:$0xff]
  %v995 = vld [vmem:[%s974 + $0xa0] sm:$0xff]
  %v996 = vrot.slane %v480, 5
  %v997 = vrot.slane %v481, 5
  %v999 = vsel %vm506, %v997, 0
  %1001 = vmatprep.subr.mxu0 0.0
  %1002 = vmatpush1.msra.mxu0 %v990
  %1003 = vmatprep.subr.mxu0 0.0
  %1004 = vmatpush1.msra.mxu0 %v989
  %1005 = vmatprep.subr.mxu0 0.0
  %1006 = vmatpush1.msra.mxu0 %v988
  %1007 = vmatprep.subr.mxu0 0.0
  %1008 = vmatpush1.msra.mxu0 %v987
  %1009 = vmatprep.subr.mxu0 0.0
  %1010 = vmatpush1.msra.mxu0 %v986
  %1011 = vmatprep.subr.mxu0 0.0
  %1012 = vmatpush1.msra.mxu0 %v985
  %1013 = vmatprep.subr.mxu0 0.0
  %1014 = vmatpush1.msra.mxu0 %v984
  %1015 = vmatprep.subr.mxu0 0.0
  %1016 = vmatpush1.msra.mxu0 %v983
  %1017 = vmatprep.subr.mxu0 0.0
  %1018 = vmatpush1.msra.mxu0 %v982
  %1019 = vmatprep.subr.mxu0 0.0
  %1020 = vmatpush1.msra.mxu0 %v981
  %1021 = vmatprep.subr.mxu0 0.0
  %1022 = vmatpush1.msra.mxu0 %v980
  %1023 = vmatprep.subr.mxu0 0.0
  %1024 = vmatpush1.msra.mxu0 %v979
  %1025 = vmatprep.subr.mxu0 0.0
  %1026 = vmatpush1.msra.mxu0 %v978
  %1027 = vmatprep.subr.mxu0 0.0
  %1028 = vmatpush1.msra.mxu0 %v977
  %1029 = vmatprep.subr.mxu0 0.0
  %1030 = vmatpush1.msra.mxu0 %v976
  %1031 = vmatprep.subr.mxu0 0.0
  %1032 = vmatpush1.msra.mxu0 %v975
  %1033 = vmatprep.subr.mxu0 0.0
  %1034 = vmatpush2.msra.mxu0 0.0
  %1035 = vmatprep.subr.mxu0 0.0
  %1036 = vmatpush2.msra.mxu0 0.0
  %1037 = vmatprep.subr.mxu0 0.0
  %1038 = vmatpush2.msra.mxu0 0.0
  %1039 = vmatprep.subr.mxu0 0.0
  %1040 = vmatpush2.msra.mxu0 0.0
  %1041 = vmatprep.subr.mxu0 0.0
  %1042 = vmatpush2.msra.mxu0 0.0
  %1043 = vmatprep.subr.mxu0 0.0
  %1044 = vmatpush2.msra.mxu0 0.0
  %1045 = vmatprep.subr.mxu0 0.0
  %1046 = vmatpush2.msra.mxu0 0.0
  %1047 = vmatprep.subr.mxu0 0.0
  %1048 = vmatpush2.msra.mxu0 0.0
  %1049 = vmatprep.subr.mxu0 0.0
  %1050 = vmatpush2.msra.mxu0 0.0
  %1051 = vmatprep.subr.mxu0 0.0
  %1052 = vmatpush2.msra.mxu0 0.0
  %1053 = vmatprep.subr.mxu0 0.0
  %1054 = vmatpush2.msra.mxu0 0.0
  %1055 = vmatprep.subr.mxu0 0.0
  %1056 = vmatpush2.msra.mxu0 %v995
  %1057 = vmatprep.subr.mxu0 0.0
  %1058 = vmatpush2.msra.mxu0 %v994
  %1059 = vmatprep.subr.mxu0 0.0
  %1060 = vmatpush2.msra.mxu0 %v993
  %1061 = vmatprep.subr.mxu0 0.0
  %1062 = vmatpush2.msra.mxu0 %v992
  %1063 = vmatprep.subr.mxu0 0.0
  %1064 = vmatpush2.msra.mxu0 %v991
  %1065 = vmatprep.mubr.f32.mxu0 %v999
  %1066 = vmatmul.mubr.f32.gmra.mxu0 %v996
  %v1067 = vpop.f32.mrf.mxu0
  %v1068 = vadd.f32 0.0, %v1067
  %v1069 = vpop.f32.mrf.mxu0
  %1070 = vdwg.mxu0
  %v1071 = vadd.f32 %v973, %v1068
  %s1072 = scalar_lea.vmem %s5, 1008
  %v1073 = vld [vmem:[%s1072] sm:$0xff]
  %v1074 = vld [vmem:[%s1072 + $0x8] sm:$0xff]
  %v1075 = vld [vmem:[%s1072 + $0x10] sm:$0xff]
  %v1076 = vld [vmem:[%s1072 + $0x18] sm:$0xff]
  %v1077 = vld [vmem:[%s1072 + $0x20] sm:$0xff]
  %v1078 = vld [vmem:[%s1072 + $0x28] sm:$0xff]
  %v1079 = vld [vmem:[%s1072 + $0x30] sm:$0xff]
  %v1080 = vld [vmem:[%s1072 + $0x38] sm:$0xff]
  %v1081 = vld [vmem:[%s1072 + $0x40] sm:$0xff]
  %v1082 = vld [vmem:[%s1072 + $0x48] sm:$0xff]
  %v1083 = vld [vmem:[%s1072 + $0x50] sm:$0xff]
  %v1084 = vld [vmem:[%s1072 + $0x58] sm:$0xff]
  %v1085 = vld [vmem:[%s1072 + $0x60] sm:$0xff]
  %v1086 = vld [vmem:[%s1072 + $0x68] sm:$0xff]
  %v1087 = vld [vmem:[%s1072 + $0x70] sm:$0xff]
  %v1088 = vld [vmem:[%s1072 + $0x78] sm:$0xff]
  %v1089 = vld [vmem:[%s1072 + $0x80] sm:$0xff]
  %v1090 = vld [vmem:[%s1072 + $0x88] sm:$0xff]
  %v1091 = vld [vmem:[%s1072 + $0x90] sm:$0xff]
  %v1092 = vld [vmem:[%s1072 + $0x98] sm:$0xff]
  %v1093 = vld [vmem:[%s1072 + $0xa0] sm:$0xff]
  %v1094 = vrot.slane %v480, 6
  %v1095 = vrot.slane %v481, 6
  %v1097 = vsel %vm506, %v1095, 0
  %1099 = vmatprep.subr.mxu0 0.0
  %1100 = vmatpush1.msra.mxu0 %v1088
  %1101 = vmatprep.subr.mxu0 0.0
  %1102 = vmatpush1.msra.mxu0 %v1087
  %1103 = vmatprep.subr.mxu0 0.0
  %1104 = vmatpush1.msra.mxu0 %v1086
  %1105 = vmatprep.subr.mxu0 0.0
  %1106 = vmatpush1.msra.mxu0 %v1085
  %1107 = vmatprep.subr.mxu0 0.0
  %1108 = vmatpush1.msra.mxu0 %v1084
  %1109 = vmatprep.subr.mxu0 0.0
  %1110 = vmatpush1.msra.mxu0 %v1083
  %1111 = vmatprep.subr.mxu0 0.0
  %1112 = vmatpush1.msra.mxu0 %v1082
  %1113 = vmatprep.subr.mxu0 0.0
  %1114 = vmatpush1.msra.mxu0 %v1081
  %1115 = vmatprep.subr.mxu0 0.0
  %1116 = vmatpush1.msra.mxu0 %v1080
  %1117 = vmatprep.subr.mxu0 0.0
  %1118 = vmatpush1.msra.mxu0 %v1079
  %1119 = vmatprep.subr.mxu0 0.0
  %1120 = vmatpush1.msra.mxu0 %v1078
  %1121 = vmatprep.subr.mxu0 0.0
  %1122 = vmatpush1.msra.mxu0 %v1077
  %1123 = vmatprep.subr.mxu0 0.0
  %1124 = vmatpush1.msra.mxu0 %v1076
  %1125 = vmatprep.subr.mxu0 0.0
  %1126 = vmatpush1.msra.mxu0 %v1075
  %1127 = vmatprep.subr.mxu0 0.0
  %1128 = vmatpush1.msra.mxu0 %v1074
  %1129 = vmatprep.subr.mxu0 0.0
  %1130 = vmatpush1.msra.mxu0 %v1073
  %1131 = vmatprep.subr.mxu0 0.0
  %1132 = vmatpush2.msra.mxu0 0.0
  %1133 = vmatprep.subr.mxu0 0.0
  %1134 = vmatpush2.msra.mxu0 0.0
  %1135 = vmatprep.subr.mxu0 0.0
  %1136 = vmatpush2.msra.mxu0 0.0
  %1137 = vmatprep.subr.mxu0 0.0
  %1138 = vmatpush2.msra.mxu0 0.0
  %1139 = vmatprep.subr.mxu0 0.0
  %1140 = vmatpush2.msra.mxu0 0.0
  %1141 = vmatprep.subr.mxu0 0.0
  %1142 = vmatpush2.msra.mxu0 0.0
  %1143 = vmatprep.subr.mxu0 0.0
  %1144 = vmatpush2.msra.mxu0 0.0
  %1145 = vmatprep.subr.mxu0 0.0
  %1146 = vmatpush2.msra.mxu0 0.0
  %1147 = vmatprep.subr.mxu0 0.0
  %1148 = vmatpush2.msra.mxu0 0.0
  %1149 = vmatprep.subr.mxu0 0.0
  %1150 = vmatpush2.msra.mxu0 0.0
  %1151 = vmatprep.subr.mxu0 0.0
  %1152 = vmatpush2.msra.mxu0 0.0
  %1153 = vmatprep.subr.mxu0 0.0
  %1154 = vmatpush2.msra.mxu0 %v1093
  %1155 = vmatprep.subr.mxu0 0.0
  %1156 = vmatpush2.msra.mxu0 %v1092
  %1157 = vmatprep.subr.mxu0 0.0
  %1158 = vmatpush2.msra.mxu0 %v1091
  %1159 = vmatprep.subr.mxu0 0.0
  %1160 = vmatpush2.msra.mxu0 %v1090
  %1161 = vmatprep.subr.mxu0 0.0
  %1162 = vmatpush2.msra.mxu0 %v1089
  %1163 = vmatprep.mubr.f32.mxu0 %v1097
  %1164 = vmatmul.mubr.f32.gmra.mxu0 %v1094
  %v1165 = vpop.f32.mrf.mxu0
  %v1166 = vadd.f32 0.0, %v1165
  %v1167 = vpop.f32.mrf.mxu0
  %1168 = vdwg.mxu0
  %v1169 = vadd.f32 %v1071, %v1166
  %s1170 = scalar_lea.vmem %s5, 1176
  %v1171 = vld [vmem:[%s1170] sm:$0xff]
  %v1172 = vld [vmem:[%s1170 + $0x8] sm:$0xff]
  %v1173 = vld [vmem:[%s1170 + $0x10] sm:$0xff]
  %v1174 = vld [vmem:[%s1170 + $0x18] sm:$0xff]
  %v1175 = vld [vmem:[%s1170 + $0x20] sm:$0xff]
  %v1176 = vld [vmem:[%s1170 + $0x28] sm:$0xff]
  %v1177 = vld [vmem:[%s1170 + $0x30] sm:$0xff]
  %v1178 = vld [vmem:[%s1170 + $0x38] sm:$0xff]
  %v1179 = vld [vmem:[%s1170 + $0x40] sm:$0xff]
  %v1180 = vld [vmem:[%s1170 + $0x48] sm:$0xff]
  %v1181 = vld [vmem:[%s1170 + $0x50] sm:$0xff]
  %v1182 = vld [vmem:[%s1170 + $0x58] sm:$0xff]
  %v1183 = vld [vmem:[%s1170 + $0x60] sm:$0xff]
  %v1184 = vld [vmem:[%s1170 + $0x68] sm:$0xff]
  %v1185 = vld [vmem:[%s1170 + $0x70] sm:$0xff]
  %v1186 = vld [vmem:[%s1170 + $0x78] sm:$0xff]
  %v1187 = vld [vmem:[%s1170 + $0x80] sm:$0xff]
  %v1188 = vld [vmem:[%s1170 + $0x88] sm:$0xff]
  %v1189 = vld [vmem:[%s1170 + $0x90] sm:$0xff]
  %v1190 = vld [vmem:[%s1170 + $0x98] sm:$0xff]
  %v1191 = vld [vmem:[%s1170 + $0xa0] sm:$0xff]
  %v1192 = vrot.slane %v480, 7
  %v1193 = vrot.slane %v481, 7
  %v1195 = vsel %vm506, %v1193, 0
  %1197 = vmatprep.subr.mxu0 0.0
  %1198 = vmatpush1.msra.mxu0 %v1186
  %1199 = vmatprep.subr.mxu0 0.0
  %1200 = vmatpush1.msra.mxu0 %v1185
  %1201 = vmatprep.subr.mxu0 0.0
  %1202 = vmatpush1.msra.mxu0 %v1184
  %1203 = vmatprep.subr.mxu0 0.0
  %1204 = vmatpush1.msra.mxu0 %v1183
  %1205 = vmatprep.subr.mxu0 0.0
  %1206 = vmatpush1.msra.mxu0 %v1182
  %1207 = vmatprep.subr.mxu0 0.0
  %1208 = vmatpush1.msra.mxu0 %v1181
  %1209 = vmatprep.subr.mxu0 0.0
  %1210 = vmatpush1.msra.mxu0 %v1180
  %1211 = vmatprep.subr.mxu0 0.0
  %1212 = vmatpush1.msra.mxu0 %v1179
  %1213 = vmatprep.subr.mxu0 0.0
  %1214 = vmatpush1.msra.mxu0 %v1178
  %1215 = vmatprep.subr.mxu0 0.0
  %1216 = vmatpush1.msra.mxu0 %v1177
  %1217 = vmatprep.subr.mxu0 0.0
  %1218 = vmatpush1.msra.mxu0 %v1176
  %1219 = vmatprep.subr.mxu0 0.0
  %1220 = vmatpush1.msra.mxu0 %v1175
  %1221 = vmatprep.subr.mxu0 0.0
  %1222 = vmatpush1.msra.mxu0 %v1174
  %1223 = vmatprep.subr.mxu0 0.0
  %1224 = vmatpush1.msra.mxu0 %v1173
  %1225 = vmatprep.subr.mxu0 0.0
  %1226 = vmatpush1.msra.mxu0 %v1172
  %1227 = vmatprep.subr.mxu0 0.0
  %1228 = vmatpush1.msra.mxu0 %v1171
  %1229 = vmatprep.subr.mxu0 0.0
  %1230 = vmatpush2.msra.mxu0 0.0
  %1231 = vmatprep.subr.mxu0 0.0
  %1232 = vmatpush2.msra.mxu0 0.0
  %1233 = vmatprep.subr.mxu0 0.0
  %1234 = vmatpush2.msra.mxu0 0.0
  %1235 = vmatprep.subr.mxu0 0.0
  %1236 = vmatpush2.msra.mxu0 0.0
  %1237 = vmatprep.subr.mxu0 0.0
  %1238 = vmatpush2.msra.mxu0 0.0
  %1239 = vmatprep.subr.mxu0 0.0
  %1240 = vmatpush2.msra.mxu0 0.0
  %1241 = vmatprep.subr.mxu0 0.0
  %1242 = vmatpush2.msra.mxu0 0.0
  %1243 = vmatprep.subr.mxu0 0.0
  %1244 = vmatpush2.msra.mxu0 0.0
  %1245 = vmatprep.subr.mxu0 0.0
  %1246 = vmatpush2.msra.mxu0 0.0
  %1247 = vmatprep.subr.mxu0 0.0
  %1248 = vmatpush2.msra.mxu0 0.0
  %1249 = vmatprep.subr.mxu0 0.0
  %1250 = vmatpush2.msra.mxu0 0.0
  %1251 = vmatprep.subr.mxu0 0.0
  %1252 = vmatpush2.msra.mxu0 %v1191
  %1253 = vmatprep.subr.mxu0 0.0
  %1254 = vmatpush2.msra.mxu0 %v1190
  %1255 = vmatprep.subr.mxu0 0.0
  %1256 = vmatpush2.msra.mxu0 %v1189
  %1257 = vmatprep.subr.mxu0 0.0
  %1258 = vmatpush2.msra.mxu0 %v1188
  %1259 = vmatprep.subr.mxu0 0.0
  %1260 = vmatpush2.msra.mxu0 %v1187
  %1261 = vmatprep.mubr.f32.mxu0 %v1195
  %1262 = vmatmul.mubr.f32.gmra.mxu0 %v1192
  %v1263 = vpop.f32.mrf.mxu0
  %v1264 = vadd.f32 0.0, %v1263
  %v1265 = vpop.f32.mrf.mxu0
  %1266 = vdwg.mxu0
  %v1267 = vadd.f32 %v1169, %v1264
  %s1268 = scalar_lea.vmem %s5, 1344
  %v1269 = vld [vmem:[%s1268] sm:$0xff]
  %v1270 = vld [vmem:[%s1268 + $0x8] sm:$0xff]
  %v1271 = vld [vmem:[%s1268 + $0x10] sm:$0xff]
  %v1272 = vld [vmem:[%s1268 + $0x18] sm:$0xff]
  %v1273 = vld [vmem:[%s1268 + $0x20] sm:$0xff]
  %v1274 = vld [vmem:[%s1268 + $0x28] sm:$0xff]
  %v1275 = vld [vmem:[%s1268 + $0x30] sm:$0xff]
  %v1276 = vld [vmem:[%s1268 + $0x38] sm:$0xff]
  %v1277 = vld [vmem:[%s1268 + $0x40] sm:$0xff]
  %v1278 = vld [vmem:[%s1268 + $0x48] sm:$0xff]
  %v1279 = vld [vmem:[%s1268 + $0x50] sm:$0xff]
  %v1280 = vld [vmem:[%s1268 + $0x58] sm:$0xff]
  %v1281 = vld [vmem:[%s1268 + $0x60] sm:$0xff]
  %v1282 = vld [vmem:[%s1268 + $0x68] sm:$0xff]
  %v1283 = vld [vmem:[%s1268 + $0x70] sm:$0xff]
  %v1284 = vld [vmem:[%s1268 + $0x78] sm:$0xff]
  %v1285 = vld [vmem:[%s1268 + $0x80] sm:$0xff]
  %v1286 = vld [vmem:[%s1268 + $0x88] sm:$0xff]
  %v1287 = vld [vmem:[%s1268 + $0x90] sm:$0xff]
  %v1288 = vld [vmem:[%s1268 + $0x98] sm:$0xff]
  %v1289 = vld [vmem:[%s1268 + $0xa0] sm:$0xff]
  %v1291 = vsel %vm506, %v483, 0
  %1293 = vmatprep.subr.mxu0 0.0
  %1294 = vmatpush1.msra.mxu0 %v1284
  %1295 = vmatprep.subr.mxu0 0.0
  %1296 = vmatpush1.msra.mxu0 %v1283
  %1297 = vmatprep.subr.mxu0 0.0
  %1298 = vmatpush1.msra.mxu0 %v1282
  %1299 = vmatprep.subr.mxu0 0.0
  %1300 = vmatpush1.msra.mxu0 %v1281
  %1301 = vmatprep.subr.mxu0 0.0
  %1302 = vmatpush1.msra.mxu0 %v1280
  %1303 = vmatprep.subr.mxu0 0.0
  %1304 = vmatpush1.msra.mxu0 %v1279
  %1305 = vmatprep.subr.mxu0 0.0
  %1306 = vmatpush1.msra.mxu0 %v1278
  %1307 = vmatprep.subr.mxu0 0.0
  %1308 = vmatpush1.msra.mxu0 %v1277
  %1309 = vmatprep.subr.mxu0 0.0
  %1310 = vmatpush1.msra.mxu0 %v1276
  %1311 = vmatprep.subr.mxu0 0.0
  %1312 = vmatpush1.msra.mxu0 %v1275
  %1313 = vmatprep.subr.mxu0 0.0
  %1314 = vmatpush1.msra.mxu0 %v1274
  %1315 = vmatprep.subr.mxu0 0.0
  %1316 = vmatpush1.msra.mxu0 %v1273
  %1317 = vmatprep.subr.mxu0 0.0
  %1318 = vmatpush1.msra.mxu0 %v1272
  %1319 = vmatprep.subr.mxu0 0.0
  %1320 = vmatpush1.msra.mxu0 %v1271
  %1321 = vmatprep.subr.mxu0 0.0
  %1322 = vmatpush1.msra.mxu0 %v1270
  %1323 = vmatprep.subr.mxu0 0.0
  %1324 = vmatpush1.msra.mxu0 %v1269
  %1325 = vmatprep.subr.mxu0 0.0
  %1326 = vmatpush2.msra.mxu0 0.0
  %1327 = vmatprep.subr.mxu0 0.0
  %1328 = vmatpush2.msra.mxu0 0.0
  %1329 = vmatprep.subr.mxu0 0.0
  %1330 = vmatpush2.msra.mxu0 0.0
  %1331 = vmatprep.subr.mxu0 0.0
  %1332 = vmatpush2.msra.mxu0 0.0
  %1333 = vmatprep.subr.mxu0 0.0
  %1334 = vmatpush2.msra.mxu0 0.0
  %1335 = vmatprep.subr.mxu0 0.0
  %1336 = vmatpush2.msra.mxu0 0.0
  %1337 = vmatprep.subr.mxu0 0.0
  %1338 = vmatpush2.msra.mxu0 0.0
  %1339 = vmatprep.subr.mxu0 0.0
  %1340 = vmatpush2.msra.mxu0 0.0
  %1341 = vmatprep.subr.mxu0 0.0
  %1342 = vmatpush2.msra.mxu0 0.0
  %1343 = vmatprep.subr.mxu0 0.0
  %1344 = vmatpush2.msra.mxu0 0.0
  %1345 = vmatprep.subr.mxu0 0.0
  %1346 = vmatpush2.msra.mxu0 0.0
  %1347 = vmatprep.subr.mxu0 0.0
  %1348 = vmatpush2.msra.mxu0 %v1289
  %1349 = vmatprep.subr.mxu0 0.0
  %1350 = vmatpush2.msra.mxu0 %v1288
  %1351 = vmatprep.subr.mxu0 0.0
  %1352 = vmatpush2.msra.mxu0 %v1287
  %1353 = vmatprep.subr.mxu0 0.0
  %1354 = vmatpush2.msra.mxu0 %v1286
  %1355 = vmatprep.subr.mxu0 0.0
  %1356 = vmatpush2.msra.mxu0 %v1285
  %1357 = vmatprep.mubr.f32.mxu0 %v1291
  %1358 = vmatmul.mubr.f32.gmra.mxu0 %v482
  %v1359 = vpop.f32.mrf.mxu0
  %v1360 = vadd.f32 0.0, %v1359
  %v1361 = vpop.f32.mrf.mxu0
  %1362 = vdwg.mxu0
  %v1363 = vadd.f32 %v1267, %v1360
  %s1364 = scalar_lea.vmem %s5, 1512
  %v1365 = vld [vmem:[%s1364] sm:$0xff]
  %v1366 = vld [vmem:[%s1364 + $0x8] sm:$0xff]
  %v1367 = vld [vmem:[%s1364 + $0x10] sm:$0xff]
  %v1368 = vld [vmem:[%s1364 + $0x18] sm:$0xff]
  %v1369 = vld [vmem:[%s1364 + $0x20] sm:$0xff]
  %v1370 = vld [vmem:[%s1364 + $0x28] sm:$0xff]
  %v1371 = vld [vmem:[%s1364 + $0x30] sm:$0xff]
  %v1372 = vld [vmem:[%s1364 + $0x38] sm:$0xff]
  %v1373 = vld [vmem:[%s1364 + $0x40] sm:$0xff]
  %v1374 = vld [vmem:[%s1364 + $0x48] sm:$0xff]
  %v1375 = vld [vmem:[%s1364 + $0x50] sm:$0xff]
  %v1376 = vld [vmem:[%s1364 + $0x58] sm:$0xff]
  %v1377 = vld [vmem:[%s1364 + $0x60] sm:$0xff]
  %v1378 = vld [vmem:[%s1364 + $0x68] sm:$0xff]
  %v1379 = vld [vmem:[%s1364 + $0x70] sm:$0xff]
  %v1380 = vld [vmem:[%s1364 + $0x78] sm:$0xff]
  %v1381 = vld [vmem:[%s1364 + $0x80] sm:$0xff]
  %v1382 = vld [vmem:[%s1364 + $0x88] sm:$0xff]
  %v1383 = vld [vmem:[%s1364 + $0x90] sm:$0xff]
  %v1384 = vld [vmem:[%s1364 + $0x98] sm:$0xff]
  %v1385 = vld [vmem:[%s1364 + $0xa0] sm:$0xff]
  %v1387 = vrot.slane %v482, 1
  %v1388 = vrot.slane %v483, 1
  %v1390 = vsel %vm506, %v1388, 0
  %1392 = vmatprep.subr.mxu0 0.0
  %1393 = vmatpush1.msra.mxu0 %v1380
  %1394 = vmatprep.subr.mxu0 0.0
  %1395 = vmatpush1.msra.mxu0 %v1379
  %1396 = vmatprep.subr.mxu0 0.0
  %1397 = vmatpush1.msra.mxu0 %v1378
  %1398 = vmatprep.subr.mxu0 0.0
  %1399 = vmatpush1.msra.mxu0 %v1377
  %1400 = vmatprep.subr.mxu0 0.0
  %1401 = vmatpush1.msra.mxu0 %v1376
  %1402 = vmatprep.subr.mxu0 0.0
  %1403 = vmatpush1.msra.mxu0 %v1375
  %1404 = vmatprep.subr.mxu0 0.0
  %1405 = vmatpush1.msra.mxu0 %v1374
  %1406 = vmatprep.subr.mxu0 0.0
  %1407 = vmatpush1.msra.mxu0 %v1373
  %1408 = vmatprep.subr.mxu0 0.0
  %1409 = vmatpush1.msra.mxu0 %v1372
  %1410 = vmatprep.subr.mxu0 0.0
  %1411 = vmatpush1.msra.mxu0 %v1371
  %1412 = vmatprep.subr.mxu0 0.0
  %1413 = vmatpush1.msra.mxu0 %v1370
  %1414 = vmatprep.subr.mxu0 0.0
  %1415 = vmatpush1.msra.mxu0 %v1369
  %1416 = vmatprep.subr.mxu0 0.0
  %1417 = vmatpush1.msra.mxu0 %v1368
  %1418 = vmatprep.subr.mxu0 0.0
  %1419 = vmatpush1.msra.mxu0 %v1367
  %1420 = vmatprep.subr.mxu0 0.0
  %1421 = vmatpush1.msra.mxu0 %v1366
  %1422 = vmatprep.subr.mxu0 0.0
  %1423 = vmatpush1.msra.mxu0 %v1365
  %1424 = vmatprep.subr.mxu0 0.0
  %1425 = vmatpush2.msra.mxu0 0.0
  %1426 = vmatprep.subr.mxu0 0.0
  %1427 = vmatpush2.msra.mxu0 0.0
  %1428 = vmatprep.subr.mxu0 0.0
  %1429 = vmatpush2.msra.mxu0 0.0
  %1430 = vmatprep.subr.mxu0 0.0
  %1431 = vmatpush2.msra.mxu0 0.0
  %1432 = vmatprep.subr.mxu0 0.0
  %1433 = vmatpush2.msra.mxu0 0.0
  %1434 = vmatprep.subr.mxu0 0.0
  %1435 = vmatpush2.msra.mxu0 0.0
  %1436 = vmatprep.subr.mxu0 0.0
  %1437 = vmatpush2.msra.mxu0 0.0
  %1438 = vmatprep.subr.mxu0 0.0
  %1439 = vmatpush2.msra.mxu0 0.0
  %1440 = vmatprep.subr.mxu0 0.0
  %1441 = vmatpush2.msra.mxu0 0.0
  %1442 = vmatprep.subr.mxu0 0.0
  %1443 = vmatpush2.msra.mxu0 0.0
  %1444 = vmatprep.subr.mxu0 0.0
  %1445 = vmatpush2.msra.mxu0 0.0
  %1446 = vmatprep.subr.mxu0 0.0
  %1447 = vmatpush2.msra.mxu0 %v1385
  %1448 = vmatprep.subr.mxu0 0.0
  %1449 = vmatpush2.msra.mxu0 %v1384
  %1450 = vmatprep.subr.mxu0 0.0
  %1451 = vmatpush2.msra.mxu0 %v1383
  %1452 = vmatprep.subr.mxu0 0.0
  %1453 = vmatpush2.msra.mxu0 %v1382
  %1454 = vmatprep.subr.mxu0 0.0
  %1455 = vmatpush2.msra.mxu0 %v1381
  %1456 = vmatprep.mubr.f32.mxu0 %v1390
  %1457 = vmatmul.mubr.f32.gmra.mxu0 %v1387
  %v1458 = vpop.f32.mrf.mxu0
  %v1459 = vadd.f32 0.0, %v1458
  %v1460 = vpop.f32.mrf.mxu0
  %1461 = vdwg.mxu0
  %v1462 = vadd.f32 %v1363, %v1459
  %s1463 = scalar_lea.vmem %s5, 1680
  %v1464 = vld [vmem:[%s1463] sm:$0xff]
  %v1465 = vld [vmem:[%s1463 + $0x8] sm:$0xff]
  %v1466 = vld [vmem:[%s1463 + $0x10] sm:$0xff]
  %v1467 = vld [vmem:[%s1463 + $0x18] sm:$0xff]
  %v1468 = vld [vmem:[%s1463 + $0x20] sm:$0xff]
  %v1469 = vld [vmem:[%s1463 + $0x28] sm:$0xff]
  %v1470 = vld [vmem:[%s1463 + $0x30] sm:$0xff]
  %v1471 = vld [vmem:[%s1463 + $0x38] sm:$0xff]
  %v1472 = vld [vmem:[%s1463 + $0x40] sm:$0xff]
  %v1473 = vld [vmem:[%s1463 + $0x48] sm:$0xff]
  %v1474 = vld [vmem:[%s1463 + $0x50] sm:$0xff]
  %v1475 = vld [vmem:[%s1463 + $0x58] sm:$0xff]
  %v1476 = vld [vmem:[%s1463 + $0x60] sm:$0xff]
  %v1477 = vld [vmem:[%s1463 + $0x68] sm:$0xff]
  %v1478 = vld [vmem:[%s1463 + $0x70] sm:$0xff]
  %v1479 = vld [vmem:[%s1463 + $0x78] sm:$0xff]
  %v1480 = vld [vmem:[%s1463 + $0x80] sm:$0xff]
  %v1481 = vld [vmem:[%s1463 + $0x88] sm:$0xff]
  %v1482 = vld [vmem:[%s1463 + $0x90] sm:$0xff]
  %v1483 = vld [vmem:[%s1463 + $0x98] sm:$0xff]
  %v1484 = vld [vmem:[%s1463 + $0xa0] sm:$0xff]
  %v1485 = vrot.slane %v482, 2
  %v1486 = vrot.slane %v483, 2
  %v1488 = vsel %vm506, %v1486, 0
  %1490 = vmatprep.subr.mxu0 0.0
  %1491 = vmatpush1.msra.mxu0 %v1479
  %1492 = vmatprep.subr.mxu0 0.0
  %1493 = vmatpush1.msra.mxu0 %v1478
  %1494 = vmatprep.subr.mxu0 0.0
  %1495 = vmatpush1.msra.mxu0 %v1477
  %1496 = vmatprep.subr.mxu0 0.0
  %1497 = vmatpush1.msra.mxu0 %v1476
  %1498 = vmatprep.subr.mxu0 0.0
  %1499 = vmatpush1.msra.mxu0 %v1475
  %1500 = vmatprep.subr.mxu0 0.0
  %1501 = vmatpush1.msra.mxu0 %v1474
  %1502 = vmatprep.subr.mxu0 0.0
  %1503 = vmatpush1.msra.mxu0 %v1473
  %1504 = vmatprep.subr.mxu0 0.0
  %1505 = vmatpush1.msra.mxu0 %v1472
  %1506 = vmatprep.subr.mxu0 0.0
  %1507 = vmatpush1.msra.mxu0 %v1471
  %1508 = vmatprep.subr.mxu0 0.0
  %1509 = vmatpush1.msra.mxu0 %v1470
  %1510 = vmatprep.subr.mxu0 0.0
  %1511 = vmatpush1.msra.mxu0 %v1469
  %1512 = vmatprep.subr.mxu0 0.0
  %1513 = vmatpush1.msra.mxu0 %v1468
  %1514 = vmatprep.subr.mxu0 0.0
  %1515 = vmatpush1.msra.mxu0 %v1467
  %1516 = vmatprep.subr.mxu0 0.0
  %1517 = vmatpush1.msra.mxu0 %v1466
  %1518 = vmatprep.subr.mxu0 0.0
  %1519 = vmatpush1.msra.mxu0 %v1465
  %1520 = vmatprep.subr.mxu0 0.0
  %1521 = vmatpush1.msra.mxu0 %v1464
  %1522 = vmatprep.subr.mxu0 0.0
  %1523 = vmatpush2.msra.mxu0 0.0
  %1524 = vmatprep.subr.mxu0 0.0
  %1525 = vmatpush2.msra.mxu0 0.0
  %1526 = vmatprep.subr.mxu0 0.0
  %1527 = vmatpush2.msra.mxu0 0.0
  %1528 = vmatprep.subr.mxu0 0.0
  %1529 = vmatpush2.msra.mxu0 0.0
  %1530 = vmatprep.subr.mxu0 0.0
  %1531 = vmatpush2.msra.mxu0 0.0
  %1532 = vmatprep.subr.mxu0 0.0
  %1533 = vmatpush2.msra.mxu0 0.0
  %1534 = vmatprep.subr.mxu0 0.0
  %1535 = vmatpush2.msra.mxu0 0.0
  %1536 = vmatprep.subr.mxu0 0.0
  %1537 = vmatpush2.msra.mxu0 0.0
  %1538 = vmatprep.subr.mxu0 0.0
  %1539 = vmatpush2.msra.mxu0 0.0
  %1540 = vmatprep.subr.mxu0 0.0
  %1541 = vmatpush2.msra.mxu0 0.0
  %1542 = vmatprep.subr.mxu0 0.0
  %1543 = vmatpush2.msra.mxu0 0.0
  %1544 = vmatprep.subr.mxu0 0.0
  %1545 = vmatpush2.msra.mxu0 %v1484
  %1546 = vmatprep.subr.mxu0 0.0
  %1547 = vmatpush2.msra.mxu0 %v1483
  %1548 = vmatprep.subr.mxu0 0.0
  %1549 = vmatpush2.msra.mxu0 %v1482
  %1550 = vmatprep.subr.mxu0 0.0
  %1551 = vmatpush2.msra.mxu0 %v1481
  %1552 = vmatprep.subr.mxu0 0.0
  %1553 = vmatpush2.msra.mxu0 %v1480
  %1554 = vmatprep.mubr.f32.mxu0 %v1488
  %1555 = vmatmul.mubr.f32.gmra.mxu0 %v1485
  %v1556 = vpop.f32.mrf.mxu0
  %v1557 = vadd.f32 0.0, %v1556
  %v1558 = vpop.f32.mrf.mxu0
  %1559 = vdwg.mxu0
  %v1560 = vadd.f32 %v1462, %v1557
  %s1561 = scalar_lea.vmem %s5, 1848
  %v1562 = vld [vmem:[%s1561] sm:$0xff]
  %v1563 = vld [vmem:[%s1561 + $0x8] sm:$0xff]
  %v1564 = vld [vmem:[%s1561 + $0x10] sm:$0xff]
  %v1565 = vld [vmem:[%s1561 + $0x18] sm:$0xff]
  %v1566 = vld [vmem:[%s1561 + $0x20] sm:$0xff]
  %v1567 = vld [vmem:[%s1561 + $0x28] sm:$0xff]
  %v1568 = vld [vmem:[%s1561 + $0x30] sm:$0xff]
  %v1569 = vld [vmem:[%s1561 + $0x38] sm:$0xff]
  %v1570 = vld [vmem:[%s1561 + $0x40] sm:$0xff]
  %v1571 = vld [vmem:[%s1561 + $0x48] sm:$0xff]
  %v1572 = vld [vmem:[%s1561 + $0x50] sm:$0xff]
  %v1573 = vld [vmem:[%s1561 + $0x58] sm:$0xff]
  %v1574 = vld [vmem:[%s1561 + $0x60] sm:$0xff]
  %v1575 = vld [vmem:[%s1561 + $0x68] sm:$0xff]
  %v1576 = vld [vmem:[%s1561 + $0x70] sm:$0xff]
  %v1577 = vld [vmem:[%s1561 + $0x78] sm:$0xff]
  %v1578 = vld [vmem:[%s1561 + $0x80] sm:$0xff]
  %v1579 = vld [vmem:[%s1561 + $0x88] sm:$0xff]
  %v1580 = vld [vmem:[%s1561 + $0x90] sm:$0xff]
  %v1581 = vld [vmem:[%s1561 + $0x98] sm:$0xff]
  %v1582 = vld [vmem:[%s1561 + $0xa0] sm:$0xff]
  %v1583 = vrot.slane %v482, 3
  %v1584 = vrot.slane %v483, 3
  %v1586 = vsel %vm506, %v1584, 0
  %1588 = vmatprep.subr.mxu0 0.0
  %1589 = vmatpush1.msra.mxu0 %v1577
  %1590 = vmatprep.subr.mxu0 0.0
  %1591 = vmatpush1.msra.mxu0 %v1576
  %1592 = vmatprep.subr.mxu0 0.0
  %1593 = vmatpush1.msra.mxu0 %v1575
  %1594 = vmatprep.subr.mxu0 0.0
  %1595 = vmatpush1.msra.mxu0 %v1574
  %1596 = vmatprep.subr.mxu0 0.0
  %1597 = vmatpush1.msra.mxu0 %v1573
  %1598 = vmatprep.subr.mxu0 0.0
  %1599 = vmatpush1.msra.mxu0 %v1572
  %1600 = vmatprep.subr.mxu0 0.0
  %1601 = vmatpush1.msra.mxu0 %v1571
  %1602 = vmatprep.subr.mxu0 0.0
  %1603 = vmatpush1.msra.mxu0 %v1570
  %1604 = vmatprep.subr.mxu0 0.0
  %1605 = vmatpush1.msra.mxu0 %v1569
  %1606 = vmatprep.subr.mxu0 0.0
  %1607 = vmatpush1.msra.mxu0 %v1568
  %1608 = vmatprep.subr.mxu0 0.0
  %1609 = vmatpush1.msra.mxu0 %v1567
  %1610 = vmatprep.subr.mxu0 0.0
  %1611 = vmatpush1.msra.mxu0 %v1566
  %1612 = vmatprep.subr.mxu0 0.0
  %1613 = vmatpush1.msra.mxu0 %v1565
  %1614 = vmatprep.subr.mxu0 0.0
  %1615 = vmatpush1.msra.mxu0 %v1564
  %1616 = vmatprep.subr.mxu0 0.0
  %1617 = vmatpush1.msra.mxu0 %v1563
  %1618 = vmatprep.subr.mxu0 0.0
  %1619 = vmatpush1.msra.mxu0 %v1562
  %1620 = vmatprep.subr.mxu0 0.0
  %1621 = vmatpush2.msra.mxu0 0.0
  %1622 = vmatprep.subr.mxu0 0.0
  %1623 = vmatpush2.msra.mxu0 0.0
  %1624 = vmatprep.subr.mxu0 0.0
  %1625 = vmatpush2.msra.mxu0 0.0
  %1626 = vmatprep.subr.mxu0 0.0
  %1627 = vmatpush2.msra.mxu0 0.0
  %1628 = vmatprep.subr.mxu0 0.0
  %1629 = vmatpush2.msra.mxu0 0.0
  %1630 = vmatprep.subr.mxu0 0.0
  %1631 = vmatpush2.msra.mxu0 0.0
  %1632 = vmatprep.subr.mxu0 0.0
  %1633 = vmatpush2.msra.mxu0 0.0
  %1634 = vmatprep.subr.mxu0 0.0
  %1635 = vmatpush2.msra.mxu0 0.0
  %1636 = vmatprep.subr.mxu0 0.0
  %1637 = vmatpush2.msra.mxu0 0.0
  %1638 = vmatprep.subr.mxu0 0.0
  %1639 = vmatpush2.msra.mxu0 0.0
  %1640 = vmatprep.subr.mxu0 0.0
  %1641 = vmatpush2.msra.mxu0 0.0
  %1642 = vmatprep.subr.mxu0 0.0
  %1643 = vmatpush2.msra.mxu0 %v1582
  %1644 = vmatprep.subr.mxu0 0.0
  %1645 = vmatpush2.msra.mxu0 %v1581
  %1646 = vmatprep.subr.mxu0 0.0
  %1647 = vmatpush2.msra.mxu0 %v1580
  %1648 = vmatprep.subr.mxu0 0.0
  %1649 = vmatpush2.msra.mxu0 %v1579
  %1650 = vmatprep.subr.mxu0 0.0
  %1651 = vmatpush2.msra.mxu0 %v1578
  %1652 = vmatprep.mubr.f32.mxu0 %v1586
  %1653 = vmatmul.mubr.f32.gmra.mxu0 %v1583
  %v1654 = vpop.f32.mrf.mxu0
  %v1655 = vadd.f32 0.0, %v1654
  %v1656 = vpop.f32.mrf.mxu0
  %1657 = vdwg.mxu0
  %v1658 = vadd.f32 %v1560, %v1655
  %s1659 = scalar_lea.vmem %s5, 2016
  %v1660 = vld [vmem:[%s1659] sm:$0xff]
  %v1661 = vld [vmem:[%s1659 + $0x8] sm:$0xff]
  %v1662 = vld [vmem:[%s1659 + $0x10] sm:$0xff]
  %v1663 = vld [vmem:[%s1659 + $0x18] sm:$0xff]
  %v1664 = vld [vmem:[%s1659 + $0x20] sm:$0xff]
  %v1665 = vld [vmem:[%s1659 + $0x28] sm:$0xff]
  %v1666 = vld [vmem:[%s1659 + $0x30] sm:$0xff]
  %v1667 = vld [vmem:[%s1659 + $0x38] sm:$0xff]
  %v1668 = vld [vmem:[%s1659 + $0x40] sm:$0xff]
  %v1669 = vld [vmem:[%s1659 + $0x48] sm:$0xff]
  %v1670 = vld [vmem:[%s1659 + $0x50] sm:$0xff]
  %v1671 = vld [vmem:[%s1659 + $0x58] sm:$0xff]
  %v1672 = vld [vmem:[%s1659 + $0x60] sm:$0xff]
  %v1673 = vld [vmem:[%s1659 + $0x68] sm:$0xff]
  %v1674 = vld [vmem:[%s1659 + $0x70] sm:$0xff]
  %v1675 = vld [vmem:[%s1659 + $0x78] sm:$0xff]
  %v1676 = vld [vmem:[%s1659 + $0x80] sm:$0xff]
  %v1677 = vld [vmem:[%s1659 + $0x88] sm:$0xff]
  %v1678 = vld [vmem:[%s1659 + $0x90] sm:$0xff]
  %v1679 = vld [vmem:[%s1659 + $0x98] sm:$0xff]
  %v1680 = vld [vmem:[%s1659 + $0xa0] sm:$0xff]
  %v1681 = vrot.slane %v482, 4
  %v1682 = vrot.slane %v483, 4
  %v1684 = vsel %vm506, %v1682, 0
  %1686 = vmatprep.subr.mxu0 0.0
  %1687 = vmatpush1.msra.mxu0 %v1675
  %1688 = vmatprep.subr.mxu0 0.0
  %1689 = vmatpush1.msra.mxu0 %v1674
  %1690 = vmatprep.subr.mxu0 0.0
  %1691 = vmatpush1.msra.mxu0 %v1673
  %1692 = vmatprep.subr.mxu0 0.0
  %1693 = vmatpush1.msra.mxu0 %v1672
  %1694 = vmatprep.subr.mxu0 0.0
  %1695 = vmatpush1.msra.mxu0 %v1671
  %1696 = vmatprep.subr.mxu0 0.0
  %1697 = vmatpush1.msra.mxu0 %v1670
  %1698 = vmatprep.subr.mxu0 0.0
  %1699 = vmatpush1.msra.mxu0 %v1669
  %1700 = vmatprep.subr.mxu0 0.0
  %1701 = vmatpush1.msra.mxu0 %v1668
  %1702 = vmatprep.subr.mxu0 0.0
  %1703 = vmatpush1.msra.mxu0 %v1667
  %1704 = vmatprep.subr.mxu0 0.0
  %1705 = vmatpush1.msra.mxu0 %v1666
  %1706 = vmatprep.subr.mxu0 0.0
  %1707 = vmatpush1.msra.mxu0 %v1665
  %1708 = vmatprep.subr.mxu0 0.0
  %1709 = vmatpush1.msra.mxu0 %v1664
  %1710 = vmatprep.subr.mxu0 0.0
  %1711 = vmatpush1.msra.mxu0 %v1663
  %1712 = vmatprep.subr.mxu0 0.0
  %1713 = vmatpush1.msra.mxu0 %v1662
  %1714 = vmatprep.subr.mxu0 0.0
  %1715 = vmatpush1.msra.mxu0 %v1661
  %1716 = vmatprep.subr.mxu0 0.0
  %1717 = vmatpush1.msra.mxu0 %v1660
  %1718 = vmatprep.subr.mxu0 0.0
  %1719 = vmatpush2.msra.mxu0 0.0
  %1720 = vmatprep.subr.mxu0 0.0
  %1721 = vmatpush2.msra.mxu0 0.0
  %1722 = vmatprep.subr.mxu0 0.0
  %1723 = vmatpush2.msra.mxu0 0.0
  %1724 = vmatprep.subr.mxu0 0.0
  %1725 = vmatpush2.msra.mxu0 0.0
  %1726 = vmatprep.subr.mxu0 0.0
  %1727 = vmatpush2.msra.mxu0 0.0
  %1728 = vmatprep.subr.mxu0 0.0
  %1729 = vmatpush2.msra.mxu0 0.0
  %1730 = vmatprep.subr.mxu0 0.0
  %1731 = vmatpush2.msra.mxu0 0.0
  %1732 = vmatprep.subr.mxu0 0.0
  %1733 = vmatpush2.msra.mxu0 0.0
  %1734 = vmatprep.subr.mxu0 0.0
  %1735 = vmatpush2.msra.mxu0 0.0
  %1736 = vmatprep.subr.mxu0 0.0
  %1737 = vmatpush2.msra.mxu0 0.0
  %1738 = vmatprep.subr.mxu0 0.0
  %1739 = vmatpush2.msra.mxu0 0.0
  %1740 = vmatprep.subr.mxu0 0.0
  %1741 = vmatpush2.msra.mxu0 %v1680
  %1742 = vmatprep.subr.mxu0 0.0
  %1743 = vmatpush2.msra.mxu0 %v1679
  %1744 = vmatprep.subr.mxu0 0.0
  %1745 = vmatpush2.msra.mxu0 %v1678
  %1746 = vmatprep.subr.mxu0 0.0
  %1747 = vmatpush2.msra.mxu0 %v1677
  %1748 = vmatprep.subr.mxu0 0.0
  %1749 = vmatpush2.msra.mxu0 %v1676
  %1750 = vmatprep.mubr.f32.mxu0 %v1684
  %1751 = vmatmul.mubr.f32.gmra.mxu0 %v1681
  %v1752 = vpop.f32.mrf.mxu0
  %v1753 = vadd.f32 0.0, %v1752
  %v1754 = vpop.f32.mrf.mxu0
  %1755 = vdwg.mxu0
  %v1756 = vadd.f32 %v1658, %v1753
  %s1757 = scalar_lea.vmem %s5, 2184
  %v1758 = vld [vmem:[%s1757] sm:$0xff]
  %v1759 = vld [vmem:[%s1757 + $0x8] sm:$0xff]
  %v1760 = vld [vmem:[%s1757 + $0x10] sm:$0xff]
  %v1761 = vld [vmem:[%s1757 + $0x18] sm:$0xff]
  %v1762 = vld [vmem:[%s1757 + $0x20] sm:$0xff]
  %v1763 = vld [vmem:[%s1757 + $0x28] sm:$0xff]
  %v1764 = vld [vmem:[%s1757 + $0x30] sm:$0xff]
  %v1765 = vld [vmem:[%s1757 + $0x38] sm:$0xff]
  %v1766 = vld [vmem:[%s1757 + $0x40] sm:$0xff]
  %v1767 = vld [vmem:[%s1757 + $0x48] sm:$0xff]
  %v1768 = vld [vmem:[%s1757 + $0x50] sm:$0xff]
  %v1769 = vld [vmem:[%s1757 + $0x58] sm:$0xff]
  %v1770 = vld [vmem:[%s1757 + $0x60] sm:$0xff]
  %v1771 = vld [vmem:[%s1757 + $0x68] sm:$0xff]
  %v1772 = vld [vmem:[%s1757 + $0x70] sm:$0xff]
  %v1773 = vld [vmem:[%s1757 + $0x78] sm:$0xff]
  %v1774 = vld [vmem:[%s1757 + $0x80] sm:$0xff]
  %v1775 = vld [vmem:[%s1757 + $0x88] sm:$0xff]
  %v1776 = vld [vmem:[%s1757 + $0x90] sm:$0xff]
  %v1777 = vld [vmem:[%s1757 + $0x98] sm:$0xff]
  %v1778 = vld [vmem:[%s1757 + $0xa0] sm:$0xff]
  %v1779 = vrot.slane %v482, 5
  %v1780 = vrot.slane %v483, 5
  %v1782 = vsel %vm506, %v1780, 0
  %1784 = vmatprep.subr.mxu0 0.0
  %1785 = vmatpush1.msra.mxu0 %v1773
  %1786 = vmatprep.subr.mxu0 0.0
  %1787 = vmatpush1.msra.mxu0 %v1772
  %1788 = vmatprep.subr.mxu0 0.0
  %1789 = vmatpush1.msra.mxu0 %v1771
  %1790 = vmatprep.subr.mxu0 0.0
  %1791 = vmatpush1.msra.mxu0 %v1770
  %1792 = vmatprep.subr.mxu0 0.0
  %1793 = vmatpush1.msra.mxu0 %v1769
  %1794 = vmatprep.subr.mxu0 0.0
  %1795 = vmatpush1.msra.mxu0 %v1768
  %1796 = vmatprep.subr.mxu0 0.0
  %1797 = vmatpush1.msra.mxu0 %v1767
  %1798 = vmatprep.subr.mxu0 0.0
  %1799 = vmatpush1.msra.mxu0 %v1766
  %1800 = vmatprep.subr.mxu0 0.0
  %1801 = vmatpush1.msra.mxu0 %v1765
  %1802 = vmatprep.subr.mxu0 0.0
  %1803 = vmatpush1.msra.mxu0 %v1764
  %1804 = vmatprep.subr.mxu0 0.0
  %1805 = vmatpush1.msra.mxu0 %v1763
  %1806 = vmatprep.subr.mxu0 0.0
  %1807 = vmatpush1.msra.mxu0 %v1762
  %1808 = vmatprep.subr.mxu0 0.0
  %1809 = vmatpush1.msra.mxu0 %v1761
  %1810 = vmatprep.subr.mxu0 0.0
  %1811 = vmatpush1.msra.mxu0 %v1760
  %1812 = vmatprep.subr.mxu0 0.0
  %1813 = vmatpush1.msra.mxu0 %v1759
  %1814 = vmatprep.subr.mxu0 0.0
  %1815 = vmatpush1.msra.mxu0 %v1758
  %1816 = vmatprep.subr.mxu0 0.0
  %1817 = vmatpush2.msra.mxu0 0.0
  %1818 = vmatprep.subr.mxu0 0.0
  %1819 = vmatpush2.msra.mxu0 0.0
  %1820 = vmatprep.subr.mxu0 0.0
  %1821 = vmatpush2.msra.mxu0 0.0
  %1822 = vmatprep.subr.mxu0 0.0
  %1823 = vmatpush2.msra.mxu0 0.0
  %1824 = vmatprep.subr.mxu0 0.0
  %1825 = vmatpush2.msra.mxu0 0.0
  %1826 = vmatprep.subr.mxu0 0.0
  %1827 = vmatpush2.msra.mxu0 0.0
  %1828 = vmatprep.subr.mxu0 0.0
  %1829 = vmatpush2.msra.mxu0 0.0
  %1830 = vmatprep.subr.mxu0 0.0
  %1831 = vmatpush2.msra.mxu0 0.0
  %1832 = vmatprep.subr.mxu0 0.0
  %1833 = vmatpush2.msra.mxu0 0.0
  %1834 = vmatprep.subr.mxu0 0.0
  %1835 = vmatpush2.msra.mxu0 0.0
  %1836 = vmatprep.subr.mxu0 0.0
  %1837 = vmatpush2.msra.mxu0 0.0
  %1838 = vmatprep.subr.mxu0 0.0
  %1839 = vmatpush2.msra.mxu0 %v1778
  %1840 = vmatprep.subr.mxu0 0.0
  %1841 = vmatpush2.msra.mxu0 %v1777
  %1842 = vmatprep.subr.mxu0 0.0
  %1843 = vmatpush2.msra.mxu0 %v1776
  %1844 = vmatprep.subr.mxu0 0.0
  %1845 = vmatpush2.msra.mxu0 %v1775
  %1846 = vmatprep.subr.mxu0 0.0
  %1847 = vmatpush2.msra.mxu0 %v1774
  %1848 = vmatprep.mubr.f32.mxu0 %v1782
  %1849 = vmatmul.mubr.f32.gmra.mxu0 %v1779
  %v1850 = vpop.f32.mrf.mxu0
  %v1851 = vadd.f32 0.0, %v1850
  %v1852 = vpop.f32.mrf.mxu0
  %1853 = vdwg.mxu0
  %v1854 = vadd.f32 %v1756, %v1851
  %v1855 = vmax.f32 %v1854, 0.0
  %v1856 = vld [vmem:[%s7] sm:$0xff]
  %v1857 = vld [vmem:[%s7 + $0x8] sm:$0xff]
  %v1858 = vld [vmem:[%s7 + $0x10] sm:$0xff]
  %v1859 = vld [vmem:[%s7 + $0x18] sm:$0xff]
  %v1860 = vld [vmem:[%s8] sm:$0x1]
  %vm1861 = vcmask 261120
  %v1863 = vsel %vm1861, %v1855, 0
  %1865 = vmatprep.subr.mxu0 0.0
  %1866 = vmatpush1.msra.mxu0 0.0
  %1867 = vmatprep.subr.mxu0 0.0
  %1868 = vmatpush1.msra.mxu0 0.0
  %1869 = vmatprep.subr.mxu0 0.0
  %1870 = vmatpush1.msra.mxu0 0.0
  %1871 = vmatprep.subr.mxu0 0.0
  %1872 = vmatpush1.msra.mxu0 0.0
  %1873 = vmatprep.subr.mxu0 0.0
  %1874 = vmatpush1.msra.mxu0 0.0
  %1875 = vmatprep.subr.mxu0 0.0
  %1876 = vmatpush1.msra.mxu0 0.0
  %1877 = vmatprep.subr.mxu0 0.0
  %1878 = vmatpush1.msra.mxu0 0.0
  %1879 = vmatprep.subr.mxu0 0.0
  %1880 = vmatpush1.msra.mxu0 0.0
  %1881 = vmatprep.subr.mxu0 0.0
  %1882 = vmatpush1.msra.mxu0 0.0
  %1883 = vmatprep.subr.mxu0 0.0
  %1884 = vmatpush1.msra.mxu0 0.0
  %1885 = vmatprep.subr.mxu0 0.0
  %1886 = vmatpush1.msra.mxu0 0.0
  %1887 = vmatprep.subr.mxu0 0.0
  %1888 = vmatpush1.msra.mxu0 0.0
  %1889 = vmatprep.subr.mxu0 0.0
  %1890 = vmatpush1.msra.mxu0 %v1859
  %1891 = vmatprep.subr.mxu0 0.0
  %1892 = vmatpush1.msra.mxu0 %v1858
  %1893 = vmatprep.subr.mxu0 0.0
  %1894 = vmatpush1.msra.mxu0 %v1857
  %1895 = vmatprep.subr.mxu0 0.0
  %1896 = vmatpush1.msra.mxu0 %v1856
  %1897 = vmatprep.subr.mxu0 0.0
  %1898 = vmatpush2.msra.mxu0 0.0
  %1899 = vmatprep.subr.mxu0 0.0
  %1900 = vmatpush2.msra.mxu0 0.0
  %1901 = vmatprep.subr.mxu0 0.0
  %1902 = vmatpush2.msra.mxu0 0.0
  %1903 = vmatprep.subr.mxu0 0.0
  %1904 = vmatpush2.msra.mxu0 0.0
  %1905 = vmatprep.subr.mxu0 0.0
  %1906 = vmatpush2.msra.mxu0 0.0
  %1907 = vmatprep.subr.mxu0 0.0
  %1908 = vmatpush2.msra.mxu0 0.0
  %1909 = vmatprep.subr.mxu0 0.0
  %1910 = vmatpush2.msra.mxu0 0.0
  %1911 = vmatprep.subr.mxu0 0.0
  %1912 = vmatpush2.msra.mxu0 0.0
  %1913 = vmatprep.subr.mxu0 0.0
  %1914 = vmatpush2.msra.mxu0 0.0
  %1915 = vmatprep.subr.mxu0 0.0
  %1916 = vmatpush2.msra.mxu0 0.0
  %1917 = vmatprep.subr.mxu0 0.0
  %1918 = vmatpush2.msra.mxu0 0.0
  %1919 = vmatprep.subr.mxu0 0.0
  %1920 = vmatpush2.msra.mxu0 0.0
  %1921 = vmatprep.subr.mxu0 0.0
  %1922 = vmatpush2.msra.mxu0 0.0
  %1923 = vmatprep.subr.mxu0 0.0
  %1924 = vmatpush2.msra.mxu0 0.0
  %1925 = vmatprep.subr.mxu0 0.0
  %1926 = vmatpush2.msra.mxu0 0.0
  %1927 = vmatprep.subr.mxu0 0.0
  %1928 = vmatpush2.msra.mxu0 0.0
  %1929 = vmatprep.mubr.f32.mxu0 0.0
  %1930 = vmatmul.mubr.f32.gmra.mxu0 %v1863
  %v1931 = vpop.f32.mrf.mxu0
  %v1932 = vadd.f32 %v1860, %v1931
  %v1933 = vpop.f32.mrf.mxu0
  %1934 = vdwg.mxu0
  %v1935 = vmax.f32 %v1932, 0.0
  %v1936 = vld [vmem:[%s9] sm:$0x1]
  %v1937 = vmul.f32 %v1935, %v1936
  %vm1938 = vcmask 122880
  %v1939 = vsel %vm1938, %v1937, 0.0
  %1940 = vadd.xlane.f32.xlu0 %v1939
  %v1941 = vpop.xlane.xlu0 %1940
  %v1942 = vld [vmem:[#allocation2] sm:$0x1]
  %v1943 = vadd.f32 %v1941, %v1942
  %vm1944 = vcmask 0
  %1945 = vst.msk [vmem:[%s11] sm:$0x1] %vm1944, %v1943
  %s1946 = scalar_lea.vmem %s0, 16
  %v1947 = vld [vmem:[%s1946] sm:$0xff]
  %v1948 = vld [vmem:[%s1946 + $0x8] sm:$0xff]
  %v1949 = vld [vmem:[%s1] sm:$0xff]
  %v1950 = vld [vmem:[%s1 + $0x8] sm:$0xff]
  %v1951 = vld [vmem:[%s1 + $0x10] sm:$0xff]
  %v1952 = vld [vmem:[%s1 + $0x18] sm:$0xff]
  %v1953 = vld [vmem:[%s1 + $0x20] sm:$0xff]
  %v1954 = vld [vmem:[%s1 + $0x28] sm:$0xff]
  %v1955 = vld [vmem:[%s1 + $0x30] sm:$0xff]
  %v1956 = vld [vmem:[%s1 + $0x38] sm:$0xff]
  %v1957 = vld [vmem:[%s50] sm:$0xff]
  %v1958 = vld [vmem:[%s50 + $0x8] sm:$0xff]
  %v1959 = vld [vmem:[%s50 + $0x10] sm:$0xff]
  %v1960 = vld [vmem:[%s50 + $0x18] sm:$0xff]
  %v1961 = vld [vmem:[%s50 + $0x20] sm:$0xff]
  %v1962 = vld [vmem:[%s50 + $0x28] sm:$0xff]
  %v1963 = vld [vmem:[%s50 + $0x30] sm:$0xff]
  %v1964 = vld [vmem:[%s50 + $0x38] sm:$0xff]
  %v1967 = vrot.slane %v1947, 1
  %v1968 = vrot.slane %v1948, 1
  %v1969 = vsel %vm61, %v1967, %v1968
  %v1970 = vsel %vm65, %v1969, 0
  %v1972 = vsel %vm65, %v1968, 0
  %1974 = vmatprep.subr.mxu0 0.0
  %1975 = vmatpush1.msra.mxu0 0.0
  %1976 = vmatprep.subr.mxu0 0.0
  %1977 = vmatpush1.msra.mxu0 0.0
  %1978 = vmatprep.subr.mxu0 0.0
  %1979 = vmatpush1.msra.mxu0 0.0
  %1980 = vmatprep.subr.mxu0 0.0
  %1981 = vmatpush1.msra.mxu0 0.0
  %1982 = vmatprep.subr.mxu0 0.0
  %1983 = vmatpush1.msra.mxu0 0.0
  %1984 = vmatprep.subr.mxu0 0.0
  %1985 = vmatpush1.msra.mxu0 0.0
  %1986 = vmatprep.subr.mxu0 0.0
  %1987 = vmatpush1.msra.mxu0 0.0
  %1988 = vmatprep.subr.mxu0 0.0
  %1989 = vmatpush1.msra.mxu0 0.0
  %1990 = vmatprep.subr.mxu0 0.0
  %1991 = vmatpush1.msra.mxu0 %v1964
  %1992 = vmatprep.subr.mxu0 0.0
  %1993 = vmatpush1.msra.mxu0 %v1963
  %1994 = vmatprep.subr.mxu0 0.0
  %1995 = vmatpush1.msra.mxu0 %v1962
  %1996 = vmatprep.subr.mxu0 0.0
  %1997 = vmatpush1.msra.mxu0 %v1961
  %1998 = vmatprep.subr.mxu0 0.0
  %1999 = vmatpush1.msra.mxu0 %v1960
  %2000 = vmatprep.subr.mxu0 0.0
  %2001 = vmatpush1.msra.mxu0 %v1959
  %2002 = vmatprep.subr.mxu0 0.0
  %2003 = vmatpush1.msra.mxu0 %v1958
  %2004 = vmatprep.subr.mxu0 0.0
  %2005 = vmatpush1.msra.mxu0 %v1957
  %2006 = vmatprep.subr.mxu0 0.0
  %2007 = vmatpush2.msra.mxu0 0.0
  %2008 = vmatprep.subr.mxu0 0.0
  %2009 = vmatpush2.msra.mxu0 0.0
  %2010 = vmatprep.subr.mxu0 0.0
  %2011 = vmatpush2.msra.mxu0 0.0
  %2012 = vmatprep.subr.mxu0 0.0
  %2013 = vmatpush2.msra.mxu0 0.0
  %2014 = vmatprep.subr.mxu0 0.0
  %2015 = vmatpush2.msra.mxu0 0.0
  %2016 = vmatprep.subr.mxu0 0.0
  %2017 = vmatpush2.msra.mxu0 0.0
  %2018 = vmatprep.subr.mxu0 0.0
  %2019 = vmatpush2.msra.mxu0 0.0
  %2020 = vmatprep.subr.mxu0 0.0
  %2021 = vmatpush2.msra.mxu0 0.0
  %2022 = vmatprep.subr.mxu0 0.0
  %2023 = vmatpush2.msra.mxu0 0.0
  %2024 = vmatprep.subr.mxu0 0.0
  %2025 = vmatpush2.msra.mxu0 0.0
  %2026 = vmatprep.subr.mxu0 0.0
  %2027 = vmatpush2.msra.mxu0 0.0
  %2028 = vmatprep.subr.mxu0 0.0
  %2029 = vmatpush2.msra.mxu0 0.0
  %2030 = vmatprep.subr.mxu0 0.0
  %2031 = vmatpush2.msra.mxu0 0.0
  %2032 = vmatprep.subr.mxu0 0.0
  %2033 = vmatpush2.msra.mxu0 0.0
  %2034 = vmatprep.subr.mxu0 0.0
  %2035 = vmatpush2.msra.mxu0 0.0
  %2036 = vmatprep.subr.mxu0 0.0
  %2037 = vmatpush2.msra.mxu0 0.0
  %2038 = vmatprep.mubr.f32.mxu0 0.0
  %2039 = vmatmul.mubr.f32.gmra.mxu0 %v1970
  %v2040 = vpop.f32.mrf.mxu0
  %v2041 = vadd.f32 0.0, %v2040
  %v2042 = vpop.f32.mrf.mxu0
  %2043 = vmatprep.mubr.f32.mxu0 0.0
  %2044 = vmatmul.mubr.f32.gmra.mxu0 %v1972
  %v2045 = vpop.f32.mrf.mxu0
  %v2046 = vadd.f32 0.0, %v2045
  %v2047 = vpop.f32.mrf.mxu0
  %2048 = vdwg.mxu0
  %v2049 = vsel %vm65, %v1947, 0
  %v2051 = vsel %vm65, %v1948, 0
  %2053 = vmatprep.subr.mxu0 0.0
  %2054 = vmatpush1.msra.mxu0 0.0
  %2055 = vmatprep.subr.mxu0 0.0
  %2056 = vmatpush1.msra.mxu0 0.0
  %2057 = vmatprep.subr.mxu0 0.0
  %2058 = vmatpush1.msra.mxu0 0.0
  %2059 = vmatprep.subr.mxu0 0.0
  %2060 = vmatpush1.msra.mxu0 0.0
  %2061 = vmatprep.subr.mxu0 0.0
  %2062 = vmatpush1.msra.mxu0 0.0
  %2063 = vmatprep.subr.mxu0 0.0
  %2064 = vmatpush1.msra.mxu0 0.0
  %2065 = vmatprep.subr.mxu0 0.0
  %2066 = vmatpush1.msra.mxu0 0.0
  %2067 = vmatprep.subr.mxu0 0.0
  %2068 = vmatpush1.msra.mxu0 0.0
  %2069 = vmatprep.subr.mxu0 0.0
  %2070 = vmatpush1.msra.mxu0 %v1956
  %2071 = vmatprep.subr.mxu0 0.0
  %2072 = vmatpush1.msra.mxu0 %v1955
  %2073 = vmatprep.subr.mxu0 0.0
  %2074 = vmatpush1.msra.mxu0 %v1954
  %2075 = vmatprep.subr.mxu0 0.0
  %2076 = vmatpush1.msra.mxu0 %v1953
  %2077 = vmatprep.subr.mxu0 0.0
  %2078 = vmatpush1.msra.mxu0 %v1952
  %2079 = vmatprep.subr.mxu0 0.0
  %2080 = vmatpush1.msra.mxu0 %v1951
  %2081 = vmatprep.subr.mxu0 0.0
  %2082 = vmatpush1.msra.mxu0 %v1950
  %2083 = vmatprep.subr.mxu0 0.0
  %2084 = vmatpush1.msra.mxu0 %v1949
  %2085 = vmatprep.subr.mxu0 0.0
  %2086 = vmatpush2.msra.mxu0 0.0
  %2087 = vmatprep.subr.mxu0 0.0
  %2088 = vmatpush2.msra.mxu0 0.0
  %2089 = vmatprep.subr.mxu0 0.0
  %2090 = vmatpush2.msra.mxu0 0.0
  %2091 = vmatprep.subr.mxu0 0.0
  %2092 = vmatpush2.msra.mxu0 0.0
  %2093 = vmatprep.subr.mxu0 0.0
  %2094 = vmatpush2.msra.mxu0 0.0
  %2095 = vmatprep.subr.mxu0 0.0
  %2096 = vmatpush2.msra.mxu0 0.0
  %2097 = vmatprep.subr.mxu0 0.0
  %2098 = vmatpush2.msra.mxu0 0.0
  %2099 = vmatprep.subr.mxu0 0.0
  %2100 = vmatpush2.msra.mxu0 0.0
  %2101 = vmatprep.subr.mxu0 0.0
  %2102 = vmatpush2.msra.mxu0 0.0
  %2103 = vmatprep.subr.mxu0 0.0
  %2104 = vmatpush2.msra.mxu0 0.0
  %2105 = vmatprep.subr.mxu0 0.0
  %2106 = vmatpush2.msra.mxu0 0.0
  %2107 = vmatprep.subr.mxu0 0.0
  %2108 = vmatpush2.msra.mxu0 0.0
  %2109 = vmatprep.subr.mxu0 0.0
  %2110 = vmatpush2.msra.mxu0 0.0
  %2111 = vmatprep.subr.mxu0 0.0
  %2112 = vmatpush2.msra.mxu0 0.0
  %2113 = vmatprep.subr.mxu0 0.0
  %2114 = vmatpush2.msra.mxu0 0.0
  %2115 = vmatprep.subr.mxu0 0.0
  %2116 = vmatpush2.msra.mxu0 0.0
  %2117 = vmatprep.mubr.f32.mxu0 0.0
  %2118 = vmatmul.mubr.f32.gmra.mxu0 %v2049
  %v2119 = vpop.f32.mrf.mxu0
  %v2120 = vadd.f32 %v2041, %v2119
  %v2121 = vpop.f32.mrf.mxu0
  %2122 = vmatprep.mubr.f32.mxu0 0.0
  %2123 = vmatmul.mubr.f32.gmra.mxu0 %v2051
  %v2124 = vpop.f32.mrf.mxu0
  %v2125 = vadd.f32 %v2046, %v2124
  %v2126 = vpop.f32.mrf.mxu0
  %2127 = vdwg.mxu0
  %v2128 = vld [vmem:[%s2] sm:$0x1]
  %v2130 = vlaneseq
  %v2131 = vshrl.u32 %v2130, 7
  %v2132 = vsub.s32 0, %v2131
  %v2133 = vrot.slane %v2128, %v2132
  %v2135 = vadd.f32 %v2120, %v2133
  %v2136 = vadd.f32 %v2125, %v2133
  %v2137 = vmax.f32 %v2135, 0.0
  %v2138 = vmax.f32 %v2136, 0.0
  %v2139 = vld [vmem:[%s3] sm:$0xff]
  %v2140 = vld [vmem:[%s3 + $0x8] sm:$0xff]
  %v2141 = vld [vmem:[%s3 + $0x10] sm:$0xff]
  %v2142 = vld [vmem:[%s3 + $0x18] sm:$0xff]
  %v2143 = vld [vmem:[%s3 + $0x20] sm:$0xff]
  %v2144 = vld [vmem:[%s3 + $0x28] sm:$0xff]
  %v2145 = vld [vmem:[%s3 + $0x30] sm:$0xff]
  %v2146 = vld [vmem:[%s3 + $0x38] sm:$0xff]
  %v2147 = vld [vmem:[%s3 + $0x40] sm:$0xff]
  %v2148 = vld [vmem:[%s3 + $0x48] sm:$0xff]
  %v2149 = vld [vmem:[%s3 + $0x50] sm:$0xff]
  %v2150 = vld [vmem:[%s3 + $0x58] sm:$0xff]
  %v2151 = vld [vmem:[%s3 + $0x60] sm:$0xff]
  %v2152 = vld [vmem:[%s3 + $0x68] sm:$0xff]
  %v2153 = vld [vmem:[%s3 + $0x70] sm:$0xff]
  %v2154 = vld [vmem:[%s3 + $0x78] sm:$0xff]
  %v2155 = vld [vmem:[%s3 + $0x80] sm:$0xff]
  %v2156 = vld [vmem:[%s3 + $0x88] sm:$0xff]
  %v2157 = vld [vmem:[%s3 + $0x90] sm:$0xff]
  %v2158 = vld [vmem:[%s3 + $0x98] sm:$0xff]
  %v2159 = vld [vmem:[%s3 + $0xa0] sm:$0xff]
  %v2160 = vld [vmem:[%s3 + $0xa8] sm:$0xff]
  %v2161 = vld [vmem:[%s3 + $0xb0] sm:$0xff]
  %v2162 = vld [vmem:[%s3 + $0xb8] sm:$0xff]
  %v2163 = vld [vmem:[%s3 + $0xc0] sm:$0xff]
  %v2164 = vld [vmem:[%s3 + $0xc8] sm:$0xff]
  %v2165 = vld [vmem:[%s3 + $0xd0] sm:$0xff]
  %v2166 = vld [vmem:[%s3 + $0xd8] sm:$0xff]
  %v2167 = vld [vmem:[%s3 + $0xe0] sm:$0xff]
  %v2168 = vld [vmem:[%s3 + $0xe8] sm:$0xff]
  %v2169 = vld [vmem:[%s265] sm:$0xff]
  %v2170 = vld [vmem:[%s265 + $0x8] sm:$0xff]
  %v2171 = vld [vmem:[%s265 + $0x10] sm:$0xff]
  %v2172 = vld [vmem:[%s265 + $0x18] sm:$0xff]
  %v2173 = vld [vmem:[%s265 + $0x20] sm:$0xff]
  %v2174 = vld [vmem:[%s265 + $0x28] sm:$0xff]
  %v2175 = vld [vmem:[%s265 + $0x30] sm:$0xff]
  %v2176 = vld [vmem:[%s265 + $0x38] sm:$0xff]
  %v2177 = vld [vmem:[%s265 + $0x40] sm:$0xff]
  %v2178 = vld [vmem:[%s265 + $0x48] sm:$0xff]
  %v2179 = vld [vmem:[%s265 + $0x50] sm:$0xff]
  %v2180 = vld [vmem:[%s265 + $0x58] sm:$0xff]
  %v2181 = vld [vmem:[%s265 + $0x60] sm:$0xff]
  %v2182 = vld [vmem:[%s265 + $0x68] sm:$0xff]
  %v2183 = vld [vmem:[%s265 + $0x70] sm:$0xff]
  %v2184 = vld [vmem:[%s265 + $0x78] sm:$0xff]
  %v2185 = vld [vmem:[%s265 + $0x80] sm:$0xff]
  %v2186 = vld [vmem:[%s265 + $0x88] sm:$0xff]
  %v2187 = vld [vmem:[%s265 + $0x90] sm:$0xff]
  %v2188 = vld [vmem:[%s265 + $0x98] sm:$0xff]
  %v2189 = vld [vmem:[%s265 + $0xa0] sm:$0xff]
  %v2190 = vld [vmem:[%s265 + $0xa8] sm:$0xff]
  %v2191 = vld [vmem:[%s265 + $0xb0] sm:$0xff]
  %v2192 = vld [vmem:[%s265 + $0xb8] sm:$0xff]
  %v2193 = vld [vmem:[%s265 + $0xc0] sm:$0xff]
  %v2194 = vld [vmem:[%s265 + $0xc8] sm:$0xff]
  %v2195 = vld [vmem:[%s265 + $0xd0] sm:$0xff]
  %v2196 = vld [vmem:[%s265 + $0xd8] sm:$0xff]
  %v2197 = vld [vmem:[%s265 + $0xe0] sm:$0xff]
  %v2198 = vld [vmem:[%s265 + $0xe8] sm:$0xff]
  %v2201 = vrot.slane %v2137, 1
  %v2202 = vrot.slane %v2138, 1
  %v2203 = vsel %vm61, %v2201, %v2202
  %v2204 = vsel %vm301, %v2203, 0
  %v2206 = vsel %vm301, %v2202, 0
  %2208 = vmatprep.subr.mxu0 0.0
  %2209 = vmatpush1.msra.mxu0 0.0
  %2210 = vmatprep.subr.mxu0 %v2198
  %2211 = vmatpush1.msra.mxu0 %v2197
  %2212 = vmatprep.subr.mxu0 %v2196
  %2213 = vmatpush1.msra.mxu0 %v2195
  %2214 = vmatprep.subr.mxu0 %v2194
  %2215 = vmatpush1.msra.mxu0 %v2193
  %2216 = vmatprep.subr.mxu0 %v2192
  %2217 = vmatpush1.msra.mxu0 %v2191
  %2218 = vmatprep.subr.mxu0 %v2190
  %2219 = vmatpush1.msra.mxu0 %v2189
  %2220 = vmatprep.subr.mxu0 %v2188
  %2221 = vmatpush1.msra.mxu0 %v2187
  %2222 = vmatprep.subr.mxu0 %v2186
  %2223 = vmatpush1.msra.mxu0 %v2185
  %2224 = vmatprep.subr.mxu0 %v2184
  %2225 = vmatpush1.msra.mxu0 %v2183
  %2226 = vmatprep.subr.mxu0 %v2182
  %2227 = vmatpush1.msra.mxu0 %v2181
  %2228 = vmatprep.subr.mxu0 %v2180
  %2229 = vmatpush1.msra.mxu0 %v2179
  %2230 = vmatprep.subr.mxu0 %v2178
  %2231 = vmatpush1.msra.mxu0 %v2177
  %2232 = vmatprep.subr.mxu0 %v2176
  %2233 = vmatpush1.msra.mxu0 %v2175
  %2234 = vmatprep.subr.mxu0 %v2174
  %2235 = vmatpush1.msra.mxu0 %v2173
  %2236 = vmatprep.subr.mxu0 %v2172
  %2237 = vmatpush1.msra.mxu0 %v2171
  %2238 = vmatprep.subr.mxu0 %v2170
  %2239 = vmatpush1.msra.mxu0 %v2169
  %2240 = vmatprep.subr.mxu0 0.0
  %2241 = vmatpush2.msra.mxu0 0.0
  %2242 = vmatprep.subr.mxu0 0.0
  %2243 = vmatpush2.msra.mxu0 0.0
  %2244 = vmatprep.subr.mxu0 0.0
  %2245 = vmatpush2.msra.mxu0 0.0
  %2246 = vmatprep.subr.mxu0 0.0
  %2247 = vmatpush2.msra.mxu0 0.0
  %2248 = vmatprep.subr.mxu0 0.0
  %2249 = vmatpush2.msra.mxu0 0.0
  %2250 = vmatprep.subr.mxu0 0.0
  %2251 = vmatpush2.msra.mxu0 0.0
  %2252 = vmatprep.subr.mxu0 0.0
  %2253 = vmatpush2.msra.mxu0 0.0
  %2254 = vmatprep.subr.mxu0 0.0
  %2255 = vmatpush2.msra.mxu0 0.0
  %2256 = vmatprep.subr.mxu0 0.0
  %2257 = vmatpush2.msra.mxu0 0.0
  %2258 = vmatprep.subr.mxu0 0.0
  %2259 = vmatpush2.msra.mxu0 0.0
  %2260 = vmatprep.subr.mxu0 0.0
  %2261 = vmatpush2.msra.mxu0 0.0
  %2262 = vmatprep.subr.mxu0 0.0
  %2263 = vmatpush2.msra.mxu0 0.0
  %2264 = vmatprep.subr.mxu0 0.0
  %2265 = vmatpush2.msra.mxu0 0.0
  %2266 = vmatprep.subr.mxu0 0.0
  %2267 = vmatpush2.msra.mxu0 0.0
  %2268 = vmatprep.subr.mxu0 0.0
  %2269 = vmatpush2.msra.mxu0 0.0
  %2270 = vmatprep.subr.mxu0 0.0
  %2271 = vmatpush2.msra.mxu0 0.0
  %2272 = vmatprep.mubr.f32.mxu0 0.0
  %2273 = vmatmul.mubr.f32.gmra.mxu0 %v2204
  %v2274 = vpop.f32.mrf.mxu0
  %v2275 = vadd.f32 0.0, %v2274
  %v2276 = vpop.f32.mrf.mxu0
  %v2277 = vadd.f32 0.0, %v2276
  %2278 = vmatprep.mubr.f32.mxu0 0.0
  %2279 = vmatmul.mubr.f32.gmra.mxu0 %v2206
  %v2280 = vpop.f32.mrf.mxu0
  %v2281 = vadd.f32 0.0, %v2280
  %v2282 = vpop.f32.mrf.mxu0
  %v2283 = vadd.f32 0.0, %v2282
  %2284 = vdwg.mxu0
  %v2285 = vsel %vm301, %v2137, 0
  %v2287 = vsel %vm301, %v2138, 0
  %2289 = vmatprep.subr.mxu0 0.0
  %2290 = vmatpush1.msra.mxu0 0.0
  %2291 = vmatprep.subr.mxu0 %v2168
  %2292 = vmatpush1.msra.mxu0 %v2167
  %2293 = vmatprep.subr.mxu0 %v2166
  %2294 = vmatpush1.msra.mxu0 %v2165
  %2295 = vmatprep.subr.mxu0 %v2164
  %2296 = vmatpush1.msra.mxu0 %v2163
  %2297 = vmatprep.subr.mxu0 %v2162
  %2298 = vmatpush1.msra.mxu0 %v2161
  %2299 = vmatprep.subr.mxu0 %v2160
  %2300 = vmatpush1.msra.mxu0 %v2159
  %2301 = vmatprep.subr.mxu0 %v2158
  %2302 = vmatpush1.msra.mxu0 %v2157
  %2303 = vmatprep.subr.mxu0 %v2156
  %2304 = vmatpush1.msra.mxu0 %v2155
  %2305 = vmatprep.subr.mxu0 %v2154
  %2306 = vmatpush1.msra.mxu0 %v2153
  %2307 = vmatprep.subr.mxu0 %v2152
  %2308 = vmatpush1.msra.mxu0 %v2151
  %2309 = vmatprep.subr.mxu0 %v2150
  %2310 = vmatpush1.msra.mxu0 %v2149
  %2311 = vmatprep.subr.mxu0 %v2148
  %2312 = vmatpush1.msra.mxu0 %v2147
  %2313 = vmatprep.subr.mxu0 %v2146
  %2314 = vmatpush1.msra.mxu0 %v2145
  %2315 = vmatprep.subr.mxu0 %v2144
  %2316 = vmatpush1.msra.mxu0 %v2143
  %2317 = vmatprep.subr.mxu0 %v2142
  %2318 = vmatpush1.msra.mxu0 %v2141
  %2319 = vmatprep.subr.mxu0 %v2140
  %2320 = vmatpush1.msra.mxu0 %v2139
  %2321 = vmatprep.subr.mxu0 0.0
  %2322 = vmatpush2.msra.mxu0 0.0
  %2323 = vmatprep.subr.mxu0 0.0
  %2324 = vmatpush2.msra.mxu0 0.0
  %2325 = vmatprep.subr.mxu0 0.0
  %2326 = vmatpush2.msra.mxu0 0.0
  %2327 = vmatprep.subr.mxu0 0.0
  %2328 = vmatpush2.msra.mxu0 0.0
  %2329 = vmatprep.subr.mxu0 0.0
  %2330 = vmatpush2.msra.mxu0 0.0
  %2331 = vmatprep.subr.mxu0 0.0
  %2332 = vmatpush2.msra.mxu0 0.0
  %2333 = vmatprep.subr.mxu0 0.0
  %2334 = vmatpush2.msra.mxu0 0.0
  %2335 = vmatprep.subr.mxu0 0.0
  %2336 = vmatpush2.msra.mxu0 0.0
  %2337 = vmatprep.subr.mxu0 0.0
  %2338 = vmatpush2.msra.mxu0 0.0
  %2339 = vmatprep.subr.mxu0 0.0
  %2340 = vmatpush2.msra.mxu0 0.0
  %2341 = vmatprep.subr.mxu0 0.0
  %2342 = vmatpush2.msra.mxu0 0.0
  %2343 = vmatprep.subr.mxu0 0.0
  %2344 = vmatpush2.msra.mxu0 0.0
  %2345 = vmatprep.subr.mxu0 0.0
  %2346 = vmatpush2.msra.mxu0 0.0
  %2347 = vmatprep.subr.mxu0 0.0
  %2348 = vmatpush2.msra.mxu0 0.0
  %2349 = vmatprep.subr.mxu0 0.0
  %2350 = vmatpush2.msra.mxu0 0.0
  %2351 = vmatprep.subr.mxu0 0.0
  %2352 = vmatpush2.msra.mxu0 0.0
  %2353 = vmatprep.mubr.f32.mxu0 0.0
  %2354 = vmatmul.mubr.f32.gmra.mxu0 %v2285
  %v2355 = vpop.f32.mrf.mxu0
  %v2356 = vadd.f32 %v2275, %v2355
  %v2357 = vpop.f32.mrf.mxu0
  %v2358 = vadd.f32 %v2277, %v2357
  %2359 = vmatprep.mubr.f32.mxu0 0.0
  %2360 = vmatmul.mubr.f32.gmra.mxu0 %v2287
  %v2361 = vpop.f32.mrf.mxu0
  %v2362 = vadd.f32 %v2281, %v2361
  %v2363 = vpop.f32.mrf.mxu0
  %v2364 = vadd.f32 %v2283, %v2363
  %2365 = vdwg.mxu0
  %v2366 = vld [vmem:[%s4] sm:$0x3]
  %v2368 = vlaneseq
  %v2369 = vshrl.u32 %v2368, 7
  %v2370 = vsub.s32 0, %v2369
  %v2371 = vrot.slane %v2366, %v2370
  %v2372 = vlaneseq
  %v2373 = vshrl.u32 %v2372, 7
  %v2374 = vsub.s32 1, %v2373
  %v2375 = vrot.slane %v2366, %v2374
  %v2378 = vadd.f32 %v2356, %v2371
  %v2379 = vadd.f32 %v2358, %v2375
  %v2380 = vadd.f32 %v2362, %v2371
  %v2381 = vadd.f32 %v2364, %v2375
  %v2382 = vmax.f32 %v2378, 0.0
  %v2383 = vmax.f32 %v2379, 0.0
  %v2384 = vmax.f32 %v2380, 0.0
  %v2385 = vmax.f32 %v2381, 0.0
  %v2386 = vld [vmem:[%s6] sm:$0x1]
  %v2387 = vld [vmem:[%s5] sm:$0xff]
  %v2388 = vld [vmem:[%s5 + $0x8] sm:$0xff]
  %v2389 = vld [vmem:[%s5 + $0x10] sm:$0xff]
  %v2390 = vld [vmem:[%s5 + $0x18] sm:$0xff]
  %v2391 = vld [vmem:[%s5 + $0x20] sm:$0xff]
  %v2392 = vld [vmem:[%s5 + $0x28] sm:$0xff]
  %v2393 = vld [vmem:[%s5 + $0x30] sm:$0xff]
  %v2394 = vld [vmem:[%s5 + $0x38] sm:$0xff]
  %v2395 = vld [vmem:[%s5 + $0x40] sm:$0xff]
  %v2396 = vld [vmem:[%s5 + $0x48] sm:$0xff]
  %v2397 = vld [vmem:[%s5 + $0x50] sm:$0xff]
  %v2398 = vld [vmem:[%s5 + $0x58] sm:$0xff]
  %v2399 = vld [vmem:[%s5 + $0x60] sm:$0xff]
  %v2400 = vld [vmem:[%s5 + $0x68] sm:$0xff]
  %v2401 = vld [vmem:[%s5 + $0x70] sm:$0xff]
  %v2402 = vld [vmem:[%s5 + $0x78] sm:$0xff]
  %v2403 = vld [vmem:[%s5 + $0x80] sm:$0xff]
  %v2404 = vld [vmem:[%s5 + $0x88] sm:$0xff]
  %v2405 = vld [vmem:[%s5 + $0x90] sm:$0xff]
  %v2406 = vld [vmem:[%s5 + $0x98] sm:$0xff]
  %v2407 = vld [vmem:[%s5 + $0xa0] sm:$0xff]
  %v2409 = vsel %vm506, %v2383, 0
  %2411 = vmatprep.subr.mxu0 0.0
  %2412 = vmatpush1.msra.mxu0 %v2402
  %2413 = vmatprep.subr.mxu0 0.0
  %2414 = vmatpush1.msra.mxu0 %v2401
  %2415 = vmatprep.subr.mxu0 0.0
  %2416 = vmatpush1.msra.mxu0 %v2400
  %2417 = vmatprep.subr.mxu0 0.0
  %2418 = vmatpush1.msra.mxu0 %v2399
  %2419 = vmatprep.subr.mxu0 0.0
  %2420 = vmatpush1.msra.mxu0 %v2398
  %2421 = vmatprep.subr.mxu0 0.0
  %2422 = vmatpush1.msra.mxu0 %v2397
  %2423 = vmatprep.subr.mxu0 0.0
  %2424 = vmatpush1.msra.mxu0 %v2396
  %2425 = vmatprep.subr.mxu0 0.0
  %2426 = vmatpush1.msra.mxu0 %v2395
  %2427 = vmatprep.subr.mxu0 0.0
  %2428 = vmatpush1.msra.mxu0 %v2394
  %2429 = vmatprep.subr.mxu0 0.0
  %2430 = vmatpush1.msra.mxu0 %v2393
  %2431 = vmatprep.subr.mxu0 0.0
  %2432 = vmatpush1.msra.mxu0 %v2392
  %2433 = vmatprep.subr.mxu0 0.0
  %2434 = vmatpush1.msra.mxu0 %v2391
  %2435 = vmatprep.subr.mxu0 0.0
  %2436 = vmatpush1.msra.mxu0 %v2390
  %2437 = vmatprep.subr.mxu0 0.0
  %2438 = vmatpush1.msra.mxu0 %v2389
  %2439 = vmatprep.subr.mxu0 0.0
  %2440 = vmatpush1.msra.mxu0 %v2388
  %2441 = vmatprep.subr.mxu0 0.0
  %2442 = vmatpush1.msra.mxu0 %v2387
  %2443 = vmatprep.subr.mxu0 0.0
  %2444 = vmatpush2.msra.mxu0 0.0
  %2445 = vmatprep.subr.mxu0 0.0
  %2446 = vmatpush2.msra.mxu0 0.0
  %2447 = vmatprep.subr.mxu0 0.0
  %2448 = vmatpush2.msra.mxu0 0.0
  %2449 = vmatprep.subr.mxu0 0.0
  %2450 = vmatpush2.msra.mxu0 0.0
  %2451 = vmatprep.subr.mxu0 0.0
  %2452 = vmatpush2.msra.mxu0 0.0
  %2453 = vmatprep.subr.mxu0 0.0
  %2454 = vmatpush2.msra.mxu0 0.0
  %2455 = vmatprep.subr.mxu0 0.0
  %2456 = vmatpush2.msra.mxu0 0.0
  %2457 = vmatprep.subr.mxu0 0.0
  %2458 = vmatpush2.msra.mxu0 0.0
  %2459 = vmatprep.subr.mxu0 0.0
  %2460 = vmatpush2.msra.mxu0 0.0
  %2461 = vmatprep.subr.mxu0 0.0
  %2462 = vmatpush2.msra.mxu0 0.0
  %2463 = vmatprep.subr.mxu0 0.0
  %2464 = vmatpush2.msra.mxu0 0.0
  %2465 = vmatprep.subr.mxu0 0.0
  %2466 = vmatpush2.msra.mxu0 %v2407
  %2467 = vmatprep.subr.mxu0 0.0
  %2468 = vmatpush2.msra.mxu0 %v2406
  %2469 = vmatprep.subr.mxu0 0.0
  %2470 = vmatpush2.msra.mxu0 %v2405
  %2471 = vmatprep.subr.mxu0 0.0
  %2472 = vmatpush2.msra.mxu0 %v2404
  %2473 = vmatprep.subr.mxu0 0.0
  %2474 = vmatpush2.msra.mxu0 %v2403
  %2475 = vmatprep.mubr.f32.mxu0 %v2409
  %2476 = vmatmul.mubr.f32.gmra.mxu0 %v2382
  %v2477 = vpop.f32.mrf.mxu0
  %v2478 = vadd.f32 0.0, %v2477
  %v2479 = vpop.f32.mrf.mxu0
  %2480 = vdwg.mxu0
  %v2481 = vadd.f32 %v2386, %v2478
  %v2482 = vld [vmem:[%s581] sm:$0xff]
  %v2483 = vld [vmem:[%s581 + $0x8] sm:$0xff]
  %v2484 = vld [vmem:[%s581 + $0x10] sm:$0xff]
  %v2485 = vld [vmem:[%s581 + $0x18] sm:$0xff]
  %v2486 = vld [vmem:[%s581 + $0x20] sm:$0xff]
  %v2487 = vld [vmem:[%s581 + $0x28] sm:$0xff]
  %v2488 = vld [vmem:[%s581 + $0x30] sm:$0xff]
  %v2489 = vld [vmem:[%s581 + $0x38] sm:$0xff]
  %v2490 = vld [vmem:[%s581 + $0x40] sm:$0xff]
  %v2491 = vld [vmem:[%s581 + $0x48] sm:$0xff]
  %v2492 = vld [vmem:[%s581 + $0x50] sm:$0xff]
  %v2493 = vld [vmem:[%s581 + $0x58] sm:$0xff]
  %v2494 = vld [vmem:[%s581 + $0x60] sm:$0xff]
  %v2495 = vld [vmem:[%s581 + $0x68] sm:$0xff]
  %v2496 = vld [vmem:[%s581 + $0x70] sm:$0xff]
  %v2497 = vld [vmem:[%s581 + $0x78] sm:$0xff]
  %v2498 = vld [vmem:[%s581 + $0x80] sm:$0xff]
  %v2499 = vld [vmem:[%s581 + $0x88] sm:$0xff]
  %v2500 = vld [vmem:[%s581 + $0x90] sm:$0xff]
  %v2501 = vld [vmem:[%s581 + $0x98] sm:$0xff]
  %v2502 = vld [vmem:[%s581 + $0xa0] sm:$0xff]
  %v2504 = vrot.slane %v2382, 1
  %v2505 = vrot.slane %v2383, 1
  %v2507 = vsel %vm506, %v2505, 0
  %2509 = vmatprep.subr.mxu0 0.0
  %2510 = vmatpush1.msra.mxu0 %v2497
  %2511 = vmatprep.subr.mxu0 0.0
  %2512 = vmatpush1.msra.mxu0 %v2496
  %2513 = vmatprep.subr.mxu0 0.0
  %2514 = vmatpush1.msra.mxu0 %v2495
  %2515 = vmatprep.subr.mxu0 0.0
  %2516 = vmatpush1.msra.mxu0 %v2494
  %2517 = vmatprep.subr.mxu0 0.0
  %2518 = vmatpush1.msra.mxu0 %v2493
  %2519 = vmatprep.subr.mxu0 0.0
  %2520 = vmatpush1.msra.mxu0 %v2492
  %2521 = vmatprep.subr.mxu0 0.0
  %2522 = vmatpush1.msra.mxu0 %v2491
  %2523 = vmatprep.subr.mxu0 0.0
  %2524 = vmatpush1.msra.mxu0 %v2490
  %2525 = vmatprep.subr.mxu0 0.0
  %2526 = vmatpush1.msra.mxu0 %v2489
  %2527 = vmatprep.subr.mxu0 0.0
  %2528 = vmatpush1.msra.mxu0 %v2488
  %2529 = vmatprep.subr.mxu0 0.0
  %2530 = vmatpush1.msra.mxu0 %v2487
  %2531 = vmatprep.subr.mxu0 0.0
  %2532 = vmatpush1.msra.mxu0 %v2486
  %2533 = vmatprep.subr.mxu0 0.0
  %2534 = vmatpush1.msra.mxu0 %v2485
  %2535 = vmatprep.subr.mxu0 0.0
  %2536 = vmatpush1.msra.mxu0 %v2484
  %2537 = vmatprep.subr.mxu0 0.0
  %2538 = vmatpush1.msra.mxu0 %v2483
  %2539 = vmatprep.subr.mxu0 0.0
  %2540 = vmatpush1.msra.mxu0 %v2482
  %2541 = vmatprep.subr.mxu0 0.0
  %2542 = vmatpush2.msra.mxu0 0.0
  %2543 = vmatprep.subr.mxu0 0.0
  %2544 = vmatpush2.msra.mxu0 0.0
  %2545 = vmatprep.subr.mxu0 0.0
  %2546 = vmatpush2.msra.mxu0 0.0
  %2547 = vmatprep.subr.mxu0 0.0
  %2548 = vmatpush2.msra.mxu0 0.0
  %2549 = vmatprep.subr.mxu0 0.0
  %2550 = vmatpush2.msra.mxu0 0.0
  %2551 = vmatprep.subr.mxu0 0.0
  %2552 = vmatpush2.msra.mxu0 0.0
  %2553 = vmatprep.subr.mxu0 0.0
  %2554 = vmatpush2.msra.mxu0 0.0
  %2555 = vmatprep.subr.mxu0 0.0
  %2556 = vmatpush2.msra.mxu0 0.0
  %2557 = vmatprep.subr.mxu0 0.0
  %2558 = vmatpush2.msra.mxu0 0.0
  %2559 = vmatprep.subr.mxu0 0.0
  %2560 = vmatpush2.msra.mxu0 0.0
  %2561 = vmatprep.subr.mxu0 0.0
  %2562 = vmatpush2.msra.mxu0 0.0
  %2563 = vmatprep.subr.mxu0 0.0
  %2564 = vmatpush2.msra.mxu0 %v2502
  %2565 = vmatprep.subr.mxu0 0.0
  %2566 = vmatpush2.msra.mxu0 %v2501
  %2567 = vmatprep.subr.mxu0 0.0
  %2568 = vmatpush2.msra.mxu0 %v2500
  %2569 = vmatprep.subr.mxu0 0.0
  %2570 = vmatpush2.msra.mxu0 %v2499
  %2571 = vmatprep.subr.mxu0 0.0
  %2572 = vmatpush2.msra.mxu0 %v2498
  %2573 = vmatprep.mubr.f32.mxu0 %v2507
  %2574 = vmatmul.mubr.f32.gmra.mxu0 %v2504
  %v2575 = vpop.f32.mrf.mxu0
  %v2576 = vadd.f32 0.0, %v2575
  %v2577 = vpop.f32.mrf.mxu0
  %2578 = vdwg.mxu0
  %v2579 = vadd.f32 %v2481, %v2576
  %v2580 = vld [vmem:[%s680] sm:$0xff]
  %v2581 = vld [vmem:[%s680 + $0x8] sm:$0xff]
  %v2582 = vld [vmem:[%s680 + $0x10] sm:$0xff]
  %v2583 = vld [vmem:[%s680 + $0x18] sm:$0xff]
  %v2584 = vld [vmem:[%s680 + $0x20] sm:$0xff]
  %v2585 = vld [vmem:[%s680 + $0x28] sm:$0xff]
  %v2586 = vld [vmem:[%s680 + $0x30] sm:$0xff]
  %v2587 = vld [vmem:[%s680 + $0x38] sm:$0xff]
  %v2588 = vld [vmem:[%s680 + $0x40] sm:$0xff]
  %v2589 = vld [vmem:[%s680 + $0x48] sm:$0xff]
  %v2590 = vld [vmem:[%s680 + $0x50] sm:$0xff]
  %v2591 = vld [vmem:[%s680 + $0x58] sm:$0xff]
  %v2592 = vld [vmem:[%s680 + $0x60] sm:$0xff]
  %v2593 = vld [vmem:[%s680 + $0x68] sm:$0xff]
  %v2594 = vld [vmem:[%s680 + $0x70] sm:$0xff]
  %v2595 = vld [vmem:[%s680 + $0x78] sm:$0xff]
  %v2596 = vld [vmem:[%s680 + $0x80] sm:$0xff]
  %v2597 = vld [vmem:[%s680 + $0x88] sm:$0xff]
  %v2598 = vld [vmem:[%s680 + $0x90] sm:$0xff]
  %v2599 = vld [vmem:[%s680 + $0x98] sm:$0xff]
  %v2600 = vld [vmem:[%s680 + $0xa0] sm:$0xff]
  %v2601 = vrot.slane %v2382, 2
  %v2602 = vrot.slane %v2383, 2
  %v2604 = vsel %vm506, %v2602, 0
  %2606 = vmatprep.subr.mxu0 0.0
  %2607 = vmatpush1.msra.mxu0 %v2595
  %2608 = vmatprep.subr.mxu0 0.0
  %2609 = vmatpush1.msra.mxu0 %v2594
  %2610 = vmatprep.subr.mxu0 0.0
  %2611 = vmatpush1.msra.mxu0 %v2593
  %2612 = vmatprep.subr.mxu0 0.0
  %2613 = vmatpush1.msra.mxu0 %v2592
  %2614 = vmatprep.subr.mxu0 0.0
  %2615 = vmatpush1.msra.mxu0 %v2591
  %2616 = vmatprep.subr.mxu0 0.0
  %2617 = vmatpush1.msra.mxu0 %v2590
  %2618 = vmatprep.subr.mxu0 0.0
  %2619 = vmatpush1.msra.mxu0 %v2589
  %2620 = vmatprep.subr.mxu0 0.0
  %2621 = vmatpush1.msra.mxu0 %v2588
  %2622 = vmatprep.subr.mxu0 0.0
  %2623 = vmatpush1.msra.mxu0 %v2587
  %2624 = vmatprep.subr.mxu0 0.0
  %2625 = vmatpush1.msra.mxu0 %v2586
  %2626 = vmatprep.subr.mxu0 0.0
  %2627 = vmatpush1.msra.mxu0 %v2585
  %2628 = vmatprep.subr.mxu0 0.0
  %2629 = vmatpush1.msra.mxu0 %v2584
  %2630 = vmatprep.subr.mxu0 0.0
  %2631 = vmatpush1.msra.mxu0 %v2583
  %2632 = vmatprep.subr.mxu0 0.0
  %2633 = vmatpush1.msra.mxu0 %v2582
  %2634 = vmatprep.subr.mxu0 0.0
  %2635 = vmatpush1.msra.mxu0 %v2581
  %2636 = vmatprep.subr.mxu0 0.0
  %2637 = vmatpush1.msra.mxu0 %v2580
  %2638 = vmatprep.subr.mxu0 0.0
  %2639 = vmatpush2.msra.mxu0 0.0
  %2640 = vmatprep.subr.mxu0 0.0
  %2641 = vmatpush2.msra.mxu0 0.0
  %2642 = vmatprep.subr.mxu0 0.0
  %2643 = vmatpush2.msra.mxu0 0.0
  %2644 = vmatprep.subr.mxu0 0.0
  %2645 = vmatpush2.msra.mxu0 0.0
  %2646 = vmatprep.subr.mxu0 0.0
  %2647 = vmatpush2.msra.mxu0 0.0
  %2648 = vmatprep.subr.mxu0 0.0
  %2649 = vmatpush2.msra.mxu0 0.0
  %2650 = vmatprep.subr.mxu0 0.0
  %2651 = vmatpush2.msra.mxu0 0.0
  %2652 = vmatprep.subr.mxu0 0.0
  %2653 = vmatpush2.msra.mxu0 0.0
  %2654 = vmatprep.subr.mxu0 0.0
  %2655 = vmatpush2.msra.mxu0 0.0
  %2656 = vmatprep.subr.mxu0 0.0
  %2657 = vmatpush2.msra.mxu0 0.0
  %2658 = vmatprep.subr.mxu0 0.0
  %2659 = vmatpush2.msra.mxu0 0.0
  %2660 = vmatprep.subr.mxu0 0.0
  %2661 = vmatpush2.msra.mxu0 %v2600
  %2662 = vmatprep.subr.mxu0 0.0
  %2663 = vmatpush2.msra.mxu0 %v2599
  %2664 = vmatprep.subr.mxu0 0.0
  %2665 = vmatpush2.msra.mxu0 %v2598
  %2666 = vmatprep.subr.mxu0 0.0
  %2667 = vmatpush2.msra.mxu0 %v2597
  %2668 = vmatprep.subr.mxu0 0.0
  %2669 = vmatpush2.msra.mxu0 %v2596
  %2670 = vmatprep.mubr.f32.mxu0 %v2604
  %2671 = vmatmul.mubr.f32.gmra.mxu0 %v2601
  %v2672 = vpop.f32.mrf.mxu0
  %v2673 = vadd.f32 0.0, %v2672
  %v2674 = vpop.f32.mrf.mxu0
  %2675 = vdwg.mxu0
  %v2676 = vadd.f32 %v2579, %v2673
  %v2677 = vld [vmem:[%s778] sm:$0xff]
  %v2678 = vld [vmem:[%s778 + $0x8] sm:$0xff]
  %v2679 = vld [vmem:[%s778 + $0x10] sm:$0xff]
  %v2680 = vld [vmem:[%s778 + $0x18] sm:$0xff]
  %v2681 = vld [vmem:[%s778 + $0x20] sm:$0xff]
  %v2682 = vld [vmem:[%s778 + $0x28] sm:$0xff]
  %v2683 = vld [vmem:[%s778 + $0x30] sm:$0xff]
  %v2684 = vld [vmem:[%s778 + $0x38] sm:$0xff]
  %v2685 = vld [vmem:[%s778 + $0x40] sm:$0xff]
  %v2686 = vld [vmem:[%s778 + $0x48] sm:$0xff]
  %v2687 = vld [vmem:[%s778 + $0x50] sm:$0xff]
  %v2688 = vld [vmem:[%s778 + $0x58] sm:$0xff]
  %v2689 = vld [vmem:[%s778 + $0x60] sm:$0xff]
  %v2690 = vld [vmem:[%s778 + $0x68] sm:$0xff]
  %v2691 = vld [vmem:[%s778 + $0x70] sm:$0xff]
  %v2692 = vld [vmem:[%s778 + $0x78] sm:$0xff]
  %v2693 = vld [vmem:[%s778 + $0x80] sm:$0xff]
  %v2694 = vld [vmem:[%s778 + $0x88] sm:$0xff]
  %v2695 = vld [vmem:[%s778 + $0x90] sm:$0xff]
  %v2696 = vld [vmem:[%s778 + $0x98] sm:$0xff]
  %v2697 = vld [vmem:[%s778 + $0xa0] sm:$0xff]
  %v2698 = vrot.slane %v2382, 3
  %v2699 = vrot.slane %v2383, 3
  %v2701 = vsel %vm506, %v2699, 0
  %2703 = vmatprep.subr.mxu0 0.0
  %2704 = vmatpush1.msra.mxu0 %v2692
  %2705 = vmatprep.subr.mxu0 0.0
  %2706 = vmatpush1.msra.mxu0 %v2691
  %2707 = vmatprep.subr.mxu0 0.0
  %2708 = vmatpush1.msra.mxu0 %v2690
  %2709 = vmatprep.subr.mxu0 0.0
  %2710 = vmatpush1.msra.mxu0 %v2689
  %2711 = vmatprep.subr.mxu0 0.0
  %2712 = vmatpush1.msra.mxu0 %v2688
  %2713 = vmatprep.subr.mxu0 0.0
  %2714 = vmatpush1.msra.mxu0 %v2687
  %2715 = vmatprep.subr.mxu0 0.0
  %2716 = vmatpush1.msra.mxu0 %v2686
  %2717 = vmatprep.subr.mxu0 0.0
  %2718 = vmatpush1.msra.mxu0 %v2685
  %2719 = vmatprep.subr.mxu0 0.0
  %2720 = vmatpush1.msra.mxu0 %v2684
  %2721 = vmatprep.subr.mxu0 0.0
  %2722 = vmatpush1.msra.mxu0 %v2683
  %2723 = vmatprep.subr.mxu0 0.0
  %2724 = vmatpush1.msra.mxu0 %v2682
  %2725 = vmatprep.subr.mxu0 0.0
  %2726 = vmatpush1.msra.mxu0 %v2681
  %2727 = vmatprep.subr.mxu0 0.0
  %2728 = vmatpush1.msra.mxu0 %v2680
  %2729 = vmatprep.subr.mxu0 0.0
  %2730 = vmatpush1.msra.mxu0 %v2679
  %2731 = vmatprep.subr.mxu0 0.0
  %2732 = vmatpush1.msra.mxu0 %v2678
  %2733 = vmatprep.subr.mxu0 0.0
  %2734 = vmatpush1.msra.mxu0 %v2677
  %2735 = vmatprep.subr.mxu0 0.0
  %2736 = vmatpush2.msra.mxu0 0.0
  %2737 = vmatprep.subr.mxu0 0.0
  %2738 = vmatpush2.msra.mxu0 0.0
  %2739 = vmatprep.subr.mxu0 0.0
  %2740 = vmatpush2.msra.mxu0 0.0
  %2741 = vmatprep.subr.mxu0 0.0
  %2742 = vmatpush2.msra.mxu0 0.0
  %2743 = vmatprep.subr.mxu0 0.0
  %2744 = vmatpush2.msra.mxu0 0.0
  %2745 = vmatprep.subr.mxu0 0.0
  %2746 = vmatpush2.msra.mxu0 0.0
  %2747 = vmatprep.subr.mxu0 0.0
  %2748 = vmatpush2.msra.mxu0 0.0
  %2749 = vmatprep.subr.mxu0 0.0
  %2750 = vmatpush2.msra.mxu0 0.0
  %2751 = vmatprep.subr.mxu0 0.0
  %2752 = vmatpush2.msra.mxu0 0.0
  %2753 = vmatprep.subr.mxu0 0.0
  %2754 = vmatpush2.msra.mxu0 0.0
  %2755 = vmatprep.subr.mxu0 0.0
  %2756 = vmatpush2.msra.mxu0 0.0
  %2757 = vmatprep.subr.mxu0 0.0
  %2758 = vmatpush2.msra.mxu0 %v2697
  %2759 = vmatprep.subr.mxu0 0.0
  %2760 = vmatpush2.msra.mxu0 %v2696
  %2761 = vmatprep.subr.mxu0 0.0
  %2762 = vmatpush2.msra.mxu0 %v2695
  %2763 = vmatprep.subr.mxu0 0.0
  %2764 = vmatpush2.msra.mxu0 %v2694
  %2765 = vmatprep.subr.mxu0 0.0
  %2766 = vmatpush2.msra.mxu0 %v2693
  %2767 = vmatprep.mubr.f32.mxu0 %v2701
  %2768 = vmatmul.mubr.f32.gmra.mxu0 %v2698
  %v2769 = vpop.f32.mrf.mxu0
  %v2770 = vadd.f32 0.0, %v2769
  %v2771 = vpop.f32.mrf.mxu0
  %2772 = vdwg.mxu0
  %v2773 = vadd.f32 %v2676, %v2770
  %v2774 = vld [vmem:[%s876] sm:$0xff]
  %v2775 = vld [vmem:[%s876 + $0x8] sm:$0xff]
  %v2776 = vld [vmem:[%s876 + $0x10] sm:$0xff]
  %v2777 = vld [vmem:[%s876 + $0x18] sm:$0xff]
  %v2778 = vld [vmem:[%s876 + $0x20] sm:$0xff]
  %v2779 = vld [vmem:[%s876 + $0x28] sm:$0xff]
  %v2780 = vld [vmem:[%s876 + $0x30] sm:$0xff]
  %v2781 = vld [vmem:[%s876 + $0x38] sm:$0xff]
  %v2782 = vld [vmem:[%s876 + $0x40] sm:$0xff]
  %v2783 = vld [vmem:[%s876 + $0x48] sm:$0xff]
  %v2784 = vld [vmem:[%s876 + $0x50] sm:$0xff]
  %v2785 = vld [vmem:[%s876 + $0x58] sm:$0xff]
  %v2786 = vld [vmem:[%s876 + $0x60] sm:$0xff]
  %v2787 = vld [vmem:[%s876 + $0x68] sm:$0xff]
  %v2788 = vld [vmem:[%s876 + $0x70] sm:$0xff]
  %v2789 = vld [vmem:[%s876 + $0x78] sm:$0xff]
  %v2790 = vld [vmem:[%s876 + $0x80] sm:$0xff]
  %v2791 = vld [vmem:[%s876 + $0x88] sm:$0xff]
  %v2792 = vld [vmem:[%s876 + $0x90] sm:$0xff]
  %v2793 = vld [vmem:[%s876 + $0x98] sm:$0xff]
  %v2794 = vld [vmem:[%s876 + $0xa0] sm:$0xff]
  %v2795 = vrot.slane %v2382, 4
  %v2796 = vrot.slane %v2383, 4
  %v2798 = vsel %vm506, %v2796, 0
  %2800 = vmatprep.subr.mxu0 0.0
  %2801 = vmatpush1.msra.mxu0 %v2789
  %2802 = vmatprep.subr.mxu0 0.0
  %2803 = vmatpush1.msra.mxu0 %v2788
  %2804 = vmatprep.subr.mxu0 0.0
  %2805 = vmatpush1.msra.mxu0 %v2787
  %2806 = vmatprep.subr.mxu0 0.0
  %2807 = vmatpush1.msra.mxu0 %v2786
  %2808 = vmatprep.subr.mxu0 0.0
  %2809 = vmatpush1.msra.mxu0 %v2785
  %2810 = vmatprep.subr.mxu0 0.0
  %2811 = vmatpush1.msra.mxu0 %v2784
  %2812 = vmatprep.subr.mxu0 0.0
  %2813 = vmatpush1.msra.mxu0 %v2783
  %2814 = vmatprep.subr.mxu0 0.0
  %2815 = vmatpush1.msra.mxu0 %v2782
  %2816 = vmatprep.subr.mxu0 0.0
  %2817 = vmatpush1.msra.mxu0 %v2781
  %2818 = vmatprep.subr.mxu0 0.0
  %2819 = vmatpush1.msra.mxu0 %v2780
  %2820 = vmatprep.subr.mxu0 0.0
  %2821 = vmatpush1.msra.mxu0 %v2779
  %2822 = vmatprep.subr.mxu0 0.0
  %2823 = vmatpush1.msra.mxu0 %v2778
  %2824 = vmatprep.subr.mxu0 0.0
  %2825 = vmatpush1.msra.mxu0 %v2777
  %2826 = vmatprep.subr.mxu0 0.0
  %2827 = vmatpush1.msra.mxu0 %v2776
  %2828 = vmatprep.subr.mxu0 0.0
  %2829 = vmatpush1.msra.mxu0 %v2775
  %2830 = vmatprep.subr.mxu0 0.0
  %2831 = vmatpush1.msra.mxu0 %v2774
  %2832 = vmatprep.subr.mxu0 0.0
  %2833 = vmatpush2.msra.mxu0 0.0
  %2834 = vmatprep.subr.mxu0 0.0
  %2835 = vmatpush2.msra.mxu0 0.0
  %2836 = vmatprep.subr.mxu0 0.0
  %2837 = vmatpush2.msra.mxu0 0.0
  %2838 = vmatprep.subr.mxu0 0.0
  %2839 = vmatpush2.msra.mxu0 0.0
  %2840 = vmatprep.subr.mxu0 0.0
  %2841 = vmatpush2.msra.mxu0 0.0
  %2842 = vmatprep.subr.mxu0 0.0
  %2843 = vmatpush2.msra.mxu0 0.0
  %2844 = vmatprep.subr.mxu0 0.0
  %2845 = vmatpush2.msra.mxu0 0.0
  %2846 = vmatprep.subr.mxu0 0.0
  %2847 = vmatpush2.msra.mxu0 0.0
  %2848 = vmatprep.subr.mxu0 0.0
  %2849 = vmatpush2.msra.mxu0 0.0
  %2850 = vmatprep.subr.mxu0 0.0
  %2851 = vmatpush2.msra.mxu0 0.0
  %2852 = vmatprep.subr.mxu0 0.0
  %2853 = vmatpush2.msra.mxu0 0.0
  %2854 = vmatprep.subr.mxu0 0.0
  %2855 = vmatpush2.msra.mxu0 %v2794
  %2856 = vmatprep.subr.mxu0 0.0
  %2857 = vmatpush2.msra.mxu0 %v2793
  %2858 = vmatprep.subr.mxu0 0.0
  %2859 = vmatpush2.msra.mxu0 %v2792
  %2860 = vmatprep.subr.mxu0 0.0
  %2861 = vmatpush2.msra.mxu0 %v2791
  %2862 = vmatprep.subr.mxu0 0.0
  %2863 = vmatpush2.msra.mxu0 %v2790
  %2864 = vmatprep.mubr.f32.mxu0 %v2798
  %2865 = vmatmul.mubr.f32.gmra.mxu0 %v2795
  %v2866 = vpop.f32.mrf.mxu0
  %v2867 = vadd.f32 0.0, %v2866
  %v2868 = vpop.f32.mrf.mxu0
  %2869 = vdwg.mxu0
  %v2870 = vadd.f32 %v2773, %v2867
  %v2871 = vld [vmem:[%s974] sm:$0xff]
  %v2872 = vld [vmem:[%s974 + $0x8] sm:$0xff]
  %v2873 = vld [vmem:[%s974 + $0x10] sm:$0xff]
  %v2874 = vld [vmem:[%s974 + $0x18] sm:$0xff]
  %v2875 = vld [vmem:[%s974 + $0x20] sm:$0xff]
  %v2876 = vld [vmem:[%s974 + $0x28] sm:$0xff]
  %v2877 = vld [vmem:[%s974 + $0x30] sm:$0xff]
  %v2878 = vld [vmem:[%s974 + $0x38] sm:$0xff]
  %v2879 = vld [vmem:[%s974 + $0x40] sm:$0xff]
  %v2880 = vld [vmem:[%s974 + $0x48] sm:$0xff]
  %v2881 = vld [vmem:[%s974 + $0x50] sm:$0xff]
  %v2882 = vld [vmem:[%s974 + $0x58] sm:$0xff]
  %v2883 = vld [vmem:[%s974 + $0x60] sm:$0xff]
  %v2884 = vld [vmem:[%s974 + $0x68] sm:$0xff]
  %v2885 = vld [vmem:[%s974 + $0x70] sm:$0xff]
  %v2886 = vld [vmem:[%s974 + $0x78] sm:$0xff]
  %v2887 = vld [vmem:[%s974 + $0x80] sm:$0xff]
  %v2888 = vld [vmem:[%s974 + $0x88] sm:$0xff]
  %v2889 = vld [vmem:[%s974 + $0x90] sm:$0xff]
  %v2890 = vld [vmem:[%s974 + $0x98] sm:$0xff]
  %v2891 = vld [vmem:[%s974 + $0xa0] sm:$0xff]
  %v2892 = vrot.slane %v2382, 5
  %v2893 = vrot.slane %v2383, 5
  %v2895 = vsel %vm506, %v2893, 0
  %2897 = vmatprep.subr.mxu0 0.0
  %2898 = vmatpush1.msra.mxu0 %v2886
  %2899 = vmatprep.subr.mxu0 0.0
  %2900 = vmatpush1.msra.mxu0 %v2885
  %2901 = vmatprep.subr.mxu0 0.0
  %2902 = vmatpush1.msra.mxu0 %v2884
  %2903 = vmatprep.subr.mxu0 0.0
  %2904 = vmatpush1.msra.mxu0 %v2883
  %2905 = vmatprep.subr.mxu0 0.0
  %2906 = vmatpush1.msra.mxu0 %v2882
  %2907 = vmatprep.subr.mxu0 0.0
  %2908 = vmatpush1.msra.mxu0 %v2881
  %2909 = vmatprep.subr.mxu0 0.0
  %2910 = vmatpush1.msra.mxu0 %v2880
  %2911 = vmatprep.subr.mxu0 0.0
  %2912 = vmatpush1.msra.mxu0 %v2879
  %2913 = vmatprep.subr.mxu0 0.0
  %2914 = vmatpush1.msra.mxu0 %v2878
  %2915 = vmatprep.subr.mxu0 0.0
  %2916 = vmatpush1.msra.mxu0 %v2877
  %2917 = vmatprep.subr.mxu0 0.0
  %2918 = vmatpush1.msra.mxu0 %v2876
  %2919 = vmatprep.subr.mxu0 0.0
  %2920 = vmatpush1.msra.mxu0 %v2875
  %2921 = vmatprep.subr.mxu0 0.0
  %2922 = vmatpush1.msra.mxu0 %v2874
  %2923 = vmatprep.subr.mxu0 0.0
  %2924 = vmatpush1.msra.mxu0 %v2873
  %2925 = vmatprep.subr.mxu0 0.0
  %2926 = vmatpush1.msra.mxu0 %v2872
  %2927 = vmatprep.subr.mxu0 0.0
  %2928 = vmatpush1.msra.mxu0 %v2871
  %2929 = vmatprep.subr.mxu0 0.0
  %2930 = vmatpush2.msra.mxu0 0.0
  %2931 = vmatprep.subr.mxu0 0.0
  %2932 = vmatpush2.msra.mxu0 0.0
  %2933 = vmatprep.subr.mxu0 0.0
  %2934 = vmatpush2.msra.mxu0 0.0
  %2935 = vmatprep.subr.mxu0 0.0
  %2936 = vmatpush2.msra.mxu0 0.0
  %2937 = vmatprep.subr.mxu0 0.0
  %2938 = vmatpush2.msra.mxu0 0.0
  %2939 = vmatprep.subr.mxu0 0.0
  %2940 = vmatpush2.msra.mxu0 0.0
  %2941 = vmatprep.subr.mxu0 0.0
  %2942 = vmatpush2.msra.mxu0 0.0
  %2943 = vmatprep.subr.mxu0 0.0
  %2944 = vmatpush2.msra.mxu0 0.0
  %2945 = vmatprep.subr.mxu0 0.0
  %2946 = vmatpush2.msra.mxu0 0.0
  %2947 = vmatprep.subr.mxu0 0.0
  %2948 = vmatpush2.msra.mxu0 0.0
  %2949 = vmatprep.subr.mxu0 0.0
  %2950 = vmatpush2.msra.mxu0 0.0
  %2951 = vmatprep.subr.mxu0 0.0
  %2952 = vmatpush2.msra.mxu0 %v2891
  %2953 = vmatprep.subr.mxu0 0.0
  %2954 = vmatpush2.msra.mxu0 %v2890
  %2955 = vmatprep.subr.mxu0 0.0
  %2956 = vmatpush2.msra.mxu0 %v2889
  %2957 = vmatprep.subr.mxu0 0.0
  %2958 = vmatpush2.msra.mxu0 %v2888
  %2959 = vmatprep.subr.mxu0 0.0
  %2960 = vmatpush2.msra.mxu0 %v2887
  %2961 = vmatprep.mubr.f32.mxu0 %v2895
  %2962 = vmatmul.mubr.f32.gmra.mxu0 %v2892
  %v2963 = vpop.f32.mrf.mxu0
  %v2964 = vadd.f32 0.0, %v2963
  %v2965 = vpop.f32.mrf.mxu0
  %2966 = vdwg.mxu0
  %v2967 = vadd.f32 %v2870, %v2964
  %v2968 = vld [vmem:[%s1072] sm:$0xff]
  %v2969 = vld [vmem:[%s1072 + $0x8] sm:$0xff]
  %v2970 = vld [vmem:[%s1072 + $0x10] sm:$0xff]
  %v2971 = vld [vmem:[%s1072 + $0x18] sm:$0xff]
  %v2972 = vld [vmem:[%s1072 + $0x20] sm:$0xff]
  %v2973 = vld [vmem:[%s1072 + $0x28] sm:$0xff]
  %v2974 = vld [vmem:[%s1072 + $0x30] sm:$0xff]
  %v2975 = vld [vmem:[%s1072 + $0x38] sm:$0xff]
  %v2976 = vld [vmem:[%s1072 + $0x40] sm:$0xff]
  %v2977 = vld [vmem:[%s1072 + $0x48] sm:$0xff]
  %v2978 = vld [vmem:[%s1072 + $0x50] sm:$0xff]
  %v2979 = vld [vmem:[%s1072 + $0x58] sm:$0xff]
  %v2980 = vld [vmem:[%s1072 + $0x60] sm:$0xff]
  %v2981 = vld [vmem:[%s1072 + $0x68] sm:$0xff]
  %v2982 = vld [vmem:[%s1072 + $0x70] sm:$0xff]
  %v2983 = vld [vmem:[%s1072 + $0x78] sm:$0xff]
  %v2984 = vld [vmem:[%s1072 + $0x80] sm:$0xff]
  %v2985 = vld [vmem:[%s1072 + $0x88] sm:$0xff]
  %v2986 = vld [vmem:[%s1072 + $0x90] sm:$0xff]
  %v2987 = vld [vmem:[%s1072 + $0x98] sm:$0xff]
  %v2988 = vld [vmem:[%s1072 + $0xa0] sm:$0xff]
  %v2989 = vrot.slane %v2382, 6
  %v2990 = vrot.slane %v2383, 6
  %v2992 = vsel %vm506, %v2990, 0
  %2994 = vmatprep.subr.mxu0 0.0
  %2995 = vmatpush1.msra.mxu0 %v2983
  %2996 = vmatprep.subr.mxu0 0.0
  %2997 = vmatpush1.msra.mxu0 %v2982
  %2998 = vmatprep.subr.mxu0 0.0
  %2999 = vmatpush1.msra.mxu0 %v2981
  %3000 = vmatprep.subr.mxu0 0.0
  %3001 = vmatpush1.msra.mxu0 %v2980
  %3002 = vmatprep.subr.mxu0 0.0
  %3003 = vmatpush1.msra.mxu0 %v2979
  %3004 = vmatprep.subr.mxu0 0.0
  %3005 = vmatpush1.msra.mxu0 %v2978
  %3006 = vmatprep.subr.mxu0 0.0
  %3007 = vmatpush1.msra.mxu0 %v2977
  %3008 = vmatprep.subr.mxu0 0.0
  %3009 = vmatpush1.msra.mxu0 %v2976
  %3010 = vmatprep.subr.mxu0 0.0
  %3011 = vmatpush1.msra.mxu0 %v2975
  %3012 = vmatprep.subr.mxu0 0.0
  %3013 = vmatpush1.msra.mxu0 %v2974
  %3014 = vmatprep.subr.mxu0 0.0
  %3015 = vmatpush1.msra.mxu0 %v2973
  %3016 = vmatprep.subr.mxu0 0.0
  %3017 = vmatpush1.msra.mxu0 %v2972
  %3018 = vmatprep.subr.mxu0 0.0
  %3019 = vmatpush1.msra.mxu0 %v2971
  %3020 = vmatprep.subr.mxu0 0.0
  %3021 = vmatpush1.msra.mxu0 %v2970
  %3022 = vmatprep.subr.mxu0 0.0
  %3023 = vmatpush1.msra.mxu0 %v2969
  %3024 = vmatprep.subr.mxu0 0.0
  %3025 = vmatpush1.msra.mxu0 %v2968
  %3026 = vmatprep.subr.mxu0 0.0
  %3027 = vmatpush2.msra.mxu0 0.0
  %3028 = vmatprep.subr.mxu0 0.0
  %3029 = vmatpush2.msra.mxu0 0.0
  %3030 = vmatprep.subr.mxu0 0.0
  %3031 = vmatpush2.msra.mxu0 0.0
  %3032 = vmatprep.subr.mxu0 0.0
  %3033 = vmatpush2.msra.mxu0 0.0
  %3034 = vmatprep.subr.mxu0 0.0
  %3035 = vmatpush2.msra.mxu0 0.0
  %3036 = vmatprep.subr.mxu0 0.0
  %3037 = vmatpush2.msra.mxu0 0.0
  %3038 = vmatprep.subr.mxu0 0.0
  %3039 = vmatpush2.msra.mxu0 0.0
  %3040 = vmatprep.subr.mxu0 0.0
  %3041 = vmatpush2.msra.mxu0 0.0
  %3042 = vmatprep.subr.mxu0 0.0
  %3043 = vmatpush2.msra.mxu0 0.0
  %3044 = vmatprep.subr.mxu0 0.0
  %3045 = vmatpush2.msra.mxu0 0.0
  %3046 = vmatprep.subr.mxu0 0.0
  %3047 = vmatpush2.msra.mxu0 0.0
  %3048 = vmatprep.subr.mxu0 0.0
  %3049 = vmatpush2.msra.mxu0 %v2988
  %3050 = vmatprep.subr.mxu0 0.0
  %3051 = vmatpush2.msra.mxu0 %v2987
  %3052 = vmatprep.subr.mxu0 0.0
  %3053 = vmatpush2.msra.mxu0 %v2986
  %3054 = vmatprep.subr.mxu0 0.0
  %3055 = vmatpush2.msra.mxu0 %v2985
  %3056 = vmatprep.subr.mxu0 0.0
  %3057 = vmatpush2.msra.mxu0 %v2984
  %3058 = vmatprep.mubr.f32.mxu0 %v2992
  %3059 = vmatmul.mubr.f32.gmra.mxu0 %v2989
  %v3060 = vpop.f32.mrf.mxu0
  %v3061 = vadd.f32 0.0, %v3060
  %v3062 = vpop.f32.mrf.mxu0
  %3063 = vdwg.mxu0
  %v3064 = vadd.f32 %v2967, %v3061
  %v3065 = vld [vmem:[%s1170] sm:$0xff]
  %v3066 = vld [vmem:[%s1170 + $0x8] sm:$0xff]
  %v3067 = vld [vmem:[%s1170 + $0x10] sm:$0xff]
  %v3068 = vld [vmem:[%s1170 + $0x18] sm:$0xff]
  %v3069 = vld [vmem:[%s1170 + $0x20] sm:$0xff]
  %v3070 = vld [vmem:[%s1170 + $0x28] sm:$0xff]
  %v3071 = vld [vmem:[%s1170 + $0x30] sm:$0xff]
  %v3072 = vld [vmem:[%s1170 + $0x38] sm:$0xff]
  %v3073 = vld [vmem:[%s1170 + $0x40] sm:$0xff]
  %v3074 = vld [vmem:[%s1170 + $0x48] sm:$0xff]
  %v3075 = vld [vmem:[%s1170 + $0x50] sm:$0xff]
  %v3076 = vld [vmem:[%s1170 + $0x58] sm:$0xff]
  %v3077 = vld [vmem:[%s1170 + $0x60] sm:$0xff]
  %v3078 = vld [vmem:[%s1170 + $0x68] sm:$0xff]
  %v3079 = vld [vmem:[%s1170 + $0x70] sm:$0xff]
  %v3080 = vld [vmem:[%s1170 + $0x78] sm:$0xff]
  %v3081 = vld [vmem:[%s1170 + $0x80] sm:$0xff]
  %v3082 = vld [vmem:[%s1170 + $0x88] sm:$0xff]
  %v3083 = vld [vmem:[%s1170 + $0x90] sm:$0xff]
  %v3084 = vld [vmem:[%s1170 + $0x98] sm:$0xff]
  %v3085 = vld [vmem:[%s1170 + $0xa0] sm:$0xff]
  %v3086 = vrot.slane %v2382, 7
  %v3087 = vrot.slane %v2383, 7
  %v3089 = vsel %vm506, %v3087, 0
  %3091 = vmatprep.subr.mxu0 0.0
  %3092 = vmatpush1.msra.mxu0 %v3080
  %3093 = vmatprep.subr.mxu0 0.0
  %3094 = vmatpush1.msra.mxu0 %v3079
  %3095 = vmatprep.subr.mxu0 0.0
  %3096 = vmatpush1.msra.mxu0 %v3078
  %3097 = vmatprep.subr.mxu0 0.0
  %3098 = vmatpush1.msra.mxu0 %v3077
  %3099 = vmatprep.subr.mxu0 0.0
  %3100 = vmatpush1.msra.mxu0 %v3076
  %3101 = vmatprep.subr.mxu0 0.0
  %3102 = vmatpush1.msra.mxu0 %v3075
  %3103 = vmatprep.subr.mxu0 0.0
  %3104 = vmatpush1.msra.mxu0 %v3074
  %3105 = vmatprep.subr.mxu0 0.0
  %3106 = vmatpush1.msra.mxu0 %v3073
  %3107 = vmatprep.subr.mxu0 0.0
  %3108 = vmatpush1.msra.mxu0 %v3072
  %3109 = vmatprep.subr.mxu0 0.0
  %3110 = vmatpush1.msra.mxu0 %v3071
  %3111 = vmatprep.subr.mxu0 0.0
  %3112 = vmatpush1.msra.mxu0 %v3070
  %3113 = vmatprep.subr.mxu0 0.0
  %3114 = vmatpush1.msra.mxu0 %v3069
  %3115 = vmatprep.subr.mxu0 0.0
  %3116 = vmatpush1.msra.mxu0 %v3068
  %3117 = vmatprep.subr.mxu0 0.0
  %3118 = vmatpush1.msra.mxu0 %v3067
  %3119 = vmatprep.subr.mxu0 0.0
  %3120 = vmatpush1.msra.mxu0 %v3066
  %3121 = vmatprep.subr.mxu0 0.0
  %3122 = vmatpush1.msra.mxu0 %v3065
  %3123 = vmatprep.subr.mxu0 0.0
  %3124 = vmatpush2.msra.mxu0 0.0
  %3125 = vmatprep.subr.mxu0 0.0
  %3126 = vmatpush2.msra.mxu0 0.0
  %3127 = vmatprep.subr.mxu0 0.0
  %3128 = vmatpush2.msra.mxu0 0.0
  %3129 = vmatprep.subr.mxu0 0.0
  %3130 = vmatpush2.msra.mxu0 0.0
  %3131 = vmatprep.subr.mxu0 0.0
  %3132 = vmatpush2.msra.mxu0 0.0
  %3133 = vmatprep.subr.mxu0 0.0
  %3134 = vmatpush2.msra.mxu0 0.0
  %3135 = vmatprep.subr.mxu0 0.0
  %3136 = vmatpush2.msra.mxu0 0.0
  %3137 = vmatprep.subr.mxu0 0.0
  %3138 = vmatpush2.msra.mxu0 0.0
  %3139 = vmatprep.subr.mxu0 0.0
  %3140 = vmatpush2.msra.mxu0 0.0
  %3141 = vmatprep.subr.mxu0 0.0
  %3142 = vmatpush2.msra.mxu0 0.0
  %3143 = vmatprep.subr.mxu0 0.0
  %3144 = vmatpush2.msra.mxu0 0.0
  %3145 = vmatprep.subr.mxu0 0.0
  %3146 = vmatpush2.msra.mxu0 %v3085
  %3147 = vmatprep.subr.mxu0 0.0
  %3148 = vmatpush2.msra.mxu0 %v3084
  %3149 = vmatprep.subr.mxu0 0.0
  %3150 = vmatpush2.msra.mxu0 %v3083
  %3151 = vmatprep.subr.mxu0 0.0
  %3152 = vmatpush2.msra.mxu0 %v3082
  %3153 = vmatprep.subr.mxu0 0.0
  %3154 = vmatpush2.msra.mxu0 %v3081
  %3155 = vmatprep.mubr.f32.mxu0 %v3089
  %3156 = vmatmul.mubr.f32.gmra.mxu0 %v3086
  %v3157 = vpop.f32.mrf.mxu0
  %v3158 = vadd.f32 0.0, %v3157
  %v3159 = vpop.f32.mrf.mxu0
  %3160 = vdwg.mxu0
  %v3161 = vadd.f32 %v3064, %v3158
  %v3162 = vld [vmem:[%s1268] sm:$0xff]
  %v3163 = vld [vmem:[%s1268 + $0x8] sm:$0xff]
  %v3164 = vld [vmem:[%s1268 + $0x10] sm:$0xff]
  %v3165 = vld [vmem:[%s1268 + $0x18] sm:$0xff]
  %v3166 = vld [vmem:[%s1268 + $0x20] sm:$0xff]
  %v3167 = vld [vmem:[%s1268 + $0x28] sm:$0xff]
  %v3168 = vld [vmem:[%s1268 + $0x30] sm:$0xff]
  %v3169 = vld [vmem:[%s1268 + $0x38] sm:$0xff]
  %v3170 = vld [vmem:[%s1268 + $0x40] sm:$0xff]
  %v3171 = vld [vmem:[%s1268 + $0x48] sm:$0xff]
  %v3172 = vld [vmem:[%s1268 + $0x50] sm:$0xff]
  %v3173 = vld [vmem:[%s1268 + $0x58] sm:$0xff]
  %v3174 = vld [vmem:[%s1268 + $0x60] sm:$0xff]
  %v3175 = vld [vmem:[%s1268 + $0x68] sm:$0xff]
  %v3176 = vld [vmem:[%s1268 + $0x70] sm:$0xff]
  %v3177 = vld [vmem:[%s1268 + $0x78] sm:$0xff]
  %v3178 = vld [vmem:[%s1268 + $0x80] sm:$0xff]
  %v3179 = vld [vmem:[%s1268 + $0x88] sm:$0xff]
  %v3180 = vld [vmem:[%s1268 + $0x90] sm:$0xff]
  %v3181 = vld [vmem:[%s1268 + $0x98] sm:$0xff]
  %v3182 = vld [vmem:[%s1268 + $0xa0] sm:$0xff]
  %v3184 = vsel %vm506, %v2385, 0
  %3186 = vmatprep.subr.mxu0 0.0
  %3187 = vmatpush1.msra.mxu0 %v3177
  %3188 = vmatprep.subr.mxu0 0.0
  %3189 = vmatpush1.msra.mxu0 %v3176
  %3190 = vmatprep.subr.mxu0 0.0
  %3191 = vmatpush1.msra.mxu0 %v3175
  %3192 = vmatprep.subr.mxu0 0.0
  %3193 = vmatpush1.msra.mxu0 %v3174
  %3194 = vmatprep.subr.mxu0 0.0
  %3195 = vmatpush1.msra.mxu0 %v3173
  %3196 = vmatprep.subr.mxu0 0.0
  %3197 = vmatpush1.msra.mxu0 %v3172
  %3198 = vmatprep.subr.mxu0 0.0
  %3199 = vmatpush1.msra.mxu0 %v3171
  %3200 = vmatprep.subr.mxu0 0.0
  %3201 = vmatpush1.msra.mxu0 %v3170
  %3202 = vmatprep.subr.mxu0 0.0
  %3203 = vmatpush1.msra.mxu0 %v3169
  %3204 = vmatprep.subr.mxu0 0.0
  %3205 = vmatpush1.msra.mxu0 %v3168
  %3206 = vmatprep.subr.mxu0 0.0
  %3207 = vmatpush1.msra.mxu0 %v3167
  %3208 = vmatprep.subr.mxu0 0.0
  %3209 = vmatpush1.msra.mxu0 %v3166
  %3210 = vmatprep.subr.mxu0 0.0
  %3211 = vmatpush1.msra.mxu0 %v3165
  %3212 = vmatprep.subr.mxu0 0.0
  %3213 = vmatpush1.msra.mxu0 %v3164
  %3214 = vmatprep.subr.mxu0 0.0
  %3215 = vmatpush1.msra.mxu0 %v3163
  %3216 = vmatprep.subr.mxu0 0.0
  %3217 = vmatpush1.msra.mxu0 %v3162
  %3218 = vmatprep.subr.mxu0 0.0
  %3219 = vmatpush2.msra.mxu0 0.0
  %3220 = vmatprep.subr.mxu0 0.0
  %3221 = vmatpush2.msra.mxu0 0.0
  %3222 = vmatprep.subr.mxu0 0.0
  %3223 = vmatpush2.msra.mxu0 0.0
  %3224 = vmatprep.subr.mxu0 0.0
  %3225 = vmatpush2.msra.mxu0 0.0
  %3226 = vmatprep.subr.mxu0 0.0
  %3227 = vmatpush2.msra.mxu0 0.0
  %3228 = vmatprep.subr.mxu0 0.0
  %3229 = vmatpush2.msra.mxu0 0.0
  %3230 = vmatprep.subr.mxu0 0.0
  %3231 = vmatpush2.msra.mxu0 0.0
  %3232 = vmatprep.subr.mxu0 0.0
  %3233 = vmatpush2.msra.mxu0 0.0
  %3234 = vmatprep.subr.mxu0 0.0
  %3235 = vmatpush2.msra.mxu0 0.0
  %3236 = vmatprep.subr.mxu0 0.0
  %3237 = vmatpush2.msra.mxu0 0.0
  %3238 = vmatprep.subr.mxu0 0.0
  %3239 = vmatpush2.msra.mxu0 0.0
  %3240 = vmatprep.subr.mxu0 0.0
  %3241 = vmatpush2.msra.mxu0 %v3182
  %3242 = vmatprep.subr.mxu0 0.0
  %3243 = vmatpush2.msra.mxu0 %v3181
  %3244 = vmatprep.subr.mxu0 0.0
  %3245 = vmatpush2.msra.mxu0 %v3180
  %3246 = vmatprep.subr.mxu0 0.0
  %3247 = vmatpush2.msra.mxu0 %v3179
  %3248 = vmatprep.subr.mxu0 0.0
  %3249 = vmatpush2.msra.mxu0 %v3178
  %3250 = vmatprep.mubr.f32.mxu0 %v3184
  %3251 = vmatmul.mubr.f32.gmra.mxu0 %v2384
  %v3252 = vpop.f32.mrf.mxu0
  %v3253 = vadd.f32 0.0, %v3252
  %v3254 = vpop.f32.mrf.mxu0
  %3255 = vdwg.mxu0
  %v3256 = vadd.f32 %v3161, %v3253
  %v3257 = vld [vmem:[%s1364] sm:$0xff]
  %v3258 = vld [vmem:[%s1364 + $0x8] sm:$0xff]
  %v3259 = vld [vmem:[%s1364 + $0x10] sm:$0xff]
  %v3260 = vld [vmem:[%s1364 + $0x18] sm:$0xff]
  %v3261 = vld [vmem:[%s1364 + $0x20] sm:$0xff]
  %v3262 = vld [vmem:[%s1364 + $0x28] sm:$0xff]
  %v3263 = vld [vmem:[%s1364 + $0x30] sm:$0xff]
  %v3264 = vld [vmem:[%s1364 + $0x38] sm:$0xff]
  %v3265 = vld [vmem:[%s1364 + $0x40] sm:$0xff]
  %v3266 = vld [vmem:[%s1364 + $0x48] sm:$0xff]
  %v3267 = vld [vmem:[%s1364 + $0x50] sm:$0xff]
  %v3268 = vld [vmem:[%s1364 + $0x58] sm:$0xff]
  %v3269 = vld [vmem:[%s1364 + $0x60] sm:$0xff]
  %v3270 = vld [vmem:[%s1364 + $0x68] sm:$0xff]
  %v3271 = vld [vmem:[%s1364 + $0x70] sm:$0xff]
  %v3272 = vld [vmem:[%s1364 + $0x78] sm:$0xff]
  %v3273 = vld [vmem:[%s1364 + $0x80] sm:$0xff]
  %v3274 = vld [vmem:[%s1364 + $0x88] sm:$0xff]
  %v3275 = vld [vmem:[%s1364 + $0x90] sm:$0xff]
  %v3276 = vld [vmem:[%s1364 + $0x98] sm:$0xff]
  %v3277 = vld [vmem:[%s1364 + $0xa0] sm:$0xff]
  %v3279 = vrot.slane %v2384, 1
  %v3280 = vrot.slane %v2385, 1
  %v3282 = vsel %vm506, %v3280, 0
  %3284 = vmatprep.subr.mxu0 0.0
  %3285 = vmatpush1.msra.mxu0 %v3272
  %3286 = vmatprep.subr.mxu0 0.0
  %3287 = vmatpush1.msra.mxu0 %v3271
  %3288 = vmatprep.subr.mxu0 0.0
  %3289 = vmatpush1.msra.mxu0 %v3270
  %3290 = vmatprep.subr.mxu0 0.0
  %3291 = vmatpush1.msra.mxu0 %v3269
  %3292 = vmatprep.subr.mxu0 0.0
  %3293 = vmatpush1.msra.mxu0 %v3268
  %3294 = vmatprep.subr.mxu0 0.0
  %3295 = vmatpush1.msra.mxu0 %v3267
  %3296 = vmatprep.subr.mxu0 0.0
  %3297 = vmatpush1.msra.mxu0 %v3266
  %3298 = vmatprep.subr.mxu0 0.0
  %3299 = vmatpush1.msra.mxu0 %v3265
  %3300 = vmatprep.subr.mxu0 0.0
  %3301 = vmatpush1.msra.mxu0 %v3264
  %3302 = vmatprep.subr.mxu0 0.0
  %3303 = vmatpush1.msra.mxu0 %v3263
  %3304 = vmatprep.subr.mxu0 0.0
  %3305 = vmatpush1.msra.mxu0 %v3262
  %3306 = vmatprep.subr.mxu0 0.0
  %3307 = vmatpush1.msra.mxu0 %v3261
  %3308 = vmatprep.subr.mxu0 0.0
  %3309 = vmatpush1.msra.mxu0 %v3260
  %3310 = vmatprep.subr.mxu0 0.0
  %3311 = vmatpush1.msra.mxu0 %v3259
  %3312 = vmatprep.subr.mxu0 0.0
  %3313 = vmatpush1.msra.mxu0 %v3258
  %3314 = vmatprep.subr.mxu0 0.0
  %3315 = vmatpush1.msra.mxu0 %v3257
  %3316 = vmatprep.subr.mxu0 0.0
  %3317 = vmatpush2.msra.mxu0 0.0
  %3318 = vmatprep.subr.mxu0 0.0
  %3319 = vmatpush2.msra.mxu0 0.0
  %3320 = vmatprep.subr.mxu0 0.0
  %3321 = vmatpush2.msra.mxu0 0.0
  %3322 = vmatprep.subr.mxu0 0.0
  %3323 = vmatpush2.msra.mxu0 0.0
  %3324 = vmatprep.subr.mxu0 0.0
  %3325 = vmatpush2.msra.mxu0 0.0
  %3326 = vmatprep.subr.mxu0 0.0
  %3327 = vmatpush2.msra.mxu0 0.0
  %3328 = vmatprep.subr.mxu0 0.0
  %3329 = vmatpush2.msra.mxu0 0.0
  %3330 = vmatprep.subr.mxu0 0.0
  %3331 = vmatpush2.msra.mxu0 0.0
  %3332 = vmatprep.subr.mxu0 0.0
  %3333 = vmatpush2.msra.mxu0 0.0
  %3334 = vmatprep.subr.mxu0 0.0
  %3335 = vmatpush2.msra.mxu0 0.0
  %3336 = vmatprep.subr.mxu0 0.0
  %3337 = vmatpush2.msra.mxu0 0.0
  %3338 = vmatprep.subr.mxu0 0.0
  %3339 = vmatpush2.msra.mxu0 %v3277
  %3340 = vmatprep.subr.mxu0 0.0
  %3341 = vmatpush2.msra.mxu0 %v3276
  %3342 = vmatprep.subr.mxu0 0.0
  %3343 = vmatpush2.msra.mxu0 %v3275
  %3344 = vmatprep.subr.mxu0 0.0
  %3345 = vmatpush2.msra.mxu0 %v3274
  %3346 = vmatprep.subr.mxu0 0.0
  %3347 = vmatpush2.msra.mxu0 %v3273
  %3348 = vmatprep.mubr.f32.mxu0 %v3282
  %3349 = vmatmul.mubr.f32.gmra.mxu0 %v3279
  %v3350 = vpop.f32.mrf.mxu0
  %v3351 = vadd.f32 0.0, %v3350
  %v3352 = vpop.f32.mrf.mxu0
  %3353 = vdwg.mxu0
  %v3354 = vadd.f32 %v3256, %v3351
  %v3355 = vld [vmem:[%s1463] sm:$0xff]
  %v3356 = vld [vmem:[%s1463 + $0x8] sm:$0xff]
  %v3357 = vld [vmem:[%s1463 + $0x10] sm:$0xff]
  %v3358 = vld [vmem:[%s1463 + $0x18] sm:$0xff]
  %v3359 = vld [vmem:[%s1463 + $0x20] sm:$0xff]
  %v3360 = vld [vmem:[%s1463 + $0x28] sm:$0xff]
  %v3361 = vld [vmem:[%s1463 + $0x30] sm:$0xff]
  %v3362 = vld [vmem:[%s1463 + $0x38] sm:$0xff]
  %v3363 = vld [vmem:[%s1463 + $0x40] sm:$0xff]
  %v3364 = vld [vmem:[%s1463 + $0x48] sm:$0xff]
  %v3365 = vld [vmem:[%s1463 + $0x50] sm:$0xff]
  %v3366 = vld [vmem:[%s1463 + $0x58] sm:$0xff]
  %v3367 = vld [vmem:[%s1463 + $0x60] sm:$0xff]
  %v3368 = vld [vmem:[%s1463 + $0x68] sm:$0xff]
  %v3369 = vld [vmem:[%s1463 + $0x70] sm:$0xff]
  %v3370 = vld [vmem:[%s1463 + $0x78] sm:$0xff]
  %v3371 = vld [vmem:[%s1463 + $0x80] sm:$0xff]
  %v3372 = vld [vmem:[%s1463 + $0x88] sm:$0xff]
  %v3373 = vld [vmem:[%s1463 + $0x90] sm:$0xff]
  %v3374 = vld [vmem:[%s1463 + $0x98] sm:$0xff]
  %v3375 = vld [vmem:[%s1463 + $0xa0] sm:$0xff]
  %v3376 = vrot.slane %v2384, 2
  %v3377 = vrot.slane %v2385, 2
  %v3379 = vsel %vm506, %v3377, 0
  %3381 = vmatprep.subr.mxu0 0.0
  %3382 = vmatpush1.msra.mxu0 %v3370
  %3383 = vmatprep.subr.mxu0 0.0
  %3384 = vmatpush1.msra.mxu0 %v3369
  %3385 = vmatprep.subr.mxu0 0.0
  %3386 = vmatpush1.msra.mxu0 %v3368
  %3387 = vmatprep.subr.mxu0 0.0
  %3388 = vmatpush1.msra.mxu0 %v3367
  %3389 = vmatprep.subr.mxu0 0.0
  %3390 = vmatpush1.msra.mxu0 %v3366
  %3391 = vmatprep.subr.mxu0 0.0
  %3392 = vmatpush1.msra.mxu0 %v3365
  %3393 = vmatprep.subr.mxu0 0.0
  %3394 = vmatpush1.msra.mxu0 %v3364
  %3395 = vmatprep.subr.mxu0 0.0
  %3396 = vmatpush1.msra.mxu0 %v3363
  %3397 = vmatprep.subr.mxu0 0.0
  %3398 = vmatpush1.msra.mxu0 %v3362
  %3399 = vmatprep.subr.mxu0 0.0
  %3400 = vmatpush1.msra.mxu0 %v3361
  %3401 = vmatprep.subr.mxu0 0.0
  %3402 = vmatpush1.msra.mxu0 %v3360
  %3403 = vmatprep.subr.mxu0 0.0
  %3404 = vmatpush1.msra.mxu0 %v3359
  %3405 = vmatprep.subr.mxu0 0.0
  %3406 = vmatpush1.msra.mxu0 %v3358
  %3407 = vmatprep.subr.mxu0 0.0
  %3408 = vmatpush1.msra.mxu0 %v3357
  %3409 = vmatprep.subr.mxu0 0.0
  %3410 = vmatpush1.msra.mxu0 %v3356
  %3411 = vmatprep.subr.mxu0 0.0
  %3412 = vmatpush1.msra.mxu0 %v3355
  %3413 = vmatprep.subr.mxu0 0.0
  %3414 = vmatpush2.msra.mxu0 0.0
  %3415 = vmatprep.subr.mxu0 0.0
  %3416 = vmatpush2.msra.mxu0 0.0
  %3417 = vmatprep.subr.mxu0 0.0
  %3418 = vmatpush2.msra.mxu0 0.0
  %3419 = vmatprep.subr.mxu0 0.0
  %3420 = vmatpush2.msra.mxu0 0.0
  %3421 = vmatprep.subr.mxu0 0.0
  %3422 = vmatpush2.msra.mxu0 0.0
  %3423 = vmatprep.subr.mxu0 0.0
  %3424 = vmatpush2.msra.mxu0 0.0
  %3425 = vmatprep.subr.mxu0 0.0
  %3426 = vmatpush2.msra.mxu0 0.0
  %3427 = vmatprep.subr.mxu0 0.0
  %3428 = vmatpush2.msra.mxu0 0.0
  %3429 = vmatprep.subr.mxu0 0.0
  %3430 = vmatpush2.msra.mxu0 0.0
  %3431 = vmatprep.subr.mxu0 0.0
  %3432 = vmatpush2.msra.mxu0 0.0
  %3433 = vmatprep.subr.mxu0 0.0
  %3434 = vmatpush2.msra.mxu0 0.0
  %3435 = vmatprep.subr.mxu0 0.0
  %3436 = vmatpush2.msra.mxu0 %v3375
  %3437 = vmatprep.subr.mxu0 0.0
  %3438 = vmatpush2.msra.mxu0 %v3374
  %3439 = vmatprep.subr.mxu0 0.0
  %3440 = vmatpush2.msra.mxu0 %v3373
  %3441 = vmatprep.subr.mxu0 0.0
  %3442 = vmatpush2.msra.mxu0 %v3372
  %3443 = vmatprep.subr.mxu0 0.0
  %3444 = vmatpush2.msra.mxu0 %v3371
  %3445 = vmatprep.mubr.f32.mxu0 %v3379
  %3446 = vmatmul.mubr.f32.gmra.mxu0 %v3376
  %v3447 = vpop.f32.mrf.mxu0
  %v3448 = vadd.f32 0.0, %v3447
  %v3449 = vpop.f32.mrf.mxu0
  %3450 = vdwg.mxu0
  %v3451 = vadd.f32 %v3354, %v3448
  %v3452 = vld [vmem:[%s1561] sm:$0xff]
  %v3453 = vld [vmem:[%s1561 + $0x8] sm:$0xff]
  %v3454 = vld [vmem:[%s1561 + $0x10] sm:$0xff]
  %v3455 = vld [vmem:[%s1561 + $0x18] sm:$0xff]
  %v3456 = vld [vmem:[%s1561 + $0x20] sm:$0xff]
  %v3457 = vld [vmem:[%s1561 + $0x28] sm:$0xff]
  %v3458 = vld [vmem:[%s1561 + $0x30] sm:$0xff]
  %v3459 = vld [vmem:[%s1561 + $0x38] sm:$0xff]
  %v3460 = vld [vmem:[%s1561 + $0x40] sm:$0xff]
  %v3461 = vld [vmem:[%s1561 + $0x48] sm:$0xff]
  %v3462 = vld [vmem:[%s1561 + $0x50] sm:$0xff]
  %v3463 = vld [vmem:[%s1561 + $0x58] sm:$0xff]
  %v3464 = vld [vmem:[%s1561 + $0x60] sm:$0xff]
  %v3465 = vld [vmem:[%s1561 + $0x68] sm:$0xff]
  %v3466 = vld [vmem:[%s1561 + $0x70] sm:$0xff]
  %v3467 = vld [vmem:[%s1561 + $0x78] sm:$0xff]
  %v3468 = vld [vmem:[%s1561 + $0x80] sm:$0xff]
  %v3469 = vld [vmem:[%s1561 + $0x88] sm:$0xff]
  %v3470 = vld [vmem:[%s1561 + $0x90] sm:$0xff]
  %v3471 = vld [vmem:[%s1561 + $0x98] sm:$0xff]
  %v3472 = vld [vmem:[%s1561 + $0xa0] sm:$0xff]
  %v3473 = vrot.slane %v2384, 3
  %v3474 = vrot.slane %v2385, 3
  %v3476 = vsel %vm506, %v3474, 0
  %3478 = vmatprep.subr.mxu0 0.0
  %3479 = vmatpush1.msra.mxu0 %v3467
  %3480 = vmatprep.subr.mxu0 0.0
  %3481 = vmatpush1.msra.mxu0 %v3466
  %3482 = vmatprep.subr.mxu0 0.0
  %3483 = vmatpush1.msra.mxu0 %v3465
  %3484 = vmatprep.subr.mxu0 0.0
  %3485 = vmatpush1.msra.mxu0 %v3464
  %3486 = vmatprep.subr.mxu0 0.0
  %3487 = vmatpush1.msra.mxu0 %v3463
  %3488 = vmatprep.subr.mxu0 0.0
  %3489 = vmatpush1.msra.mxu0 %v3462
  %3490 = vmatprep.subr.mxu0 0.0
  %3491 = vmatpush1.msra.mxu0 %v3461
  %3492 = vmatprep.subr.mxu0 0.0
  %3493 = vmatpush1.msra.mxu0 %v3460
  %3494 = vmatprep.subr.mxu0 0.0
  %3495 = vmatpush1.msra.mxu0 %v3459
  %3496 = vmatprep.subr.mxu0 0.0
  %3497 = vmatpush1.msra.mxu0 %v3458
  %3498 = vmatprep.subr.mxu0 0.0
  %3499 = vmatpush1.msra.mxu0 %v3457
  %3500 = vmatprep.subr.mxu0 0.0
  %3501 = vmatpush1.msra.mxu0 %v3456
  %3502 = vmatprep.subr.mxu0 0.0
  %3503 = vmatpush1.msra.mxu0 %v3455
  %3504 = vmatprep.subr.mxu0 0.0
  %3505 = vmatpush1.msra.mxu0 %v3454
  %3506 = vmatprep.subr.mxu0 0.0
  %3507 = vmatpush1.msra.mxu0 %v3453
  %3508 = vmatprep.subr.mxu0 0.0
  %3509 = vmatpush1.msra.mxu0 %v3452
  %3510 = vmatprep.subr.mxu0 0.0
  %3511 = vmatpush2.msra.mxu0 0.0
  %3512 = vmatprep.subr.mxu0 0.0
  %3513 = vmatpush2.msra.mxu0 0.0
  %3514 = vmatprep.subr.mxu0 0.0
  %3515 = vmatpush2.msra.mxu0 0.0
  %3516 = vmatprep.subr.mxu0 0.0
  %3517 = vmatpush2.msra.mxu0 0.0
  %3518 = vmatprep.subr.mxu0 0.0
  %3519 = vmatpush2.msra.mxu0 0.0
  %3520 = vmatprep.subr.mxu0 0.0
  %3521 = vmatpush2.msra.mxu0 0.0
  %3522 = vmatprep.subr.mxu0 0.0
  %3523 = vmatpush2.msra.mxu0 0.0
  %3524 = vmatprep.subr.mxu0 0.0
  %3525 = vmatpush2.msra.mxu0 0.0
  %3526 = vmatprep.subr.mxu0 0.0
  %3527 = vmatpush2.msra.mxu0 0.0
  %3528 = vmatprep.subr.mxu0 0.0
  %3529 = vmatpush2.msra.mxu0 0.0
  %3530 = vmatprep.subr.mxu0 0.0
  %3531 = vmatpush2.msra.mxu0 0.0
  %3532 = vmatprep.subr.mxu0 0.0
  %3533 = vmatpush2.msra.mxu0 %v3472
  %3534 = vmatprep.subr.mxu0 0.0
  %3535 = vmatpush2.msra.mxu0 %v3471
  %3536 = vmatprep.subr.mxu0 0.0
  %3537 = vmatpush2.msra.mxu0 %v3470
  %3538 = vmatprep.subr.mxu0 0.0
  %3539 = vmatpush2.msra.mxu0 %v3469
  %3540 = vmatprep.subr.mxu0 0.0
  %3541 = vmatpush2.msra.mxu0 %v3468
  %3542 = vmatprep.mubr.f32.mxu0 %v3476
  %3543 = vmatmul.mubr.f32.gmra.mxu0 %v3473
  %v3544 = vpop.f32.mrf.mxu0
  %v3545 = vadd.f32 0.0, %v3544
  %v3546 = vpop.f32.mrf.mxu0
  %3547 = vdwg.mxu0
  %v3548 = vadd.f32 %v3451, %v3545
  %v3549 = vld [vmem:[%s1659] sm:$0xff]
  %v3550 = vld [vmem:[%s1659 + $0x8] sm:$0xff]
  %v3551 = vld [vmem:[%s1659 + $0x10] sm:$0xff]
  %v3552 = vld [vmem:[%s1659 + $0x18] sm:$0xff]
  %v3553 = vld [vmem:[%s1659 + $0x20] sm:$0xff]
  %v3554 = vld [vmem:[%s1659 + $0x28] sm:$0xff]
  %v3555 = vld [vmem:[%s1659 + $0x30] sm:$0xff]
  %v3556 = vld [vmem:[%s1659 + $0x38] sm:$0xff]
  %v3557 = vld [vmem:[%s1659 + $0x40] sm:$0xff]
  %v3558 = vld [vmem:[%s1659 + $0x48] sm:$0xff]
  %v3559 = vld [vmem:[%s1659 + $0x50] sm:$0xff]
  %v3560 = vld [vmem:[%s1659 + $0x58] sm:$0xff]
  %v3561 = vld [vmem:[%s1659 + $0x60] sm:$0xff]
  %v3562 = vld [vmem:[%s1659 + $0x68] sm:$0xff]
  %v3563 = vld [vmem:[%s1659 + $0x70] sm:$0xff]
  %v3564 = vld [vmem:[%s1659 + $0x78] sm:$0xff]
  %v3565 = vld [vmem:[%s1659 + $0x80] sm:$0xff]
  %v3566 = vld [vmem:[%s1659 + $0x88] sm:$0xff]
  %v3567 = vld [vmem:[%s1659 + $0x90] sm:$0xff]
  %v3568 = vld [vmem:[%s1659 + $0x98] sm:$0xff]
  %v3569 = vld [vmem:[%s1659 + $0xa0] sm:$0xff]
  %v3570 = vrot.slane %v2384, 4
  %v3571 = vrot.slane %v2385, 4
  %v3573 = vsel %vm506, %v3571, 0
  %3575 = vmatprep.subr.mxu0 0.0
  %3576 = vmatpush1.msra.mxu0 %v3564
  %3577 = vmatprep.subr.mxu0 0.0
  %3578 = vmatpush1.msra.mxu0 %v3563
  %3579 = vmatprep.subr.mxu0 0.0
  %3580 = vmatpush1.msra.mxu0 %v3562
  %3581 = vmatprep.subr.mxu0 0.0
  %3582 = vmatpush1.msra.mxu0 %v3561
  %3583 = vmatprep.subr.mxu0 0.0
  %3584 = vmatpush1.msra.mxu0 %v3560
  %3585 = vmatprep.subr.mxu0 0.0
  %3586 = vmatpush1.msra.mxu0 %v3559
  %3587 = vmatprep.subr.mxu0 0.0
  %3588 = vmatpush1.msra.mxu0 %v3558
  %3589 = vmatprep.subr.mxu0 0.0
  %3590 = vmatpush1.msra.mxu0 %v3557
  %3591 = vmatprep.subr.mxu0 0.0
  %3592 = vmatpush1.msra.mxu0 %v3556
  %3593 = vmatprep.subr.mxu0 0.0
  %3594 = vmatpush1.msra.mxu0 %v3555
  %3595 = vmatprep.subr.mxu0 0.0
  %3596 = vmatpush1.msra.mxu0 %v3554
  %3597 = vmatprep.subr.mxu0 0.0
  %3598 = vmatpush1.msra.mxu0 %v3553
  %3599 = vmatprep.subr.mxu0 0.0
  %3600 = vmatpush1.msra.mxu0 %v3552
  %3601 = vmatprep.subr.mxu0 0.0
  %3602 = vmatpush1.msra.mxu0 %v3551
  %3603 = vmatprep.subr.mxu0 0.0
  %3604 = vmatpush1.msra.mxu0 %v3550
  %3605 = vmatprep.subr.mxu0 0.0
  %3606 = vmatpush1.msra.mxu0 %v3549
  %3607 = vmatprep.subr.mxu0 0.0
  %3608 = vmatpush2.msra.mxu0 0.0
  %3609 = vmatprep.subr.mxu0 0.0
  %3610 = vmatpush2.msra.mxu0 0.0
  %3611 = vmatprep.subr.mxu0 0.0
  %3612 = vmatpush2.msra.mxu0 0.0
  %3613 = vmatprep.subr.mxu0 0.0
  %3614 = vmatpush2.msra.mxu0 0.0
  %3615 = vmatprep.subr.mxu0 0.0
  %3616 = vmatpush2.msra.mxu0 0.0
  %3617 = vmatprep.subr.mxu0 0.0
  %3618 = vmatpush2.msra.mxu0 0.0
  %3619 = vmatprep.subr.mxu0 0.0
  %3620 = vmatpush2.msra.mxu0 0.0
  %3621 = vmatprep.subr.mxu0 0.0
  %3622 = vmatpush2.msra.mxu0 0.0
  %3623 = vmatprep.subr.mxu0 0.0
  %3624 = vmatpush2.msra.mxu0 0.0
  %3625 = vmatprep.subr.mxu0 0.0
  %3626 = vmatpush2.msra.mxu0 0.0
  %3627 = vmatprep.subr.mxu0 0.0
  %3628 = vmatpush2.msra.mxu0 0.0
  %3629 = vmatprep.subr.mxu0 0.0
  %3630 = vmatpush2.msra.mxu0 %v3569
  %3631 = vmatprep.subr.mxu0 0.0
  %3632 = vmatpush2.msra.mxu0 %v3568
  %3633 = vmatprep.subr.mxu0 0.0
  %3634 = vmatpush2.msra.mxu0 %v3567
  %3635 = vmatprep.subr.mxu0 0.0
  %3636 = vmatpush2.msra.mxu0 %v3566
  %3637 = vmatprep.subr.mxu0 0.0
  %3638 = vmatpush2.msra.mxu0 %v3565
  %3639 = vmatprep.mubr.f32.mxu0 %v3573
  %3640 = vmatmul.mubr.f32.gmra.mxu0 %v3570
  %v3641 = vpop.f32.mrf.mxu0
  %v3642 = vadd.f32 0.0, %v3641
  %v3643 = vpop.f32.mrf.mxu0
  %3644 = vdwg.mxu0
  %v3645 = vadd.f32 %v3548, %v3642
  %v3646 = vld [vmem:[%s1757] sm:$0xff]
  %v3647 = vld [vmem:[%s1757 + $0x8] sm:$0xff]
  %v3648 = vld [vmem:[%s1757 + $0x10] sm:$0xff]
  %v3649 = vld [vmem:[%s1757 + $0x18] sm:$0xff]
  %v3650 = vld [vmem:[%s1757 + $0x20] sm:$0xff]
  %v3651 = vld [vmem:[%s1757 + $0x28] sm:$0xff]
  %v3652 = vld [vmem:[%s1757 + $0x30] sm:$0xff]
  %v3653 = vld [vmem:[%s1757 + $0x38] sm:$0xff]
  %v3654 = vld [vmem:[%s1757 + $0x40] sm:$0xff]
  %v3655 = vld [vmem:[%s1757 + $0x48] sm:$0xff]
  %v3656 = vld [vmem:[%s1757 + $0x50] sm:$0xff]
  %v3657 = vld [vmem:[%s1757 + $0x58] sm:$0xff]
  %v3658 = vld [vmem:[%s1757 + $0x60] sm:$0xff]
  %v3659 = vld [vmem:[%s1757 + $0x68] sm:$0xff]
  %v3660 = vld [vmem:[%s1757 + $0x70] sm:$0xff]
  %v3661 = vld [vmem:[%s1757 + $0x78] sm:$0xff]
  %v3662 = vld [vmem:[%s1757 + $0x80] sm:$0xff]
  %v3663 = vld [vmem:[%s1757 + $0x88] sm:$0xff]
  %v3664 = vld [vmem:[%s1757 + $0x90] sm:$0xff]
  %v3665 = vld [vmem:[%s1757 + $0x98] sm:$0xff]
  %v3666 = vld [vmem:[%s1757 + $0xa0] sm:$0xff]
  %v3667 = vrot.slane %v2384, 5
  %v3668 = vrot.slane %v2385, 5
  %v3670 = vsel %vm506, %v3668, 0
  %3672 = vmatprep.subr.mxu0 0.0
  %3673 = vmatpush1.msra.mxu0 %v3661
  %3674 = vmatprep.subr.mxu0 0.0
  %3675 = vmatpush1.msra.mxu0 %v3660
  %3676 = vmatprep.subr.mxu0 0.0
  %3677 = vmatpush1.msra.mxu0 %v3659
  %3678 = vmatprep.subr.mxu0 0.0
  %3679 = vmatpush1.msra.mxu0 %v3658
  %3680 = vmatprep.subr.mxu0 0.0
  %3681 = vmatpush1.msra.mxu0 %v3657
  %3682 = vmatprep.subr.mxu0 0.0
  %3683 = vmatpush1.msra.mxu0 %v3656
  %3684 = vmatprep.subr.mxu0 0.0
  %3685 = vmatpush1.msra.mxu0 %v3655
  %3686 = vmatprep.subr.mxu0 0.0
  %3687 = vmatpush1.msra.mxu0 %v3654
  %3688 = vmatprep.subr.mxu0 0.0
  %3689 = vmatpush1.msra.mxu0 %v3653
  %3690 = vmatprep.subr.mxu0 0.0
  %3691 = vmatpush1.msra.mxu0 %v3652
  %3692 = vmatprep.subr.mxu0 0.0
  %3693 = vmatpush1.msra.mxu0 %v3651
  %3694 = vmatprep.subr.mxu0 0.0
  %3695 = vmatpush1.msra.mxu0 %v3650
  %3696 = vmatprep.subr.mxu0 0.0
  %3697 = vmatpush1.msra.mxu0 %v3649
  %3698 = vmatprep.subr.mxu0 0.0
  %3699 = vmatpush1.msra.mxu0 %v3648
  %3700 = vmatprep.subr.mxu0 0.0
  %3701 = vmatpush1.msra.mxu0 %v3647
  %3702 = vmatprep.subr.mxu0 0.0
  %3703 = vmatpush1.msra.mxu0 %v3646
  %3704 = vmatprep.subr.mxu0 0.0
  %3705 = vmatpush2.msra.mxu0 0.0
  %3706 = vmatprep.subr.mxu0 0.0
  %3707 = vmatpush2.msra.mxu0 0.0
  %3708 = vmatprep.subr.mxu0 0.0
  %3709 = vmatpush2.msra.mxu0 0.0
  %3710 = vmatprep.subr.mxu0 0.0
  %3711 = vmatpush2.msra.mxu0 0.0
  %3712 = vmatprep.subr.mxu0 0.0
  %3713 = vmatpush2.msra.mxu0 0.0
  %3714 = vmatprep.subr.mxu0 0.0
  %3715 = vmatpush2.msra.mxu0 0.0
  %3716 = vmatprep.subr.mxu0 0.0
  %3717 = vmatpush2.msra.mxu0 0.0
  %3718 = vmatprep.subr.mxu0 0.0
  %3719 = vmatpush2.msra.mxu0 0.0
  %3720 = vmatprep.subr.mxu0 0.0
  %3721 = vmatpush2.msra.mxu0 0.0
  %3722 = vmatprep.subr.mxu0 0.0
  %3723 = vmatpush2.msra.mxu0 0.0
  %3724 = vmatprep.subr.mxu0 0.0
  %3725 = vmatpush2.msra.mxu0 0.0
  %3726 = vmatprep.subr.mxu0 0.0
  %3727 = vmatpush2.msra.mxu0 %v3666
  %3728 = vmatprep.subr.mxu0 0.0
  %3729 = vmatpush2.msra.mxu0 %v3665
  %3730 = vmatprep.subr.mxu0 0.0
  %3731 = vmatpush2.msra.mxu0 %v3664
  %3732 = vmatprep.subr.mxu0 0.0
  %3733 = vmatpush2.msra.mxu0 %v3663
  %3734 = vmatprep.subr.mxu0 0.0
  %3735 = vmatpush2.msra.mxu0 %v3662
  %3736 = vmatprep.mubr.f32.mxu0 %v3670
  %3737 = vmatmul.mubr.f32.gmra.mxu0 %v3667
  %v3738 = vpop.f32.mrf.mxu0
  %v3739 = vadd.f32 0.0, %v3738
  %v3740 = vpop.f32.mrf.mxu0
  %3741 = vdwg.mxu0
  %v3742 = vadd.f32 %v3645, %v3739
  %v3743 = vmax.f32 %v3742, 0.0
  %v3744 = vld [vmem:[%s7] sm:$0xff]
  %v3745 = vld [vmem:[%s7 + $0x8] sm:$0xff]
  %v3746 = vld [vmem:[%s7 + $0x10] sm:$0xff]
  %v3747 = vld [vmem:[%s7 + $0x18] sm:$0xff]
  %v3748 = vld [vmem:[%s8] sm:$0x1]
  %v3750 = vsel %vm1861, %v3743, 0
  %3752 = vmatprep.subr.mxu0 0.0
  %3753 = vmatpush1.msra.mxu0 0.0
  %3754 = vmatprep.subr.mxu0 0.0
  %3755 = vmatpush1.msra.mxu0 0.0
  %3756 = vmatprep.subr.mxu0 0.0
  %3757 = vmatpush1.msra.mxu0 0.0
  %3758 = vmatprep.subr.mxu0 0.0
  %3759 = vmatpush1.msra.mxu0 0.0
  %3760 = vmatprep.subr.mxu0 0.0
  %3761 = vmatpush1.msra.mxu0 0.0
  %3762 = vmatprep.subr.mxu0 0.0
  %3763 = vmatpush1.msra.mxu0 0.0
  %3764 = vmatprep.subr.mxu0 0.0
  %3765 = vmatpush1.msra.mxu0 0.0
  %3766 = vmatprep.subr.mxu0 0.0
  %3767 = vmatpush1.msra.mxu0 0.0
  %3768 = vmatprep.subr.mxu0 0.0
  %3769 = vmatpush1.msra.mxu0 0.0
  %3770 = vmatprep.subr.mxu0 0.0
  %3771 = vmatpush1.msra.mxu0 0.0
  %3772 = vmatprep.subr.mxu0 0.0
  %3773 = vmatpush1.msra.mxu0 0.0
  %3774 = vmatprep.subr.mxu0 0.0
  %3775 = vmatpush1.msra.mxu0 0.0
  %3776 = vmatprep.subr.mxu0 0.0
  %3777 = vmatpush1.msra.mxu0 %v3747
  %3778 = vmatprep.subr.mxu0 0.0
  %3779 = vmatpush1.msra.mxu0 %v3746
  %3780 = vmatprep.subr.mxu0 0.0
  %3781 = vmatpush1.msra.mxu0 %v3745
  %3782 = vmatprep.subr.mxu0 0.0
  %3783 = vmatpush1.msra.mxu0 %v3744
  %3784 = vmatprep.subr.mxu0 0.0
  %3785 = vmatpush2.msra.mxu0 0.0
  %3786 = vmatprep.subr.mxu0 0.0
  %3787 = vmatpush2.msra.mxu0 0.0
  %3788 = vmatprep.subr.mxu0 0.0
  %3789 = vmatpush2.msra.mxu0 0.0
  %3790 = vmatprep.subr.mxu0 0.0
  %3791 = vmatpush2.msra.mxu0 0.0
  %3792 = vmatprep.subr.mxu0 0.0
  %3793 = vmatpush2.msra.mxu0 0.0
  %3794 = vmatprep.subr.mxu0 0.0
  %3795 = vmatpush2.msra.mxu0 0.0
  %3796 = vmatprep.subr.mxu0 0.0
  %3797 = vmatpush2.msra.mxu0 0.0
  %3798 = vmatprep.subr.mxu0 0.0
  %3799 = vmatpush2.msra.mxu0 0.0
  %3800 = vmatprep.subr.mxu0 0.0
  %3801 = vmatpush2.msra.mxu0 0.0
  %3802 = vmatprep.subr.mxu0 0.0
  %3803 = vmatpush2.msra.mxu0 0.0
  %3804 = vmatprep.subr.mxu0 0.0
  %3805 = vmatpush2.msra.mxu0 0.0
  %3806 = vmatprep.subr.mxu0 0.0
  %3807 = vmatpush2.msra.mxu0 0.0
  %3808 = vmatprep.subr.mxu0 0.0
  %3809 = vmatpush2.msra.mxu0 0.0
  %3810 = vmatprep.subr.mxu0 0.0
  %3811 = vmatpush2.msra.mxu0 0.0
  %3812 = vmatprep.subr.mxu0 0.0
  %3813 = vmatpush2.msra.mxu0 0.0
  %3814 = vmatprep.subr.mxu0 0.0
  %3815 = vmatpush2.msra.mxu0 0.0
  %3816 = vmatprep.mubr.f32.mxu0 0.0
  %3817 = vmatmul.mubr.f32.gmra.mxu0 %v3750
  %v3818 = vpop.f32.mrf.mxu0
  %v3819 = vadd.f32 %v3748, %v3818
  %v3820 = vpop.f32.mrf.mxu0
  %3821 = vdwg.mxu0
  %v3822 = vmax.f32 %v3819, 0.0
  %v3823 = vld [vmem:[%s9] sm:$0x1]
  %v3824 = vmul.f32 %v3822, %v3823
  %v3825 = vsel %vm1938, %v3824, 0.0
  %3826 = vadd.xlane.f32.xlu0 %v3825
  %v3827 = vpop.xlane.xlu0 %3826
  %v3828 = vld [vmem:[#allocation2] sm:$0x1]
  %v3829 = vadd.f32 %v3827, %v3828
  %3830 = vst.msk [vmem:[%s11 + $0x1] sm:$0x1] %vm1944, %v3829
  // Predicated region
  $region46: #{convolutional_eqnec_forward.1} parent=0 // pred_check
    _
  $region47: #{convolutional_eqnec_forward.1} parent=0 // pred_check_branch
    %3832 = sbr.rel (0) target = $region49
  $region48: #{convolutional_eqnec_forward.1} parent=0 // pred_region
    _
  $region49: #{convolutional_eqnec_forward.1} parent=0 // pred_fallthru
    _
  // Predicated region
  $region50: #{convolutional_eqnec_forward.1} parent=0 // pred_check
    _
  $region51: #{convolutional_eqnec_forward.1} parent=0 // pred_check_branch
    %3834 = sbr.rel (0) target = $region53
  $region52: #{convolutional_eqnec_forward.1} parent=0 // pred_region
    _
  $region53: #{convolutional_eqnec_forward.1} parent=0 // pred_fallthru
    _

</llo_original>
